<compile_context>
chip_gen: v5e
topology: v5e:2x2
jax: 0.10.0
libtpu: 0.0.40
codegen_flags: <defaults>
</compile_context>

<pallas_src>
import functools

import jax
import jax.numpy as jnp
from jax.experimental import pallas as pl
from jax.experimental.pallas import tpu as pltpu

D_IN, D_H1, D_H2, D_OUT = 50, 100, 250, 220500
TILE_N = 8192                      # decode3 column tile (multiple of 128, lane-dense output)
VMEM_LIMIT = 40 * 1024 * 1024      # 2 x (250*8192*4B) ~= 15.6 MiB W3 buffers + headroom


def _head_kernel(x_ref, w1_ref, b1_ref, w2_ref, b2_ref, h2_ref):
    # decode1 + ReLU + decode2 + ReLU, computed once (not per output tile).
    h1 = jnp.dot(x_ref[...], w1_ref[...], preferred_element_type=jnp.float32) + b1_ref[...]
    h1 = jnp.maximum(h1, 0.0)
    h2 = jnp.dot(h1, w2_ref[...], preferred_element_type=jnp.float32) + b2_ref[...]
    h2_ref[...] = jnp.maximum(h2, 0.0)


def _decode3_kernel(h2_ref, w3_ref, b3_ref, out_ref):
    # Hot path: (B, 250) @ (250, TILE_N) on the MXU, bias add, no activation.
    out_ref[...] = (
        jnp.dot(h2_ref[...], w3_ref[...], preferred_element_type=jnp.float32) + b3_ref[...]
    )


def prepare_params(params, tile_n=TILE_N):
    """One-time parameter prep: zero-pad decode3's output dim to a multiple of tile_n."""
    w1, b1, w2, b2, w3, b3 = params
    n_out = w3.shape[1]
    n_pad = pl.cdiv(n_out, tile_n) * tile_n
    w3p = jnp.pad(w3, ((0, 0), (0, n_pad - n_out)))
    b3p = jnp.pad(b3, ((0, 0), (0, n_pad - n_out)))
    return (w1, b1, w2, b2, w3p, b3p)


@functools.partial(jax.jit, static_argnames=("tile_n",))
def complex_decoder(x, prepared_params, tile_n=TILE_N):
    w1, b1, w2, b2, w3p, b3p = prepared_params
    B = x.shape[0]
    n_pad = w3p.shape[1]
    assert n_pad % tile_n == 0

    # Layers 1 & 2 once, whole arrays resident in VMEM (shapes are tiny).
    h2 = pl.pallas_call(
        _head_kernel,
        out_shape=jax.ShapeDtypeStruct((B, D_H2), jnp.float32),
    )(x, w1, b1, w2, b2)

    grid_n = n_pad // tile_n
    cost = pl.CostEstimate(
        flops=2 * B * D_H2 * n_pad,
        transcendentals=0,
        bytes_accessed=4 * (D_H2 * n_pad + n_pad + B * n_pad + B * D_H2),
    )

    out = pl.pallas_call(
        _decode3_kernel,
        out_shape=jax.ShapeDtypeStruct((B, n_pad), jnp.float32),
        grid_spec=pltpu.PrefetchScalarGridSpec(
            num_scalar_prefetch=0,
            grid=(grid_n,),
            in_specs=[
                pl.BlockSpec((B, D_H2), lambda i: (0, 0)),       # h2 (resident across tiles)
                pl.BlockSpec((D_H2, tile_n), lambda i: (0, i)),  # W3 column tile (streamed)
                pl.BlockSpec((1, tile_n), lambda i: (0, i)),     # b3 tile
            ],
            out_specs=pl.BlockSpec((B, tile_n), lambda i: (0, i)),
        ),
        compiler_params=pltpu.CompilerParams(
            dimension_semantics=("parallel",),
            vmem_limit_bytes=VMEM_LIMIT,
        ),
        cost_estimate=cost,
    )(h2, w3p, b3p)

    # Padded columns (>= D_OUT) are sliced off; they never influence valid columns.
    return out[:, :D_OUT]


def init_params(key):
    # Deterministic synthetic init mirroring nn.Linear's U(-1/sqrt(fan_in), +1/sqrt(fan_in)).
    ks = jax.random.split(key, 6)

    def linear(kw, kb, fan_in, fan_out):
        bound = 1.0 / (fan_in ** 0.5)
        w = jax.random.uniform(kw, (fan_in, fan_out), jnp.float32, -bound, bound)
        b = jax.random.uniform(kb, (1, fan_out), jnp.float32, -bound, bound)
        return w, b

    w1, b1 = linear(ks[0], ks[1], D_IN, D_H1)
    w2, b2 = linear(ks[2], ks[3], D_H1, D_H2)
    w3, b3 = linear(ks[4], ks[5], D_H2, D_OUT)
    return w1, b1, w2, b2, w3, b3


def reference_forward(x, params):
    w1, b1, w2, b2, w3, b3 = params
    h1 = jnp.maximum(x @ w1 + b1, 0.0)
    h2 = jnp.maximum(h1 @ w2 + b2, 0.0)
    return h2 @ w3 + b3


if __name__ == "__main__":
    key = jax.random.PRNGKey(0)
    k_param, k_x = jax.random.split(key)
    params = init_params(k_param)
    prepared = prepare_params(params)          # one-time pad of W3/b3 (outside hot path)

    batch = 2
    x = jax.random.normal(k_x, (batch, D_IN), dtype=jnp.float32)

    out = complex_decoder(x, prepared)
    out = jax.block_until_ready(out)

    assert out.shape == (batch, D_OUT), out.shape

    ref = jax.block_until_ready(reference_forward(x, params))
    assert jnp.allclose(out, ref, rtol=1e-2, atol=1e-2), (
        float(jnp.max(jnp.abs(out - ref))))

    print("KERNEL_OK")
</pallas_src>

<mosaic_0001>
module attributes {stable_mosaic.version = 11 : i64} {
  func.func @_decode3_kernel(%arg0: i32, %arg1: memref<2x250xf32, #tpu.memory_space<vmem>>, %arg2: memref<250x8192xf32, #tpu.memory_space<vmem>>, %arg3: memref<1x8192xf32, #tpu.memory_space<vmem>>, %arg4: memref<2x8192xf32, #tpu.memory_space<vmem>>) attributes {dimension_semantics = [#tpu.dimension_semantics<parallel>], iteration_bounds = array<i64: 27>, scalar_prefetch = 0 : i64, scratch_operands = 0 : i64, tpu.core_type = #tpu.core_type<tc>, window_params = [{pipeline_mode = #tpu.pipeline_mode<synchronous>, transform_indices = @transform_0, window_bounds = array<i64: 2, 250>}, {transform_indices = @transform_1, window_bounds = array<i64: 250, 8192>}, {transform_indices = @transform_2, window_bounds = array<i64: 1, 8192>}, {transform_indices = @transform_3, window_bounds = array<i64: 2, 8192>}]} {
    %c0 = arith.constant 0 : index
    %c0_0 = arith.constant 0 : index
    %0 = vector.load %arg1[%c0, %c0_0] : memref<2x250xf32, #tpu.memory_space<vmem>>, vector<2x250xf32>
    %c0_1 = arith.constant 0 : index
    %c0_2 = arith.constant 0 : index
    %1 = vector.load %arg2[%c0_1, %c0_2] : memref<250x8192xf32, #tpu.memory_space<vmem>>, vector<250x8192xf32>
    %cst = arith.constant dense<0.000000e+00> : vector<2x8192xf32>
    %2 = tpu.matmul %0, %1, %cst {dimension_numbers = #tpu.dot_dimension_numbers<[1], [0], [0], [1], [0, 0, 1, 1], [], []>} : vector<2x250xf32>, vector<250x8192xf32>, vector<2x8192xf32> -> vector<2x8192xf32>
    %c0_3 = arith.constant 0 : index
    %c0_4 = arith.constant 0 : index
    %3 = vector.load %arg3[%c0_3, %c0_4] : memref<1x8192xf32, #tpu.memory_space<vmem>>, vector<1x8192xf32>
    %4 = vector.broadcast %3 : vector<1x8192xf32> to vector<2x8192xf32>
    %5 = arith.addf %2, %4 : vector<2x8192xf32>
    %c0_5 = arith.constant 0 : index
    %c0_6 = arith.constant 0 : index
    %6 = vector.load %arg4[%c0_5, %c0_6] : memref<2x8192xf32, #tpu.memory_space<vmem>>, vector<2x8192xf32>
    tpu.vector_store %arg4[%c0_5, %c0_6], %5 {strides = array<i32>} : memref<2x8192xf32, #tpu.memory_space<vmem>>, vector<2x8192xf32>,
    return
  }
  func.func @transform_0(%arg0: i32) -> (i32, i32) {
    %c0_i32 = arith.constant 0 : i32
    %c0_i32_0 = arith.constant 0 : i32
    %c0_i32_1 = arith.constant 0 : i32
    return %c0_i32, %c0_i32_0 : i32, i32
  }
  func.func @transform_1(%arg0: i32) -> (i32, i32) {
    %c0_i32 = arith.constant 0 : i32
    %c0_i32_0 = arith.constant 0 : i32
    return %c0_i32, %arg0 : i32, i32
  }
  func.func @transform_2(%arg0: i32) -> (i32, i32) {
    %c0_i32 = arith.constant 0 : i32
    %c0_i32_0 = arith.constant 0 : i32
    return %c0_i32, %arg0 : i32, i32
  }
  func.func @transform_3(%arg0: i32) -> (i32, i32) {
    %c0_i32 = arith.constant 0 : i32
    %c0_i32_0 = arith.constant 0 : i32
    return %c0_i32, %arg0 : i32, i32
  }
}

module attributes {stable_mosaic.version = 11 : i64} {
  func.func @_head_kernel(%arg0: memref<2x50xf32, #tpu.memory_space<vmem>>, %arg1: memref<50x100xf32, #tpu.memory_space<vmem>>, %arg2: memref<1x100xf32, #tpu.memory_space<vmem>>, %arg3: memref<100x250xf32, #tpu.memory_space<vmem>>, %arg4: memref<1x250xf32, #tpu.memory_space<vmem>>, %arg5: memref<2x250xf32, #tpu.memory_space<vmem>>) attributes {dimension_semantics = [], scalar_prefetch = 0 : i64, scratch_operands = 0 : i64, tpu.core_type = #tpu.core_type<tc>} {
    %c0 = arith.constant 0 : index
    %c0_0 = arith.constant 0 : index
    %0 = vector.load %arg0[%c0, %c0_0] : memref<2x50xf32, #tpu.memory_space<vmem>>, vector<2x50xf32>
    %c0_1 = arith.constant 0 : index
    %c0_2 = arith.constant 0 : index
    %1 = vector.load %arg1[%c0_1, %c0_2] : memref<50x100xf32, #tpu.memory_space<vmem>>, vector<50x100xf32>
    %cst = arith.constant dense<0.000000e+00> : vector<2x100xf32>
    %2 = tpu.matmul %0, %1, %cst {dimension_numbers = #tpu.dot_dimension_numbers<[1], [0], [0], [1], [0, 0, 1, 1], [], []>} : vector<2x50xf32>, vector<50x100xf32>, vector<2x100xf32> -> vector<2x100xf32>
    %c0_3 = arith.constant 0 : index
    %c0_4 = arith.constant 0 : index
    %3 = vector.load %arg2[%c0_3, %c0_4] : memref<1x100xf32, #tpu.memory_space<vmem>>, vector<1x100xf32>
    %4 = vector.broadcast %3 : vector<1x100xf32> to vector<2x100xf32>
    %5 = arith.addf %2, %4 : vector<2x100xf32>
    %cst_5 = arith.constant 0.000000e+00 : f32
    %6 = vector.broadcast %cst_5 : f32 to vector<2x100xf32>
    %7 = arith.maximumf %5, %6 : vector<2x100xf32>
    %c0_6 = arith.constant 0 : index
    %c0_7 = arith.constant 0 : index
    %8 = vector.load %arg3[%c0_6, %c0_7] : memref<100x250xf32, #tpu.memory_space<vmem>>, vector<100x250xf32>
    %cst_8 = arith.constant dense<0.000000e+00> : vector<2x250xf32>
    %9 = tpu.matmul %7, %8, %cst_8 {dimension_numbers = #tpu.dot_dimension_numbers<[1], [0], [0], [1], [0, 0, 1, 1], [], []>} : vector<2x100xf32>, vector<100x250xf32>, vector<2x250xf32> -> vector<2x250xf32>
    %c0_9 = arith.constant 0 : index
    %c0_10 = arith.constant 0 : index
    %10 = vector.load %arg4[%c0_9, %c0_10] : memref<1x250xf32, #tpu.memory_space<vmem>>, vector<1x250xf32>
    %11 = vector.broadcast %10 : vector<1x250xf32> to vector<2x250xf32>
    %12 = arith.addf %9, %11 : vector<2x250xf32>
    %cst_11 = arith.constant 0.000000e+00 : f32
    %13 = vector.broadcast %cst_11 : f32 to vector<2x250xf32>
    %14 = arith.maximumf %12, %13 : vector<2x250xf32>
    %c0_12 = arith.constant 0 : index
    %c0_13 = arith.constant 0 : index
    %15 = vector.load %arg5[%c0_12, %c0_13] : memref<2x250xf32, #tpu.memory_space<vmem>>, vector<2x250xf32>
    tpu.vector_store %arg5[%c0_12, %c0_13], %14 {strides = array<i32>} : memref<2x250xf32, #tpu.memory_space<vmem>>, vector<2x250xf32>,
    return
  }
}

</mosaic_0001>

<llo_original>
// kernel: complex_decoder.2
$region0: #{complex_decoder.2}
  #allocation0 [shape = 'u32[]', space=smem, size = 0x4, offset = 0x4, fixed_abs, tag = 'smem constant byte address 0x4 - core index']
  #allocation1 [shape = 'u32[72,128]{1,0:T(1,128)}', space=vmem, size = 0x9000, scoped, tag = 'internal scratch']
  %s0 = inlined_call_operand.hbm [shape: f32[2,50], index: 0, kind: input, shape index: {}]
  %s1 = inlined_call_operand.hbm [shape: f32[50,100], index: 1, kind: input, shape index: {}]
  %s2 = inlined_call_operand.hbm [shape: f32[1,100], index: 2, kind: input, shape index: {}]
  %s3 = inlined_call_operand.hbm [shape: f32[100,250], index: 3, kind: input, shape index: {}]
  %s4 = inlined_call_operand.hbm [shape: f32[1,250], index: 4, kind: input, shape index: {}]
  %s5 = inlined_call_operand.vmem [shape: f32[2,250], index: 5, kind: output, shape index: {}]
  %s6 = sld [smem:[#allocation0]]
  $region50: #{complex_decoder.2} parent=0
    _
  %s8 = ssub.s32 1, %s6
  %s9 = scalar_select 0, %s8, %s6
  $region1: #{complex_decoder.2} parent=0
    #allocation2 [shape = 'u8[1024]{0}', space=vmem, size = 0x400, scoped, tag = 'input window, operand 0, single buffered']
    #allocation3 [shape = 's32[1]{0}', space=sflag, size = 0x4, scoped, tag = 'scoped memory for complex_decoder.2']
    #allocation4 [shape = 'u8[28672]{0}', space=vmem, size = 0x7000, scoped, tag = 'input window, operand 1, single buffered']
    #allocation5 [shape = 's32[1]{0}', space=sflag, size = 0x4, scoped, tag = 'scoped memory for complex_decoder.2']
    #allocation6 [shape = 'u8[512]{0}', space=vmem, size = 0x400, scoped, tag = 'input window, operand 2, single buffered']
    #allocation7 [shape = 'u8[106496]{0}', space=vmem, size = 0x1a000, scoped, tag = 'input window, operand 3, single buffered']
    #allocation8 [shape = 's32[1]{0}', space=sflag, size = 0x4, scoped, tag = 'scoped memory for complex_decoder.2']
    #allocation9 [shape = 'u8[1024]{0}', space=vmem, size = 0x400, scoped, tag = 'input window, operand 4, single buffered']
    %10 = vsyncpa [#allocation3], 0
    %11 = vsyncpa [#allocation5], 0
    %12 = vsyncpa [#allocation8], 0
    // Predicated region
    $region2: #{complex_decoder.2} parent=1 // pred_check
      _
    $region3: #{complex_decoder.2} parent=1 // pred_check_branch
      %14 = sbr.rel (0) target = $region5
    $region4: #{complex_decoder.2} parent=1 // pred_region
      %16 = vsyncadd [#allocation3], 0
      %s18 = sshll.u32 %s0, 4
      %s19 = int_to_ptr.hbm [resolvable:$true] %s18
      %s20 = sshll.u32 [#allocation2], 4
      %s21 = int_to_ptr.vmem [resolvable:$true] %s20
      %23 = dma.hbm_to_vmem [thread:$0]  %s19, 32, %s21, [#allocation3]
    $region5: #{complex_decoder.2} parent=1 // pred_fallthru
      _
    // Predicated region
    $region6: #{complex_decoder.2} parent=1 // pred_check
      _
    $region7: #{complex_decoder.2} parent=1 // pred_check_branch
      %25 = sbr.rel (0) target = $region9
    $region8: #{complex_decoder.2} parent=1 // pred_region
      %27 = vsyncadd [#allocation5], 0
      %s28 = sshll.u32 %s1, 4
      %s29 = int_to_ptr.hbm [resolvable:$true] %s28
      %s30 = sshll.u32 [#allocation4], 4
      %s31 = int_to_ptr.vmem [resolvable:$true] %s30
      %36 = dma.hbm_to_vmem [thread:$0]  %s29, 896, %s31, [#allocation5], 128, 128, 8
    $region9: #{complex_decoder.2} parent=1 // pred_fallthru
      _
    // Predicated region
    $region10: #{complex_decoder.2} parent=1 // pred_check
      _
    $region11: #{complex_decoder.2} parent=1 // pred_check_branch
      %38 = sbr.rel (0) target = $region13
    $region12: #{complex_decoder.2} parent=1 // pred_region
      %40 = vsyncadd [#allocation5], 0
      %s42 = sshll.u32 %s2, 4
      %s43 = int_to_ptr.hbm [resolvable:$true] %s42
      %s44 = sshll.u32 [#allocation6], 4
      %s45 = int_to_ptr.vmem [resolvable:$true] %s44
      %47 = dma.hbm_to_vmem [thread:$0]  %s43, 16, %s45, [#allocation5]
    $region13: #{complex_decoder.2} parent=1 // pred_fallthru
      _
    // Predicated region
    $region14: #{complex_decoder.2} parent=1 // pred_check
      _
    $region15: #{complex_decoder.2} parent=1 // pred_check_branch
      %49 = sbr.rel (0) target = $region17
    $region16: #{complex_decoder.2} parent=1 // pred_region
      %51 = vsyncadd [#allocation8], 0
      %s52 = sshll.u32 %s3, 4
      %s53 = int_to_ptr.hbm [resolvable:$true] %s52
      %s54 = sshll.u32 [#allocation7], 4
      %s55 = int_to_ptr.vmem [resolvable:$true] %s54
      %60 = dma.hbm_to_vmem [thread:$0]  %s53, 3328, %s55, [#allocation8], 256, 256, 16
    $region17: #{complex_decoder.2} parent=1 // pred_fallthru
      _
    // Predicated region
    $region18: #{complex_decoder.2} parent=1 // pred_check
      _
    $region19: #{complex_decoder.2} parent=1 // pred_check_branch
      %62 = sbr.rel (0) target = $region21
    $region20: #{complex_decoder.2} parent=1 // pred_region
      %64 = vsyncadd [#allocation8], 0
      %s66 = sshll.u32 %s4, 4
      %s67 = int_to_ptr.hbm [resolvable:$true] %s66
      %s68 = sshll.u32 [#allocation9], 4
      %s69 = int_to_ptr.vmem [resolvable:$true] %s68
      %71 = dma.hbm_to_vmem [thread:$0]  %s67, 32, %s69, [#allocation8]
    $region21: #{complex_decoder.2} parent=1 // pred_fallthru
      _
    // Predicated region
    $region22: #{complex_decoder.2} parent=1 // pred_check
      _
    $region23: #{complex_decoder.2} parent=1 // pred_check_branch
      %73 = sbr.rel (0) target = $region25
    $region24: #{complex_decoder.2} parent=1 // pred_region
      %75 = dma.done [#allocation3], 32
    $region25: #{complex_decoder.2} parent=1 // pred_fallthru
      _
    // Predicated region
    $region26: #{complex_decoder.2} parent=1 // pred_check
      _
    $region27: #{complex_decoder.2} parent=1 // pred_check_branch
      %77 = sbr.rel (0) target = $region29
    $region28: #{complex_decoder.2} parent=1 // pred_region
      %79 = dma.done [#allocation5], 896
    $region29: #{complex_decoder.2} parent=1 // pred_fallthru
      _
    // Predicated region
    $region30: #{complex_decoder.2} parent=1 // pred_check
      _
    $region31: #{complex_decoder.2} parent=1 // pred_check_branch
      %81 = sbr.rel (0) target = $region33
    $region32: #{complex_decoder.2} parent=1 // pred_region
      %83 = dma.done [#allocation5], 16
    $region33: #{complex_decoder.2} parent=1 // pred_fallthru
      _
    // Predicated region
    $region34: #{complex_decoder.2} parent=1 // pred_check
      _
    $region35: #{complex_decoder.2} parent=1 // pred_check_branch
      %85 = sbr.rel (0) target = $region37
    $region36: #{complex_decoder.2} parent=1 // pred_region
      %87 = dma.done [#allocation8], 3328
    $region37: #{complex_decoder.2} parent=1 // pred_fallthru
      _
    // Predicated region
    $region38: #{complex_decoder.2} parent=1 // pred_check
      _
    $region39: #{complex_decoder.2} parent=1 // pred_check_branch
      %89 = sbr.rel (0) target = $region41
    $region40: #{complex_decoder.2} parent=1 // pred_region
      %91 = dma.done [#allocation8], 32
    $region41: #{complex_decoder.2} parent=1 // pred_fallthru
      _
    %v92 = vld [vmem:[#allocation2] sm:$0x3]
    %v93 = vld [vmem:[#allocation4] sm:$0xff]
    %v94 = vld [vmem:[#allocation4 + $0x8] sm:$0xff]
    %v95 = vld [vmem:[#allocation4 + $0x10] sm:$0xff]
    %v96 = vld [vmem:[#allocation4 + $0x18] sm:$0xff]
    %v97 = vld [vmem:[#allocation4 + $0x20] sm:$0xff]
    %v98 = vld [vmem:[#allocation4 + $0x28] sm:$0xff]
    %v99 = vld [vmem:[#allocation4 + $0x30] sm:$0x3]
    %v100 = vld [vmem:[#allocation6] sm:$0x1]
    %v102 = vperm.slane %v100, 0
    %vm104 = vcmask 408576
    %v106 = vsel %vm104, %v92, 0
    %vm108 = vcmask 1041408
    %v110 = vsel %vm108, %v99, 0
    %112 = vmatpush.msra.mxu0 0.0
    %113 = vmatpush.msra.mxu0 0.0
    %114 = vmatpush.msra.mxu0 0.0
    %115 = vmatpush.msra.mxu0 0.0
    %116 = vmatpush.msra.mxu0 0.0
    %117 = vmatpush.msra.mxu0 0.0
    %118 = vmatpush.msra.mxu0 0.0
    %119 = vmatpush.msra.mxu0 0.0
    %120 = vmatpush.msra.mxu0 0.0
    %121 = vmatpush.msra.mxu0 %v110
    %122 = vmatpush.msra.mxu0 %v98
    %123 = vmatpush.msra.mxu0 %v97
    %124 = vmatpush.msra.mxu0 %v96
    %125 = vmatpush.msra.mxu0 %v95
    %126 = vmatpush.msra.mxu0 %v94
    %127 = vmatpush.msra.mxu0 %v93
    %128 = vmatmul.f32.gmra.mxu0 %v106
    %v129 = vpop.f32.mrf.mxu0
    %v130 = vadd.f32 %v102, %v129
    %131 = vdwg.mxu0
    %v132 = vmax.f32 %v130, 0.0
    %v133 = vld [vmem:[#allocation7] sm:$0xff]
    %v134 = vld [vmem:[#allocation7 + $0x8] sm:$0xff]
    %v135 = vld [vmem:[#allocation7 + $0x10] sm:$0xff]
    %v136 = vld [vmem:[#allocation7 + $0x18] sm:$0xff]
    %v137 = vld [vmem:[#allocation7 + $0x20] sm:$0xff]
    %v138 = vld [vmem:[#allocation7 + $0x28] sm:$0xff]
    %v139 = vld [vmem:[#allocation7 + $0x30] sm:$0xff]
    %v140 = vld [vmem:[#allocation7 + $0x38] sm:$0xff]
    %v141 = vld [vmem:[#allocation7 + $0x40] sm:$0xff]
    %v142 = vld [vmem:[#allocation7 + $0x48] sm:$0xff]
    %v143 = vld [vmem:[#allocation7 + $0x50] sm:$0xff]
    %v144 = vld [vmem:[#allocation7 + $0x58] sm:$0xff]
    %v145 = vld [vmem:[#allocation7 + $0x60] sm:$0xff]
    %v146 = vld [vmem:[#allocation7 + $0x68] sm:$0xff]
    %v147 = vld [vmem:[#allocation7 + $0x70] sm:$0xff]
    %v148 = vld [vmem:[#allocation7 + $0x78] sm:$0xff]
    %v149 = vld [vmem:[#allocation7 + $0x80] sm:$0xff]
    %v150 = vld [vmem:[#allocation7 + $0x88] sm:$0xff]
    %v151 = vld [vmem:[#allocation7 + $0x90] sm:$0xff]
    %v152 = vld [vmem:[#allocation7 + $0x98] sm:$0xff]
    %v153 = vld [vmem:[#allocation7 + $0xa0] sm:$0xff]
    %v154 = vld [vmem:[#allocation7 + $0xa8] sm:$0xff]
    %v155 = vld [vmem:[#allocation7 + $0xb0] sm:$0xff]
    %v156 = vld [vmem:[#allocation7 + $0xb8] sm:$0xff]
    %v157 = vld [vmem:[#allocation7 + $0xc0] sm:$0xf]
    %v158 = vld [vmem:[#allocation7 + $0xc8] sm:$0xf]
    %v159 = vld [vmem:[#allocation9] sm:$0x3]
    %v161 = vperm.slane %v159, 0
    %v162 = vperm.slane %v159, 1
    %vm165 = vcmask 818176
    %v167 = vsel %vm165, %v132, 0
    %vm169 = vcmask 1043456
    %v171 = vsel %vm169, %v157, 0
    %v174 = vsel %vm169, %v158, 0
    %176 = vmatpush.msra.mxu0 0.0
    %177 = vmatpush.msra.mxu0 0.0
    %178 = vmatpush.msra.mxu0 0.0
    %179 = vmatpush.msra.mxu0 %v171
    %180 = vmatpush.msra.mxu0 %v155
    %181 = vmatpush.msra.mxu0 %v153
    %182 = vmatpush.msra.mxu0 %v151
    %183 = vmatpush.msra.mxu0 %v149
    %184 = vmatpush.msra.mxu0 %v147
    %185 = vmatpush.msra.mxu0 %v145
    %186 = vmatpush.msra.mxu0 %v143
    %187 = vmatpush.msra.mxu0 %v141
    %188 = vmatpush.msra.mxu0 %v139
    %189 = vmatpush.msra.mxu0 %v137
    %190 = vmatpush.msra.mxu0 %v135
    %191 = vmatpush.msra.mxu0 %v133
    %192 = vmatmul.f32.gmra.mxu0 %v167
    %v193 = vpop.f32.mrf.mxu0
    %v194 = vadd.f32 %v161, %v193
    %195 = vdwg.mxu0
    %196 = vmatpush.msra.mxu0 0.0
    %197 = vmatpush.msra.mxu0 0.0
    %198 = vmatpush.msra.mxu0 0.0
    %199 = vmatpush.msra.mxu0 %v174
    %200 = vmatpush.msra.mxu0 %v156
    %201 = vmatpush.msra.mxu0 %v154
    %202 = vmatpush.msra.mxu0 %v152
    %203 = vmatpush.msra.mxu0 %v150
    %204 = vmatpush.msra.mxu0 %v148
    %205 = vmatpush.msra.mxu0 %v146
    %206 = vmatpush.msra.mxu0 %v144
    %207 = vmatpush.msra.mxu0 %v142
    %208 = vmatpush.msra.mxu0 %v140
    %209 = vmatpush.msra.mxu0 %v138
    %210 = vmatpush.msra.mxu0 %v136
    %211 = vmatpush.msra.mxu0 %v134
    %212 = vmatmul.f32.gmra.mxu0 %v167
    %v213 = vpop.f32.mrf.mxu0
    %v214 = vadd.f32 %v162, %v213
    %215 = vdwg.mxu0
    %v216 = vmax.f32 %v194, 0.0
    %v217 = vmax.f32 %v214, 0.0
    %v220 = vrot.slane %v217, 6
    %v221 = vsel %vm108, %v216, %v220
    %vm223 = vcmask 994306
    %vm224 = vmor %vm223, %vm108
    %225 = vst.msk [vmem:[%s5] sm:$0xf] %vm224, %v221
    // Predicated region
    $region42: #{complex_decoder.2} parent=1 // pred_check
      _
    $region43: #{complex_decoder.2} parent=1 // pred_check_branch
      %227 = sbr.rel (0) target = $region45
    $region44: #{complex_decoder.2} parent=1 // pred_region
      _
    $region45: #{complex_decoder.2} parent=1 // pred_fallthru
      _
    // Predicated region
    $region46: #{complex_decoder.2} parent=1 // pred_check
      _
    $region47: #{complex_decoder.2} parent=1 // pred_check_branch
      %229 = sbr.rel (0) target = $region49
    $region48: #{complex_decoder.2} parent=1 // pred_region
      _
    $region49: #{complex_decoder.2} parent=1 // pred_fallthru
      _
    %230 = vsyncpa [#allocation3], 1
    %231 = vsyncpa [#allocation5], 1
    %232 = vsyncpa [#allocation8], 1

// kernel: complex_decoder.3
$region0: #{complex_decoder.3}
  #allocation0 [shape = 'u32[]', space=smem, size = 0x4, offset = 0x4, fixed_abs, tag = 'smem constant byte address 0x4 - core index']
  #allocation1 [shape = 'u32[72,128]{1,0:T(1,128)}', space=vmem, size = 0x9000, scoped, tag = 'internal scratch']
  %s0 = inlined_call_operand.vmem [shape: f32[2,250], index: 0, kind: input, shape index: {}]
  %s1 = inlined_call_operand.hbm [shape: f32[250,221184], index: 1, kind: input, shape index: {}]
  %s2 = inlined_call_operand.hbm [shape: f32[1,221184], index: 2, kind: input, shape index: {}]
  %s3 = inlined_call_operand.vmem [shape: f32[2,221184], index: 3, kind: output, shape index: {}]
  %s4 = sld [smem:[#allocation0]]
  $region53: #{complex_decoder.3} parent=0
    _
  %s6 = ssub.s32 1, %s4
  %s7 = scalar_select 0, %s6, %s4
  $region1: #{complex_decoder.3} parent=0
    #allocation2 [shape = 'u8[16777216]{0}', space=vmem, size = 0x1000000, scoped, tag = 'input window, operand 1']
    #allocation3 [shape = 's32[2]{0}', space=sflag, size = 0x8, scoped, tag = 'scoped memory for complex_decoder.3']
    #allocation4 [shape = 'u8[65536]{0}', space=vmem, size = 0x10000, scoped, tag = 'input window, operand 2']
    #allocation5 [shape = 's32[2]{0}', space=sflag, size = 0x8, scoped, tag = 'scoped memory for complex_decoder.3']
    %8 = vsyncpa [#allocation3], 0
    %s9 = scalar_lea.sflag [#allocation3], 1
    %10 = vsyncpa %s9, 0
    %11 = vsyncpa [#allocation5], 0
    %s12 = scalar_lea.sflag [#allocation5], 1
    %13 = vsyncpa %s12, 0
    loop: start=0, step=1, limit=29
    $region2: #{complex_decoder.3} parent=1 // loop_pre_header
      _
    $region3: #{complex_decoder.3} parent=1 // loop_header
      %s15 = sphi 0, %s19
      %p16 = scmp.ge.s32.totalorder %s15, 29
      %s23 = sphi 0, %s23
      %s25 = sphi 0, %s23
      %s26 = sphi 0, %s25
      %s40 = sphi 0, %s26
      %s46 = sphi 0, %s48
      %s49 = sphi 0, %s46
      %s50 = sphi 0, %s49
      %s66 = sphi 0, %s50
      %s72 = sphi 0, %s74
      %s75 = sphi 0, %s72
      %s76 = sphi 0, %s75
      %s92 = sphi 0, %s76
      %s98 = sphi 0, %s100
      %s101 = sphi 0, %s98
      %s102 = sphi 0, %s101
      %s118 = sphi 0, %s102
    $region4: #{complex_decoder.3} parent=1 // loop_header_branch
      %18 = sbr.rel (%p16) target = $region8
    $region5: #{complex_decoder.3} parent=1 // loop_body
      %s20 = ssub.s32 %s15, 1
      %s21 = ssub.s32 %s15, 2
      %s22 = sadd.s32 %s15, 1
      %s24 = sadd.s32 %s23, 1
      %p27 = scmp.eq.s32.totalorder %s15, 26
      %p28 = scmp.ne.s32.totalorder %s23, %s25
      %p29 = scmp.eq.s32.totalorder %s15, 0
      %p30 = por %p28, %p29
      %p31 = scmp.ne.s32.totalorder %s23, %s25
      %p32 = scmp.eq.s32.totalorder %s20, 26
      %p33 = por %p31, %p32
      %p34 = scmp.ne.s32.totalorder %s25, %s26
      %p35 = scmp.eq.s32.totalorder %s20, 0
      %p36 = por %p34, %p35
      %p37 = scmp.ne.s32.totalorder %s25, %s26
      %p38 = scmp.eq.s32.totalorder %s21, 26
      %p39 = por %p37, %p38
      %p41 = scmp.ne.s32.totalorder %s26, %s40
      %p42 = scmp.eq.s32.totalorder %s21, 0
      %p43 = por %p41, %p42
      %s44 = ssub.s32 %s15, %s22
      %p45 = scmp.eq.s32.totalorder %s44, 0
      %s47 = sadd.s32 %s46, 1
      %s48 = scalar_select %p45, %s46, %s47
      %p51 = pneg %p45
      %p52 = scmp.eq.s32.totalorder %s15, 26
      %p53 = por %p51, %p52
      %p54 = scmp.ne.s32.totalorder %s46, %s49
      %p55 = scmp.eq.s32.totalorder %s15, 0
      %p56 = por %p54, %p55
      %p57 = scmp.ne.s32.totalorder %s46, %s49
      %p58 = scmp.eq.s32.totalorder %s20, 26
      %p59 = por %p57, %p58
      %p60 = scmp.ne.s32.totalorder %s49, %s50
      %p61 = scmp.eq.s32.totalorder %s20, 0
      %p62 = por %p60, %p61
      %p63 = scmp.ne.s32.totalorder %s49, %s50
      %p64 = scmp.eq.s32.totalorder %s21, 26
      %p65 = por %p63, %p64
      %p67 = scmp.ne.s32.totalorder %s50, %s66
      %p68 = scmp.eq.s32.totalorder %s21, 0
      %p69 = por %p67, %p68
      %s70 = ssub.s32 %s15, %s22
      %p71 = scmp.eq.s32.totalorder %s70, 0
      %s73 = sadd.s32 %s72, 1
      %s74 = scalar_select %p71, %s72, %s73
      %p77 = pneg %p71
      %p78 = scmp.eq.s32.totalorder %s15, 26
      %p79 = por %p77, %p78
      %p80 = scmp.ne.s32.totalorder %s72, %s75
      %p81 = scmp.eq.s32.totalorder %s15, 0
      %p82 = por %p80, %p81
      %p83 = scmp.ne.s32.totalorder %s72, %s75
      %p84 = scmp.eq.s32.totalorder %s20, 26
      %p85 = por %p83, %p84
      %p86 = scmp.ne.s32.totalorder %s75, %s76
      %p87 = scmp.eq.s32.totalorder %s20, 0
      %p88 = por %p86, %p87
      %p89 = scmp.ne.s32.totalorder %s75, %s76
      %p90 = scmp.eq.s32.totalorder %s21, 26
      %p91 = por %p89, %p90
      %p93 = scmp.ne.s32.totalorder %s76, %s92
      %p94 = scmp.eq.s32.totalorder %s21, 0
      %p95 = por %p93, %p94
      %s96 = ssub.s32 %s15, %s22
      %p97 = scmp.eq.s32.totalorder %s96, 0
      %s99 = sadd.s32 %s98, 1
      %s100 = scalar_select %p97, %s98, %s99
      %p103 = pneg %p97
      %p104 = scmp.eq.s32.totalorder %s15, 26
      %p105 = por %p103, %p104
      %p106 = scmp.ne.s32.totalorder %s98, %s101
      %p107 = scmp.eq.s32.totalorder %s15, 0
      %p108 = por %p106, %p107
      %p109 = scmp.ne.s32.totalorder %s98, %s101
      %p110 = scmp.eq.s32.totalorder %s20, 26
      %p111 = por %p109, %p110
      %p112 = scmp.ne.s32.totalorder %s101, %s102
      %p113 = scmp.eq.s32.totalorder %s20, 0
      %p114 = por %p112, %p113
      %p115 = scmp.ne.s32.totalorder %s101, %s102
      %p116 = scmp.eq.s32.totalorder %s21, 26
      %p117 = por %p115, %p116
      %p119 = scmp.ne.s32.totalorder %s102, %s118
      %p120 = scmp.eq.s32.totalorder %s21, 0
      %p121 = por %p119, %p120
      %p122 = scmp.le.s32.totalorder 1, %s15
      %p123 = scmp.lt.s32.totalorder %s15, 28
      %p124 = pnand %p122, %p123
      %p125 = pneg %p124
      // Predicated region
      $region9: #{complex_decoder.3} parent=5 // pred_check
        _
      $region10: #{complex_decoder.3} parent=5 // pred_check_branch
        %127 = sbr.rel (%p124) target = $region12
      $region11: #{complex_decoder.3} parent=5 // pred_region
        %s128 = ssub.s32 %s15, 1
        // Predicated region
        $region13: #{complex_decoder.3} parent=11 // pred_check
          %p129 = pneg %p36
        $region14: #{complex_decoder.3} parent=11 // pred_check_branch
          %131 = sbr.rel (%p129) target = $region16
        $region15: #{complex_decoder.3} parent=11 // pred_region
          _
        $region16: #{complex_decoder.3} parent=11 // pred_fallthru
          _
      $region12: #{complex_decoder.3} parent=5 // pred_fallthru
        _
      %p132 = scmp.lt.s32.totalorder %s15, 27
      // Predicated region
      $region17: #{complex_decoder.3} parent=5 // pred_check
        %p133 = pneg %p132
      $region18: #{complex_decoder.3} parent=5 // pred_check_branch
        %135 = sbr.rel (%p133) target = $region20
      $region19: #{complex_decoder.3} parent=5 // pred_region
        // Predicated region
        $region21: #{complex_decoder.3} parent=19 // pred_check
          %p136 = pneg %p56
        $region22: #{complex_decoder.3} parent=19 // pred_check_branch
          %138 = sbr.rel (%p136) target = $region24
        $region23: #{complex_decoder.3} parent=19 // pred_region
          %s139 = sand.u32 %s46, 1
          %s140 = scalar_lea.sflag [#allocation3], %s139
          %s141 = sand.u32 %s46, 1
          %s142 = smul.addr %s141, 16384
          %s143 = scalar_lea.vmem [#allocation2], %s142
          %s144 = smul.u32 64, %s15
          %146 = vsyncadd %s140, 0
          %s147 = smul.addr %s144, 8
          %s148 = scalar_lea.hbm %s1, %s147
          %s149 = sshll.u32 %s148, 4
          %s150 = int_to_ptr.hbm [resolvable:$true] %s149
          %s151 = sshll.u32 %s143, 4
          %s152 = int_to_ptr.vmem [resolvable:$true] %s151
          %157 = dma.hbm_to_vmem [thread:$0]  %s150, 262144, %s152, %s140, 221184, 8192, 512
        $region24: #{complex_decoder.3} parent=19 // pred_fallthru
          _
        // Predicated region
        $region25: #{complex_decoder.3} parent=19 // pred_check
          %p158 = pneg %p82
        $region26: #{complex_decoder.3} parent=19 // pred_check_branch
          %160 = sbr.rel (%p158) target = $region28
        $region27: #{complex_decoder.3} parent=19 // pred_region
          %s161 = sand.u32 %s72, 1
          %s162 = scalar_lea.sflag [#allocation5], %s161
          %s163 = sand.u32 %s72, 1
          %s164 = smul.addr %s163, 64
          %s165 = scalar_lea.vmem [#allocation4], %s164
          %s166 = smul.u32 64, %s15
          %168 = vsyncadd %s162, 0
          %s169 = scalar_lea.hbm %s2, %s166
          %s171 = sshll.u32 %s169, 4
          %s172 = int_to_ptr.hbm [resolvable:$true] %s171
          %s173 = sshll.u32 %s165, 4
          %s174 = int_to_ptr.vmem [resolvable:$true] %s173
          %176 = dma.hbm_to_vmem [thread:$0]  %s172, 1024, %s174, %s162
        $region28: #{complex_decoder.3} parent=19 // pred_fallthru
          _
      $region20: #{complex_decoder.3} parent=5 // pred_fallthru
        _
      %p177 = scmp.le.s32.totalorder 1, %s15
      %p178 = scmp.lt.s32.totalorder %s15, 28
      %p179 = pnand %p177, %p178
      %p180 = pneg %p179
      // Predicated region
      $region29: #{complex_decoder.3} parent=5 // pred_check
        _
      $region30: #{complex_decoder.3} parent=5 // pred_check_branch
        %182 = sbr.rel (%p179) target = $region32
      $region31: #{complex_decoder.3} parent=5 // pred_region
        %s183 = ssub.s32 %s15, 1
        %s184 = sand.u32 %s49, 1
        %s185 = scalar_lea.sflag [#allocation3], %s184
        %s186 = sand.u32 %s49, 1
        %s187 = smul.addr %s186, 16384
        %s188 = scalar_lea.vmem [#allocation2], %s187
        // Predicated region
        $region33: #{complex_decoder.3} parent=31 // pred_check
          %p189 = pneg %p62
        $region34: #{complex_decoder.3} parent=31 // pred_check_branch
          %191 = sbr.rel (%p189) target = $region36
        $region35: #{complex_decoder.3} parent=31 // pred_region
          %193 = dma.done %s185, 262144
        $region36: #{complex_decoder.3} parent=31 // pred_fallthru
          _
        %s194 = sand.u32 %s75, 1
        %s195 = scalar_lea.sflag [#allocation5], %s194
        %s196 = sand.u32 %s75, 1
        %s197 = smul.addr %s196, 64
        %s198 = scalar_lea.vmem [#allocation4], %s197
        // Predicated region
        $region37: #{complex_decoder.3} parent=31 // pred_check
          %p199 = pneg %p88
        $region38: #{complex_decoder.3} parent=31 // pred_check_branch
          %201 = sbr.rel (%p199) target = $region40
        $region39: #{complex_decoder.3} parent=31 // pred_region
          %203 = dma.done %s195, 1024
        $region40: #{complex_decoder.3} parent=31 // pred_fallthru
          _
        %p204 = pneg %p36
        %p205 = pneg %p33
        %s206 = sand.u32 %s49, 1
        %s207 = scalar_lea.sflag [#allocation3], %s206
        %s208 = sand.u32 %s49, 1
        %s209 = smul.addr %s208, 16384
        %s210 = scalar_lea.vmem [#allocation2], %s209
        %p211 = pneg %p62
        %p212 = pneg %p59
        %s213 = sand.u32 %s75, 1
        %s214 = scalar_lea.sflag [#allocation5], %s213
        %s215 = sand.u32 %s75, 1
        %s216 = smul.addr %s215, 64
        %s217 = scalar_lea.vmem [#allocation4], %s216
        %p218 = pneg %p88
        %p219 = pneg %p85
        %p220 = pneg %p114
        %p221 = pneg %p111
        %s222 = smul.u32 64, %s20
        %p223 = scmp.lt.s32.totalorder %s222, 1727
        %s224 = scalar_select %p223, %s222, 1727
        %s225 = smul.addr %s224, 2
        %s226 = scalar_lea.vmem %s3, %s225
        %s227 = smul.u32 64, %s20
        %s228 = smul.u32 64, %s20
        %s229 = smul.u32 64, %s20
        %p230 = scmp.lt.s32.totalorder %s229, 1727
        %s231 = scalar_select %p230, %s229, 1727
        %s232 = smul.addr %s231, 2
        %s233 = scalar_lea.vmem %s3, %s232
        %s234 = smul.u32 64, %s20
        %v235 = vld [vmem:[%s0] sm:$0xf]
        %v236 = vld [vmem:[%s188] sm:$0xff]
        %v237 = vld [vmem:[%s188 + $0x8] sm:$0xff]
        %v238 = vld [vmem:[%s188 + $0x10] sm:$0xff]
        %v239 = vld [vmem:[%s188 + $0x18] sm:$0xff]
        %v240 = vld [vmem:[%s188 + $0x20] sm:$0xff]
        %v241 = vld [vmem:[%s188 + $0x28] sm:$0xff]
        %v242 = vld [vmem:[%s188 + $0x30] sm:$0xff]
        %v243 = vld [vmem:[%s188 + $0x38] sm:$0xff]
        %v244 = vld [vmem:[%s188 + $0x40] sm:$0xff]
        %v245 = vld [vmem:[%s188 + $0x48] sm:$0xff]
        %v246 = vld [vmem:[%s188 + $0x50] sm:$0xff]
        %v247 = vld [vmem:[%s188 + $0x58] sm:$0xff]
        %v248 = vld [vmem:[%s188 + $0x60] sm:$0xff]
        %v249 = vld [vmem:[%s188 + $0x68] sm:$0xff]
        %v250 = vld [vmem:[%s188 + $0x70] sm:$0xff]
        %v251 = vld [vmem:[%s188 + $0x78] sm:$0xff]
        %v252 = vld [vmem:[%s188 + $0x80] sm:$0xff]
        %v253 = vld [vmem:[%s188 + $0x88] sm:$0xff]
        %v254 = vld [vmem:[%s188 + $0x90] sm:$0xff]
        %v255 = vld [vmem:[%s188 + $0x98] sm:$0xff]
        %v256 = vld [vmem:[%s188 + $0xa0] sm:$0xff]
        %v257 = vld [vmem:[%s188 + $0xa8] sm:$0xff]
        %v258 = vld [vmem:[%s188 + $0xb0] sm:$0xff]
        %v259 = vld [vmem:[%s188 + $0xb8] sm:$0xff]
        %v260 = vld [vmem:[%s188 + $0xc0] sm:$0xff]
        %v261 = vld [vmem:[%s188 + $0xc8] sm:$0xff]
        %v262 = vld [vmem:[%s188 + $0xd0] sm:$0xff]
        %v263 = vld [vmem:[%s188 + $0xd8] sm:$0xff]
        %v264 = vld [vmem:[%s188 + $0xe0] sm:$0xff]
        %v265 = vld [vmem:[%s188 + $0xe8] sm:$0xff]
        %v266 = vld [vmem:[%s188 + $0xf0] sm:$0xff]
        %v267 = vld [vmem:[%s188 + $0xf8] sm:$0xff]
        %v268 = vld [vmem:[%s188 + $0x100] sm:$0xff]
        %v269 = vld [vmem:[%s188 + $0x108] sm:$0xff]
        %v270 = vld [vmem:[%s188 + $0x110] sm:$0xff]
        %v271 = vld [vmem:[%s188 + $0x118] sm:$0xff]
        %v272 = vld [vmem:[%s188 + $0x120] sm:$0xff]
        %v273 = vld [vmem:[%s188 + $0x128] sm:$0xff]
        %v274 = vld [vmem:[%s188 + $0x130] sm:$0xff]
        %v275 = vld [vmem:[%s188 + $0x138] sm:$0xff]
        %v276 = vld [vmem:[%s188 + $0x140] sm:$0xff]
        %v277 = vld [vmem:[%s188 + $0x148] sm:$0xff]
        %v278 = vld [vmem:[%s188 + $0x150] sm:$0xff]
        %v279 = vld [vmem:[%s188 + $0x158] sm:$0xff]
        %v280 = vld [vmem:[%s188 + $0x160] sm:$0xff]
        %v281 = vld [vmem:[%s188 + $0x168] sm:$0xff]
        %v282 = vld [vmem:[%s188 + $0x170] sm:$0xff]
        %v283 = vld [vmem:[%s188 + $0x178] sm:$0xff]
        %v284 = vld [vmem:[%s188 + $0x180] sm:$0xff]
        %v285 = vld [vmem:[%s188 + $0x188] sm:$0xff]
        %v286 = vld [vmem:[%s188 + $0x190] sm:$0xff]
        %v287 = vld [vmem:[%s188 + $0x198] sm:$0xff]
        %v288 = vld [vmem:[%s188 + $0x1a0] sm:$0xff]
        %v289 = vld [vmem:[%s188 + $0x1a8] sm:$0xff]
        %v290 = vld [vmem:[%s188 + $0x1b0] sm:$0xff]
        %v291 = vld [vmem:[%s188 + $0x1b8] sm:$0xff]
        %v292 = vld [vmem:[%s188 + $0x1c0] sm:$0xff]
        %v293 = vld [vmem:[%s188 + $0x1c8] sm:$0xff]
        %v294 = vld [vmem:[%s188 + $0x1d0] sm:$0xff]
        %v295 = vld [vmem:[%s188 + $0x1d8] sm:$0xff]
        %v296 = vld [vmem:[%s188 + $0x1e0] sm:$0xff]
        %v297 = vld [vmem:[%s188 + $0x1e8] sm:$0xff]
        %v298 = vld [vmem:[%s188 + $0x1f0] sm:$0xff]
        %v299 = vld [vmem:[%s188 + $0x1f8] sm:$0xff]
        %v300 = vld [vmem:[%s188 + $0x200] sm:$0xff]
        %v301 = vld [vmem:[%s188 + $0x208] sm:$0xff]
        %v302 = vld [vmem:[%s188 + $0x210] sm:$0xff]
        %v303 = vld [vmem:[%s188 + $0x218] sm:$0xff]
        %v304 = vld [vmem:[%s188 + $0x220] sm:$0xff]
        %v305 = vld [vmem:[%s188 + $0x228] sm:$0xff]
        %v306 = vld [vmem:[%s188 + $0x230] sm:$0xff]
        %v307 = vld [vmem:[%s188 + $0x238] sm:$0xff]
        %v308 = vld [vmem:[%s188 + $0x240] sm:$0xff]
        %v309 = vld [vmem:[%s188 + $0x248] sm:$0xff]
        %v310 = vld [vmem:[%s188 + $0x250] sm:$0xff]
        %v311 = vld [vmem:[%s188 + $0x258] sm:$0xff]
        %v312 = vld [vmem:[%s188 + $0x260] sm:$0xff]
        %v313 = vld [vmem:[%s188 + $0x268] sm:$0xff]
        %v314 = vld [vmem:[%s188 + $0x270] sm:$0xff]
        %v315 = vld [vmem:[%s188 + $0x278] sm:$0xff]
        %v316 = vld [vmem:[%s188 + $0x280] sm:$0xff]
        %v317 = vld [vmem:[%s188 + $0x288] sm:$0xff]
        %v318 = vld [vmem:[%s188 + $0x290] sm:$0xff]
        %v319 = vld [vmem:[%s188 + $0x298] sm:$0xff]
        %v320 = vld [vmem:[%s188 + $0x2a0] sm:$0xff]
        %v321 = vld [vmem:[%s188 + $0x2a8] sm:$0xff]
        %v322 = vld [vmem:[%s188 + $0x2b0] sm:$0xff]
        %v323 = vld [vmem:[%s188 + $0x2b8] sm:$0xff]
        %v324 = vld [vmem:[%s188 + $0x2c0] sm:$0xff]
        %v325 = vld [vmem:[%s188 + $0x2c8] sm:$0xff]
        %v326 = vld [vmem:[%s188 + $0x2d0] sm:$0xff]
        %v327 = vld [vmem:[%s188 + $0x2d8] sm:$0xff]
        %v328 = vld [vmem:[%s188 + $0x2e0] sm:$0xff]
        %v329 = vld [vmem:[%s188 + $0x2e8] sm:$0xff]
        %v330 = vld [vmem:[%s188 + $0x2f0] sm:$0xff]
        %v331 = vld [vmem:[%s188 + $0x2f8] sm:$0xff]
        %v332 = vld [vmem:[%s188 + $0x300] sm:$0xff]
        %v333 = vld [vmem:[%s188 + $0x308] sm:$0xff]
        %v334 = vld [vmem:[%s188 + $0x310] sm:$0xff]
        %v335 = vld [vmem:[%s188 + $0x318] sm:$0xff]
        %v336 = vld [vmem:[%s188 + $0x320] sm:$0xff]
        %v337 = vld [vmem:[%s188 + $0x328] sm:$0xff]
        %v338 = vld [vmem:[%s188 + $0x330] sm:$0xff]
        %v339 = vld [vmem:[%s188 + $0x338] sm:$0xff]
        %v340 = vld [vmem:[%s188 + $0x340] sm:$0xff]
        %v341 = vld [vmem:[%s188 + $0x348] sm:$0xff]
        %v342 = vld [vmem:[%s188 + $0x350] sm:$0xff]
        %v343 = vld [vmem:[%s188 + $0x358] sm:$0xff]
        %v344 = vld [vmem:[%s188 + $0x360] sm:$0xff]
        %v345 = vld [vmem:[%s188 + $0x368] sm:$0xff]
        %v346 = vld [vmem:[%s188 + $0x370] sm:$0xff]
        %v347 = vld [vmem:[%s188 + $0x378] sm:$0xff]
        %v348 = vld [vmem:[%s188 + $0x380] sm:$0xff]
        %v349 = vld [vmem:[%s188 + $0x388] sm:$0xff]
        %v350 = vld [vmem:[%s188 + $0x390] sm:$0xff]
        %v351 = vld [vmem:[%s188 + $0x398] sm:$0xff]
        %v352 = vld [vmem:[%s188 + $0x3a0] sm:$0xff]
        %v353 = vld [vmem:[%s188 + $0x3a8] sm:$0xff]
        %v354 = vld [vmem:[%s188 + $0x3b0] sm:$0xff]
        %v355 = vld [vmem:[%s188 + $0x3b8] sm:$0xff]
        %v356 = vld [vmem:[%s188 + $0x3c0] sm:$0xff]
        %v357 = vld [vmem:[%s188 + $0x3c8] sm:$0xff]
        %v358 = vld [vmem:[%s188 + $0x3d0] sm:$0xff]
        %v359 = vld [vmem:[%s188 + $0x3d8] sm:$0xff]
        %v360 = vld [vmem:[%s188 + $0x3e0] sm:$0xff]
        %v361 = vld [vmem:[%s188 + $0x3e8] sm:$0xff]
        %v362 = vld [vmem:[%s188 + $0x3f0] sm:$0xff]
        %v363 = vld [vmem:[%s188 + $0x3f8] sm:$0xff]
        %v364 = vld [vmem:[%s188 + $0x400] sm:$0xff]
        %v365 = vld [vmem:[%s188 + $0x408] sm:$0xff]
        %v366 = vld [vmem:[%s188 + $0x410] sm:$0xff]
        %v367 = vld [vmem:[%s188 + $0x418] sm:$0xff]
        %v368 = vld [vmem:[%s188 + $0x420] sm:$0xff]
        %v369 = vld [vmem:[%s188 + $0x428] sm:$0xff]
        %v370 = vld [vmem:[%s188 + $0x430] sm:$0xff]
        %v371 = vld [vmem:[%s188 + $0x438] sm:$0xff]
        %v372 = vld [vmem:[%s188 + $0x440] sm:$0xff]
        %v373 = vld [vmem:[%s188 + $0x448] sm:$0xff]
        %v374 = vld [vmem:[%s188 + $0x450] sm:$0xff]
        %v375 = vld [vmem:[%s188 + $0x458] sm:$0xff]
        %v376 = vld [vmem:[%s188 + $0x460] sm:$0xff]
        %v377 = vld [vmem:[%s188 + $0x468] sm:$0xff]
        %v378 = vld [vmem:[%s188 + $0x470] sm:$0xff]
        %v379 = vld [vmem:[%s188 + $0x478] sm:$0xff]
        %v380 = vld [vmem:[%s188 + $0x480] sm:$0xff]
        %v381 = vld [vmem:[%s188 + $0x488] sm:$0xff]
        %v382 = vld [vmem:[%s188 + $0x490] sm:$0xff]
        %v383 = vld [vmem:[%s188 + $0x498] sm:$0xff]
        %v384 = vld [vmem:[%s188 + $0x4a0] sm:$0xff]
        %v385 = vld [vmem:[%s188 + $0x4a8] sm:$0xff]
        %v386 = vld [vmem:[%s188 + $0x4b0] sm:$0xff]
        %v387 = vld [vmem:[%s188 + $0x4b8] sm:$0xff]
        %v388 = vld [vmem:[%s188 + $0x4c0] sm:$0xff]
        %v389 = vld [vmem:[%s188 + $0x4c8] sm:$0xff]
        %v390 = vld [vmem:[%s188 + $0x4d0] sm:$0xff]
        %v391 = vld [vmem:[%s188 + $0x4d8] sm:$0xff]
        %v392 = vld [vmem:[%s188 + $0x4e0] sm:$0xff]
        %v393 = vld [vmem:[%s188 + $0x4e8] sm:$0xff]
        %v394 = vld [vmem:[%s188 + $0x4f0] sm:$0xff]
        %v395 = vld [vmem:[%s188 + $0x4f8] sm:$0xff]
        %v396 = vld [vmem:[%s188 + $0x500] sm:$0xff]
        %v397 = vld [vmem:[%s188 + $0x508] sm:$0xff]
        %v398 = vld [vmem:[%s188 + $0x510] sm:$0xff]
        %v399 = vld [vmem:[%s188 + $0x518] sm:$0xff]
        %v400 = vld [vmem:[%s188 + $0x520] sm:$0xff]
        %v401 = vld [vmem:[%s188 + $0x528] sm:$0xff]
        %v402 = vld [vmem:[%s188 + $0x530] sm:$0xff]
        %v403 = vld [vmem:[%s188 + $0x538] sm:$0xff]
        %v404 = vld [vmem:[%s188 + $0x540] sm:$0xff]
        %v405 = vld [vmem:[%s188 + $0x548] sm:$0xff]
        %v406 = vld [vmem:[%s188 + $0x550] sm:$0xff]
        %v407 = vld [vmem:[%s188 + $0x558] sm:$0xff]
        %v408 = vld [vmem:[%s188 + $0x560] sm:$0xff]
        %v409 = vld [vmem:[%s188 + $0x568] sm:$0xff]
        %v410 = vld [vmem:[%s188 + $0x570] sm:$0xff]
        %v411 = vld [vmem:[%s188 + $0x578] sm:$0xff]
        %v412 = vld [vmem:[%s188 + $0x580] sm:$0xff]
        %v413 = vld [vmem:[%s188 + $0x588] sm:$0xff]
        %v414 = vld [vmem:[%s188 + $0x590] sm:$0xff]
        %v415 = vld [vmem:[%s188 + $0x598] sm:$0xff]
        %v416 = vld [vmem:[%s188 + $0x5a0] sm:$0xff]
        %v417 = vld [vmem:[%s188 + $0x5a8] sm:$0xff]
        %v418 = vld [vmem:[%s188 + $0x5b0] sm:$0xff]
        %v419 = vld [vmem:[%s188 + $0x5b8] sm:$0xff]
        %v420 = vld [vmem:[%s188 + $0x5c0] sm:$0xff]
        %v421 = vld [vmem:[%s188 + $0x5c8] sm:$0xff]
        %v422 = vld [vmem:[%s188 + $0x5d0] sm:$0xff]
        %v423 = vld [vmem:[%s188 + $0x5d8] sm:$0xff]
        %v424 = vld [vmem:[%s188 + $0x5e0] sm:$0xff]
        %v425 = vld [vmem:[%s188 + $0x5e8] sm:$0xff]
        %v426 = vld [vmem:[%s188 + $0x5f0] sm:$0xff]
        %v427 = vld [vmem:[%s188 + $0x5f8] sm:$0xff]
        %v428 = vld [vmem:[%s188 + $0x600] sm:$0xff]
        %v429 = vld [vmem:[%s188 + $0x608] sm:$0xff]
        %v430 = vld [vmem:[%s188 + $0x610] sm:$0xff]
        %v431 = vld [vmem:[%s188 + $0x618] sm:$0xff]
        %v432 = vld [vmem:[%s188 + $0x620] sm:$0xff]
        %v433 = vld [vmem:[%s188 + $0x628] sm:$0xff]
        %v434 = vld [vmem:[%s188 + $0x630] sm:$0xff]
        %v435 = vld [vmem:[%s188 + $0x638] sm:$0xff]
        %v436 = vld [vmem:[%s188 + $0x640] sm:$0xff]
        %v437 = vld [vmem:[%s188 + $0x648] sm:$0xff]
        %v438 = vld [vmem:[%s188 + $0x650] sm:$0xff]
        %v439 = vld [vmem:[%s188 + $0x658] sm:$0xff]
        %v440 = vld [vmem:[%s188 + $0x660] sm:$0xff]
        %v441 = vld [vmem:[%s188 + $0x668] sm:$0xff]
        %v442 = vld [vmem:[%s188 + $0x670] sm:$0xff]
        %v443 = vld [vmem:[%s188 + $0x678] sm:$0xff]
        %v444 = vld [vmem:[%s188 + $0x680] sm:$0xff]
        %v445 = vld [vmem:[%s188 + $0x688] sm:$0xff]
        %v446 = vld [vmem:[%s188 + $0x690] sm:$0xff]
        %v447 = vld [vmem:[%s188 + $0x698] sm:$0xff]
        %v448 = vld [vmem:[%s188 + $0x6a0] sm:$0xff]
        %v449 = vld [vmem:[%s188 + $0x6a8] sm:$0xff]
        %v450 = vld [vmem:[%s188 + $0x6b0] sm:$0xff]
        %v451 = vld [vmem:[%s188 + $0x6b8] sm:$0xff]
        %v452 = vld [vmem:[%s188 + $0x6c0] sm:$0xff]
        %v453 = vld [vmem:[%s188 + $0x6c8] sm:$0xff]
        %v454 = vld [vmem:[%s188 + $0x6d0] sm:$0xff]
        %v455 = vld [vmem:[%s188 + $0x6d8] sm:$0xff]
        %v456 = vld [vmem:[%s188 + $0x6e0] sm:$0xff]
        %v457 = vld [vmem:[%s188 + $0x6e8] sm:$0xff]
        %v458 = vld [vmem:[%s188 + $0x6f0] sm:$0xff]
        %v459 = vld [vmem:[%s188 + $0x6f8] sm:$0xff]
        %v460 = vld [vmem:[%s188 + $0x700] sm:$0xff]
        %v461 = vld [vmem:[%s188 + $0x708] sm:$0xff]
        %v462 = vld [vmem:[%s188 + $0x710] sm:$0xff]
        %v463 = vld [vmem:[%s188 + $0x718] sm:$0xff]
        %v464 = vld [vmem:[%s188 + $0x720] sm:$0xff]
        %v465 = vld [vmem:[%s188 + $0x728] sm:$0xff]
        %v466 = vld [vmem:[%s188 + $0x730] sm:$0xff]
        %v467 = vld [vmem:[%s188 + $0x738] sm:$0xff]
        %v468 = vld [vmem:[%s188 + $0x740] sm:$0xff]
        %v469 = vld [vmem:[%s188 + $0x748] sm:$0xff]
        %v470 = vld [vmem:[%s188 + $0x750] sm:$0xff]
        %v471 = vld [vmem:[%s188 + $0x758] sm:$0xff]
        %v472 = vld [vmem:[%s188 + $0x760] sm:$0xff]
        %v473 = vld [vmem:[%s188 + $0x768] sm:$0xff]
        %v474 = vld [vmem:[%s188 + $0x770] sm:$0xff]
        %v475 = vld [vmem:[%s188 + $0x778] sm:$0xff]
        %v476 = vld [vmem:[%s188 + $0x780] sm:$0xff]
        %v477 = vld [vmem:[%s188 + $0x788] sm:$0xff]
        %v478 = vld [vmem:[%s188 + $0x790] sm:$0xff]
        %v479 = vld [vmem:[%s188 + $0x798] sm:$0xff]
        %v480 = vld [vmem:[%s188 + $0x7a0] sm:$0xff]
        %v481 = vld [vmem:[%s188 + $0x7a8] sm:$0xff]
        %v482 = vld [vmem:[%s188 + $0x7b0] sm:$0xff]
        %v483 = vld [vmem:[%s188 + $0x7b8] sm:$0xff]
        %v484 = vld [vmem:[%s188 + $0x7c0] sm:$0xff]
        %v485 = vld [vmem:[%s188 + $0x7c8] sm:$0xff]
        %v486 = vld [vmem:[%s188 + $0x7d0] sm:$0xff]
        %v487 = vld [vmem:[%s188 + $0x7d8] sm:$0xff]
        %v488 = vld [vmem:[%s188 + $0x7e0] sm:$0xff]
        %v489 = vld [vmem:[%s188 + $0x7e8] sm:$0xff]
        %v490 = vld [vmem:[%s188 + $0x7f0] sm:$0xff]
        %v491 = vld [vmem:[%s188 + $0x7f8] sm:$0xff]
        %v492 = vld [vmem:[%s188 + $0x800] sm:$0xff]
        %v493 = vld [vmem:[%s188 + $0x808] sm:$0xff]
        %v494 = vld [vmem:[%s188 + $0x810] sm:$0xff]
        %v495 = vld [vmem:[%s188 + $0x818] sm:$0xff]
        %v496 = vld [vmem:[%s188 + $0x820] sm:$0xff]
        %v497 = vld [vmem:[%s188 + $0x828] sm:$0xff]
        %v498 = vld [vmem:[%s188 + $0x830] sm:$0xff]
        %v499 = vld [vmem:[%s188 + $0x838] sm:$0xff]
        %v500 = vld [vmem:[%s188 + $0x840] sm:$0xff]
        %v501 = vld [vmem:[%s188 + $0x848] sm:$0xff]
        %v502 = vld [vmem:[%s188 + $0x850] sm:$0xff]
        %v503 = vld [vmem:[%s188 + $0x858] sm:$0xff]
        %v504 = vld [vmem:[%s188 + $0x860] sm:$0xff]
        %v505 = vld [vmem:[%s188 + $0x868] sm:$0xff]
        %v506 = vld [vmem:[%s188 + $0x870] sm:$0xff]
        %v507 = vld [vmem:[%s188 + $0x878] sm:$0xff]
        %v508 = vld [vmem:[%s188 + $0x880] sm:$0xff]
        %v509 = vld [vmem:[%s188 + $0x888] sm:$0xff]
        %v510 = vld [vmem:[%s188 + $0x890] sm:$0xff]
        %v511 = vld [vmem:[%s188 + $0x898] sm:$0xff]
        %v512 = vld [vmem:[%s188 + $0x8a0] sm:$0xff]
        %v513 = vld [vmem:[%s188 + $0x8a8] sm:$0xff]
        %v514 = vld [vmem:[%s188 + $0x8b0] sm:$0xff]
        %v515 = vld [vmem:[%s188 + $0x8b8] sm:$0xff]
        %v516 = vld [vmem:[%s188 + $0x8c0] sm:$0xff]
        %v517 = vld [vmem:[%s188 + $0x8c8] sm:$0xff]
        %v518 = vld [vmem:[%s188 + $0x8d0] sm:$0xff]
        %v519 = vld [vmem:[%s188 + $0x8d8] sm:$0xff]
        %v520 = vld [vmem:[%s188 + $0x8e0] sm:$0xff]
        %v521 = vld [vmem:[%s188 + $0x8e8] sm:$0xff]
        %v522 = vld [vmem:[%s188 + $0x8f0] sm:$0xff]
        %v523 = vld [vmem:[%s188 + $0x8f8] sm:$0xff]
        %v524 = vld [vmem:[%s188 + $0x900] sm:$0xff]
        %v525 = vld [vmem:[%s188 + $0x908] sm:$0xff]
        %v526 = vld [vmem:[%s188 + $0x910] sm:$0xff]
        %v527 = vld [vmem:[%s188 + $0x918] sm:$0xff]
        %v528 = vld [vmem:[%s188 + $0x920] sm:$0xff]
        %v529 = vld [vmem:[%s188 + $0x928] sm:$0xff]
        %v530 = vld [vmem:[%s188 + $0x930] sm:$0xff]
        %v531 = vld [vmem:[%s188 + $0x938] sm:$0xff]
        %v532 = vld [vmem:[%s188 + $0x940] sm:$0xff]
        %v533 = vld [vmem:[%s188 + $0x948] sm:$0xff]
        %v534 = vld [vmem:[%s188 + $0x950] sm:$0xff]
        %v535 = vld [vmem:[%s188 + $0x958] sm:$0xff]
        %v536 = vld [vmem:[%s188 + $0x960] sm:$0xff]
        %v537 = vld [vmem:[%s188 + $0x968] sm:$0xff]
        %v538 = vld [vmem:[%s188 + $0x970] sm:$0xff]
        %v539 = vld [vmem:[%s188 + $0x978] sm:$0xff]
        %v540 = vld [vmem:[%s188 + $0x980] sm:$0xff]
        %v541 = vld [vmem:[%s188 + $0x988] sm:$0xff]
        %v542 = vld [vmem:[%s188 + $0x990] sm:$0xff]
        %v543 = vld [vmem:[%s188 + $0x998] sm:$0xff]
        %v544 = vld [vmem:[%s188 + $0x9a0] sm:$0xff]
        %v545 = vld [vmem:[%s188 + $0x9a8] sm:$0xff]
        %v546 = vld [vmem:[%s188 + $0x9b0] sm:$0xff]
        %v547 = vld [vmem:[%s188 + $0x9b8] sm:$0xff]
        %v548 = vld [vmem:[%s188 + $0x9c0] sm:$0xff]
        %v549 = vld [vmem:[%s188 + $0x9c8] sm:$0xff]
        %v550 = vld [vmem:[%s188 + $0x9d0] sm:$0xff]
        %v551 = vld [vmem:[%s188 + $0x9d8] sm:$0xff]
        %v552 = vld [vmem:[%s188 + $0x9e0] sm:$0xff]
        %v553 = vld [vmem:[%s188 + $0x9e8] sm:$0xff]
        %v554 = vld [vmem:[%s188 + $0x9f0] sm:$0xff]
        %v555 = vld [vmem:[%s188 + $0x9f8] sm:$0xff]
        %v556 = vld [vmem:[%s188 + $0xa00] sm:$0xff]
        %v557 = vld [vmem:[%s188 + $0xa08] sm:$0xff]
        %v558 = vld [vmem:[%s188 + $0xa10] sm:$0xff]
        %v559 = vld [vmem:[%s188 + $0xa18] sm:$0xff]
        %v560 = vld [vmem:[%s188 + $0xa20] sm:$0xff]
        %v561 = vld [vmem:[%s188 + $0xa28] sm:$0xff]
        %v562 = vld [vmem:[%s188 + $0xa30] sm:$0xff]
        %v563 = vld [vmem:[%s188 + $0xa38] sm:$0xff]
        %v564 = vld [vmem:[%s188 + $0xa40] sm:$0xff]
        %v565 = vld [vmem:[%s188 + $0xa48] sm:$0xff]
        %v566 = vld [vmem:[%s188 + $0xa50] sm:$0xff]
        %v567 = vld [vmem:[%s188 + $0xa58] sm:$0xff]
        %v568 = vld [vmem:[%s188 + $0xa60] sm:$0xff]
        %v569 = vld [vmem:[%s188 + $0xa68] sm:$0xff]
        %v570 = vld [vmem:[%s188 + $0xa70] sm:$0xff]
        %v571 = vld [vmem:[%s188 + $0xa78] sm:$0xff]
        %v572 = vld [vmem:[%s188 + $0xa80] sm:$0xff]
        %v573 = vld [vmem:[%s188 + $0xa88] sm:$0xff]
        %v574 = vld [vmem:[%s188 + $0xa90] sm:$0xff]
        %v575 = vld [vmem:[%s188 + $0xa98] sm:$0xff]
        %v576 = vld [vmem:[%s188 + $0xaa0] sm:$0xff]
        %v577 = vld [vmem:[%s188 + $0xaa8] sm:$0xff]
        %v578 = vld [vmem:[%s188 + $0xab0] sm:$0xff]
        %v579 = vld [vmem:[%s188 + $0xab8] sm:$0xff]
        %v580 = vld [vmem:[%s188 + $0xac0] sm:$0xff]
        %v581 = vld [vmem:[%s188 + $0xac8] sm:$0xff]
        %v582 = vld [vmem:[%s188 + $0xad0] sm:$0xff]
        %v583 = vld [vmem:[%s188 + $0xad8] sm:$0xff]
        %v584 = vld [vmem:[%s188 + $0xae0] sm:$0xff]
        %v585 = vld [vmem:[%s188 + $0xae8] sm:$0xff]
        %v586 = vld [vmem:[%s188 + $0xaf0] sm:$0xff]
        %v587 = vld [vmem:[%s188 + $0xaf8] sm:$0xff]
        %v588 = vld [vmem:[%s188 + $0xb00] sm:$0xff]
        %v589 = vld [vmem:[%s188 + $0xb08] sm:$0xff]
        %v590 = vld [vmem:[%s188 + $0xb10] sm:$0xff]
        %v591 = vld [vmem:[%s188 + $0xb18] sm:$0xff]
        %v592 = vld [vmem:[%s188 + $0xb20] sm:$0xff]
        %v593 = vld [vmem:[%s188 + $0xb28] sm:$0xff]
        %v594 = vld [vmem:[%s188 + $0xb30] sm:$0xff]
        %v595 = vld [vmem:[%s188 + $0xb38] sm:$0xff]
        %v596 = vld [vmem:[%s188 + $0xb40] sm:$0xff]
        %v597 = vld [vmem:[%s188 + $0xb48] sm:$0xff]
        %v598 = vld [vmem:[%s188 + $0xb50] sm:$0xff]
        %v599 = vld [vmem:[%s188 + $0xb58] sm:$0xff]
        %v600 = vld [vmem:[%s188 + $0xb60] sm:$0xff]
        %v601 = vld [vmem:[%s188 + $0xb68] sm:$0xff]
        %v602 = vld [vmem:[%s188 + $0xb70] sm:$0xff]
        %v603 = vld [vmem:[%s188 + $0xb78] sm:$0xff]
        %v604 = vld [vmem:[%s188 + $0xb80] sm:$0xff]
        %v605 = vld [vmem:[%s188 + $0xb88] sm:$0xff]
        %v606 = vld [vmem:[%s188 + $0xb90] sm:$0xff]
        %v607 = vld [vmem:[%s188 + $0xb98] sm:$0xff]
        %v608 = vld [vmem:[%s188 + $0xba0] sm:$0xff]
        %v609 = vld [vmem:[%s188 + $0xba8] sm:$0xff]
        %v610 = vld [vmem:[%s188 + $0xbb0] sm:$0xff]
        %v611 = vld [vmem:[%s188 + $0xbb8] sm:$0xff]
        %v612 = vld [vmem:[%s188 + $0xbc0] sm:$0xff]
        %v613 = vld [vmem:[%s188 + $0xbc8] sm:$0xff]
        %v614 = vld [vmem:[%s188 + $0xbd0] sm:$0xff]
        %v615 = vld [vmem:[%s188 + $0xbd8] sm:$0xff]
        %v616 = vld [vmem:[%s188 + $0xbe0] sm:$0xff]
        %v617 = vld [vmem:[%s188 + $0xbe8] sm:$0xff]
        %v618 = vld [vmem:[%s188 + $0xbf0] sm:$0xff]
        %v619 = vld [vmem:[%s188 + $0xbf8] sm:$0xff]
        %v620 = vld [vmem:[%s188 + $0xc00] sm:$0xff]
        %v621 = vld [vmem:[%s188 + $0xc08] sm:$0xff]
        %v622 = vld [vmem:[%s188 + $0xc10] sm:$0xff]
        %v623 = vld [vmem:[%s188 + $0xc18] sm:$0xff]
        %v624 = vld [vmem:[%s188 + $0xc20] sm:$0xff]
        %v625 = vld [vmem:[%s188 + $0xc28] sm:$0xff]
        %v626 = vld [vmem:[%s188 + $0xc30] sm:$0xff]
        %v627 = vld [vmem:[%s188 + $0xc38] sm:$0xff]
        %v628 = vld [vmem:[%s188 + $0xc40] sm:$0xff]
        %v629 = vld [vmem:[%s188 + $0xc48] sm:$0xff]
        %v630 = vld [vmem:[%s188 + $0xc50] sm:$0xff]
        %v631 = vld [vmem:[%s188 + $0xc58] sm:$0xff]
        %v632 = vld [vmem:[%s188 + $0xc60] sm:$0xff]
        %v633 = vld [vmem:[%s188 + $0xc68] sm:$0xff]
        %v634 = vld [vmem:[%s188 + $0xc70] sm:$0xff]
        %v635 = vld [vmem:[%s188 + $0xc78] sm:$0xff]
        %v636 = vld [vmem:[%s188 + $0xc80] sm:$0xff]
        %v637 = vld [vmem:[%s188 + $0xc88] sm:$0xff]
        %v638 = vld [vmem:[%s188 + $0xc90] sm:$0xff]
        %v639 = vld [vmem:[%s188 + $0xc98] sm:$0xff]
        %v640 = vld [vmem:[%s188 + $0xca0] sm:$0xff]
        %v641 = vld [vmem:[%s188 + $0xca8] sm:$0xff]
        %v642 = vld [vmem:[%s188 + $0xcb0] sm:$0xff]
        %v643 = vld [vmem:[%s188 + $0xcb8] sm:$0xff]
        %v644 = vld [vmem:[%s188 + $0xcc0] sm:$0xff]
        %v645 = vld [vmem:[%s188 + $0xcc8] sm:$0xff]
        %v646 = vld [vmem:[%s188 + $0xcd0] sm:$0xff]
        %v647 = vld [vmem:[%s188 + $0xcd8] sm:$0xff]
        %v648 = vld [vmem:[%s188 + $0xce0] sm:$0xff]
        %v649 = vld [vmem:[%s188 + $0xce8] sm:$0xff]
        %v650 = vld [vmem:[%s188 + $0xcf0] sm:$0xff]
        %v651 = vld [vmem:[%s188 + $0xcf8] sm:$0xff]
        %v652 = vld [vmem:[%s188 + $0xd00] sm:$0xff]
        %v653 = vld [vmem:[%s188 + $0xd08] sm:$0xff]
        %v654 = vld [vmem:[%s188 + $0xd10] sm:$0xff]
        %v655 = vld [vmem:[%s188 + $0xd18] sm:$0xff]
        %v656 = vld [vmem:[%s188 + $0xd20] sm:$0xff]
        %v657 = vld [vmem:[%s188 + $0xd28] sm:$0xff]
        %v658 = vld [vmem:[%s188 + $0xd30] sm:$0xff]
        %v659 = vld [vmem:[%s188 + $0xd38] sm:$0xff]
        %v660 = vld [vmem:[%s188 + $0xd40] sm:$0xff]
        %v661 = vld [vmem:[%s188 + $0xd48] sm:$0xff]
        %v662 = vld [vmem:[%s188 + $0xd50] sm:$0xff]
        %v663 = vld [vmem:[%s188 + $0xd58] sm:$0xff]
        %v664 = vld [vmem:[%s188 + $0xd60] sm:$0xff]
        %v665 = vld [vmem:[%s188 + $0xd68] sm:$0xff]
        %v666 = vld [vmem:[%s188 + $0xd70] sm:$0xff]
        %v667 = vld [vmem:[%s188 + $0xd78] sm:$0xff]
        %v668 = vld [vmem:[%s188 + $0xd80] sm:$0xff]
        %v669 = vld [vmem:[%s188 + $0xd88] sm:$0xff]
        %v670 = vld [vmem:[%s188 + $0xd90] sm:$0xff]
        %v671 = vld [vmem:[%s188 + $0xd98] sm:$0xff]
        %v672 = vld [vmem:[%s188 + $0xda0] sm:$0xff]
        %v673 = vld [vmem:[%s188 + $0xda8] sm:$0xff]
        %v674 = vld [vmem:[%s188 + $0xdb0] sm:$0xff]
        %v675 = vld [vmem:[%s188 + $0xdb8] sm:$0xff]
        %v676 = vld [vmem:[%s188 + $0xdc0] sm:$0xff]
        %v677 = vld [vmem:[%s188 + $0xdc8] sm:$0xff]
        %v678 = vld [vmem:[%s188 + $0xdd0] sm:$0xff]
        %v679 = vld [vmem:[%s188 + $0xdd8] sm:$0xff]
        %v680 = vld [vmem:[%s188 + $0xde0] sm:$0xff]
        %v681 = vld [vmem:[%s188 + $0xde8] sm:$0xff]
        %v682 = vld [vmem:[%s188 + $0xdf0] sm:$0xff]
        %v683 = vld [vmem:[%s188 + $0xdf8] sm:$0xff]
        %v684 = vld [vmem:[%s188 + $0xe00] sm:$0xff]
        %v685 = vld [vmem:[%s188 + $0xe08] sm:$0xff]
        %v686 = vld [vmem:[%s188 + $0xe10] sm:$0xff]
        %v687 = vld [vmem:[%s188 + $0xe18] sm:$0xff]
        %v688 = vld [vmem:[%s188 + $0xe20] sm:$0xff]
        %v689 = vld [vmem:[%s188 + $0xe28] sm:$0xff]
        %v690 = vld [vmem:[%s188 + $0xe30] sm:$0xff]
        %v691 = vld [vmem:[%s188 + $0xe38] sm:$0xff]
        %v692 = vld [vmem:[%s188 + $0xe40] sm:$0xff]
        %v693 = vld [vmem:[%s188 + $0xe48] sm:$0xff]
        %v694 = vld [vmem:[%s188 + $0xe50] sm:$0xff]
        %v695 = vld [vmem:[%s188 + $0xe58] sm:$0xff]
        %v696 = vld [vmem:[%s188 + $0xe60] sm:$0xff]
        %v697 = vld [vmem:[%s188 + $0xe68] sm:$0xff]
        %v698 = vld [vmem:[%s188 + $0xe70] sm:$0xff]
        %v699 = vld [vmem:[%s188 + $0xe78] sm:$0xff]
        %v700 = vld [vmem:[%s188 + $0xe80] sm:$0xff]
        %v701 = vld [vmem:[%s188 + $0xe88] sm:$0xff]
        %v702 = vld [vmem:[%s188 + $0xe90] sm:$0xff]
        %v703 = vld [vmem:[%s188 + $0xe98] sm:$0xff]
        %v704 = vld [vmem:[%s188 + $0xea0] sm:$0xff]
        %v705 = vld [vmem:[%s188 + $0xea8] sm:$0xff]
        %v706 = vld [vmem:[%s188 + $0xeb0] sm:$0xff]
        %v707 = vld [vmem:[%s188 + $0xeb8] sm:$0xff]
        %v708 = vld [vmem:[%s188 + $0xec0] sm:$0xff]
        %v709 = vld [vmem:[%s188 + $0xec8] sm:$0xff]
        %v710 = vld [vmem:[%s188 + $0xed0] sm:$0xff]
        %v711 = vld [vmem:[%s188 + $0xed8] sm:$0xff]
        %v712 = vld [vmem:[%s188 + $0xee0] sm:$0xff]
        %v713 = vld [vmem:[%s188 + $0xee8] sm:$0xff]
        %v714 = vld [vmem:[%s188 + $0xef0] sm:$0xff]
        %v715 = vld [vmem:[%s188 + $0xef8] sm:$0xff]
        %v716 = vld [vmem:[%s188 + $0xf00] sm:$0xff]
        %v717 = vld [vmem:[%s188 + $0xf08] sm:$0xff]
        %v718 = vld [vmem:[%s188 + $0xf10] sm:$0xff]
        %v719 = vld [vmem:[%s188 + $0xf18] sm:$0xff]
        %v720 = vld [vmem:[%s188 + $0xf20] sm:$0xff]
        %v721 = vld [vmem:[%s188 + $0xf28] sm:$0xff]
        %v722 = vld [vmem:[%s188 + $0xf30] sm:$0xff]
        %v723 = vld [vmem:[%s188 + $0xf38] sm:$0xff]
        %v724 = vld [vmem:[%s188 + $0xf40] sm:$0xff]
        %v725 = vld [vmem:[%s188 + $0xf48] sm:$0xff]
        %v726 = vld [vmem:[%s188 + $0xf50] sm:$0xff]
        %v727 = vld [vmem:[%s188 + $0xf58] sm:$0xff]
        %v728 = vld [vmem:[%s188 + $0xf60] sm:$0xff]
        %v729 = vld [vmem:[%s188 + $0xf68] sm:$0xff]
        %v730 = vld [vmem:[%s188 + $0xf70] sm:$0xff]
        %v731 = vld [vmem:[%s188 + $0xf78] sm:$0xff]
        %v732 = vld [vmem:[%s188 + $0xf80] sm:$0xff]
        %v733 = vld [vmem:[%s188 + $0xf88] sm:$0xff]
        %v734 = vld [vmem:[%s188 + $0xf90] sm:$0xff]
        %v735 = vld [vmem:[%s188 + $0xf98] sm:$0xff]
        %v736 = vld [vmem:[%s188 + $0xfa0] sm:$0xff]
        %v737 = vld [vmem:[%s188 + $0xfa8] sm:$0xff]
        %v738 = vld [vmem:[%s188 + $0xfb0] sm:$0xff]
        %v739 = vld [vmem:[%s188 + $0xfb8] sm:$0xff]
        %v740 = vld [vmem:[%s188 + $0xfc0] sm:$0xff]
        %v741 = vld [vmem:[%s188 + $0xfc8] sm:$0xff]
        %v742 = vld [vmem:[%s188 + $0xfd0] sm:$0xff]
        %v743 = vld [vmem:[%s188 + $0xfd8] sm:$0xff]
        %v744 = vld [vmem:[%s188 + $0xfe0] sm:$0xff]
        %v745 = vld [vmem:[%s188 + $0xfe8] sm:$0xff]
        %v746 = vld [vmem:[%s188 + $0xff0] sm:$0xff]
        %v747 = vld [vmem:[%s188 + $0xff8] sm:$0xff]
        %v748 = vld [vmem:[%s188 + $0x1000] sm:$0xff]
        %v749 = vld [vmem:[%s188 + $0x1008] sm:$0xff]
        %v750 = vld [vmem:[%s188 + $0x1010] sm:$0xff]
        %v751 = vld [vmem:[%s188 + $0x1018] sm:$0xff]
        %v752 = vld [vmem:[%s188 + $0x1020] sm:$0xff]
        %v753 = vld [vmem:[%s188 + $0x1028] sm:$0xff]
        %v754 = vld [vmem:[%s188 + $0x1030] sm:$0xff]
        %v755 = vld [vmem:[%s188 + $0x1038] sm:$0xff]
        %v756 = vld [vmem:[%s188 + $0x1040] sm:$0xff]
        %v757 = vld [vmem:[%s188 + $0x1048] sm:$0xff]
        %v758 = vld [vmem:[%s188 + $0x1050] sm:$0xff]
        %v759 = vld [vmem:[%s188 + $0x1058] sm:$0xff]
        %v760 = vld [vmem:[%s188 + $0x1060] sm:$0xff]
        %v761 = vld [vmem:[%s188 + $0x1068] sm:$0xff]
        %v762 = vld [vmem:[%s188 + $0x1070] sm:$0xff]
        %v763 = vld [vmem:[%s188 + $0x1078] sm:$0xff]
        %v764 = vld [vmem:[%s188 + $0x1080] sm:$0xff]
        %v765 = vld [vmem:[%s188 + $0x1088] sm:$0xff]
        %v766 = vld [vmem:[%s188 + $0x1090] sm:$0xff]
        %v767 = vld [vmem:[%s188 + $0x1098] sm:$0xff]
        %v768 = vld [vmem:[%s188 + $0x10a0] sm:$0xff]
        %v769 = vld [vmem:[%s188 + $0x10a8] sm:$0xff]
        %v770 = vld [vmem:[%s188 + $0x10b0] sm:$0xff]
        %v771 = vld [vmem:[%s188 + $0x10b8] sm:$0xff]
        %v772 = vld [vmem:[%s188 + $0x10c0] sm:$0xff]
        %v773 = vld [vmem:[%s188 + $0x10c8] sm:$0xff]
        %v774 = vld [vmem:[%s188 + $0x10d0] sm:$0xff]
        %v775 = vld [vmem:[%s188 + $0x10d8] sm:$0xff]
        %v776 = vld [vmem:[%s188 + $0x10e0] sm:$0xff]
        %v777 = vld [vmem:[%s188 + $0x10e8] sm:$0xff]
        %v778 = vld [vmem:[%s188 + $0x10f0] sm:$0xff]
        %v779 = vld [vmem:[%s188 + $0x10f8] sm:$0xff]
        %v780 = vld [vmem:[%s188 + $0x1100] sm:$0xff]
        %v781 = vld [vmem:[%s188 + $0x1108] sm:$0xff]
        %v782 = vld [vmem:[%s188 + $0x1110] sm:$0xff]
        %v783 = vld [vmem:[%s188 + $0x1118] sm:$0xff]
        %v784 = vld [vmem:[%s188 + $0x1120] sm:$0xff]
        %v785 = vld [vmem:[%s188 + $0x1128] sm:$0xff]
        %v786 = vld [vmem:[%s188 + $0x1130] sm:$0xff]
        %v787 = vld [vmem:[%s188 + $0x1138] sm:$0xff]
        %v788 = vld [vmem:[%s188 + $0x1140] sm:$0xff]
        %v789 = vld [vmem:[%s188 + $0x1148] sm:$0xff]
        %v790 = vld [vmem:[%s188 + $0x1150] sm:$0xff]
        %v791 = vld [vmem:[%s188 + $0x1158] sm:$0xff]
        %v792 = vld [vmem:[%s188 + $0x1160] sm:$0xff]
        %v793 = vld [vmem:[%s188 + $0x1168] sm:$0xff]
        %v794 = vld [vmem:[%s188 + $0x1170] sm:$0xff]
        %v795 = vld [vmem:[%s188 + $0x1178] sm:$0xff]
        %v796 = vld [vmem:[%s188 + $0x1180] sm:$0xff]
        %v797 = vld [vmem:[%s188 + $0x1188] sm:$0xff]
        %v798 = vld [vmem:[%s188 + $0x1190] sm:$0xff]
        %v799 = vld [vmem:[%s188 + $0x1198] sm:$0xff]
        %v800 = vld [vmem:[%s188 + $0x11a0] sm:$0xff]
        %v801 = vld [vmem:[%s188 + $0x11a8] sm:$0xff]
        %v802 = vld [vmem:[%s188 + $0x11b0] sm:$0xff]
        %v803 = vld [vmem:[%s188 + $0x11b8] sm:$0xff]
        %v804 = vld [vmem:[%s188 + $0x11c0] sm:$0xff]
        %v805 = vld [vmem:[%s188 + $0x11c8] sm:$0xff]
        %v806 = vld [vmem:[%s188 + $0x11d0] sm:$0xff]
        %v807 = vld [vmem:[%s188 + $0x11d8] sm:$0xff]
        %v808 = vld [vmem:[%s188 + $0x11e0] sm:$0xff]
        %v809 = vld [vmem:[%s188 + $0x11e8] sm:$0xff]
        %v810 = vld [vmem:[%s188 + $0x11f0] sm:$0xff]
        %v811 = vld [vmem:[%s188 + $0x11f8] sm:$0xff]
        %v812 = vld [vmem:[%s188 + $0x1200] sm:$0xff]
        %v813 = vld [vmem:[%s188 + $0x1208] sm:$0xff]
        %v814 = vld [vmem:[%s188 + $0x1210] sm:$0xff]
        %v815 = vld [vmem:[%s188 + $0x1218] sm:$0xff]
        %v816 = vld [vmem:[%s188 + $0x1220] sm:$0xff]
        %v817 = vld [vmem:[%s188 + $0x1228] sm:$0xff]
        %v818 = vld [vmem:[%s188 + $0x1230] sm:$0xff]
        %v819 = vld [vmem:[%s188 + $0x1238] sm:$0xff]
        %v820 = vld [vmem:[%s188 + $0x1240] sm:$0xff]
        %v821 = vld [vmem:[%s188 + $0x1248] sm:$0xff]
        %v822 = vld [vmem:[%s188 + $0x1250] sm:$0xff]
        %v823 = vld [vmem:[%s188 + $0x1258] sm:$0xff]
        %v824 = vld [vmem:[%s188 + $0x1260] sm:$0xff]
        %v825 = vld [vmem:[%s188 + $0x1268] sm:$0xff]
        %v826 = vld [vmem:[%s188 + $0x1270] sm:$0xff]
        %v827 = vld [vmem:[%s188 + $0x1278] sm:$0xff]
        %v828 = vld [vmem:[%s188 + $0x1280] sm:$0xff]
        %v829 = vld [vmem:[%s188 + $0x1288] sm:$0xff]
        %v830 = vld [vmem:[%s188 + $0x1290] sm:$0xff]
        %v831 = vld [vmem:[%s188 + $0x1298] sm:$0xff]
        %v832 = vld [vmem:[%s188 + $0x12a0] sm:$0xff]
        %v833 = vld [vmem:[%s188 + $0x12a8] sm:$0xff]
        %v834 = vld [vmem:[%s188 + $0x12b0] sm:$0xff]
        %v835 = vld [vmem:[%s188 + $0x12b8] sm:$0xff]
        %v836 = vld [vmem:[%s188 + $0x12c0] sm:$0xff]
        %v837 = vld [vmem:[%s188 + $0x12c8] sm:$0xff]
        %v838 = vld [vmem:[%s188 + $0x12d0] sm:$0xff]
        %v839 = vld [vmem:[%s188 + $0x12d8] sm:$0xff]
        %v840 = vld [vmem:[%s188 + $0x12e0] sm:$0xff]
        %v841 = vld [vmem:[%s188 + $0x12e8] sm:$0xff]
        %v842 = vld [vmem:[%s188 + $0x12f0] sm:$0xff]
        %v843 = vld [vmem:[%s188 + $0x12f8] sm:$0xff]
        %v844 = vld [vmem:[%s188 + $0x1300] sm:$0xff]
        %v845 = vld [vmem:[%s188 + $0x1308] sm:$0xff]
        %v846 = vld [vmem:[%s188 + $0x1310] sm:$0xff]
        %v847 = vld [vmem:[%s188 + $0x1318] sm:$0xff]
        %v848 = vld [vmem:[%s188 + $0x1320] sm:$0xff]
        %v849 = vld [vmem:[%s188 + $0x1328] sm:$0xff]
        %v850 = vld [vmem:[%s188 + $0x1330] sm:$0xff]
        %v851 = vld [vmem:[%s188 + $0x1338] sm:$0xff]
        %v852 = vld [vmem:[%s188 + $0x1340] sm:$0xff]
        %v853 = vld [vmem:[%s188 + $0x1348] sm:$0xff]
        %v854 = vld [vmem:[%s188 + $0x1350] sm:$0xff]
        %v855 = vld [vmem:[%s188 + $0x1358] sm:$0xff]
        %v856 = vld [vmem:[%s188 + $0x1360] sm:$0xff]
        %v857 = vld [vmem:[%s188 + $0x1368] sm:$0xff]
        %v858 = vld [vmem:[%s188 + $0x1370] sm:$0xff]
        %v859 = vld [vmem:[%s188 + $0x1378] sm:$0xff]
        %v860 = vld [vmem:[%s188 + $0x1380] sm:$0xff]
        %v861 = vld [vmem:[%s188 + $0x1388] sm:$0xff]
        %v862 = vld [vmem:[%s188 + $0x1390] sm:$0xff]
        %v863 = vld [vmem:[%s188 + $0x1398] sm:$0xff]
        %v864 = vld [vmem:[%s188 + $0x13a0] sm:$0xff]
        %v865 = vld [vmem:[%s188 + $0x13a8] sm:$0xff]
        %v866 = vld [vmem:[%s188 + $0x13b0] sm:$0xff]
        %v867 = vld [vmem:[%s188 + $0x13b8] sm:$0xff]
        %v868 = vld [vmem:[%s188 + $0x13c0] sm:$0xff]
        %v869 = vld [vmem:[%s188 + $0x13c8] sm:$0xff]
        %v870 = vld [vmem:[%s188 + $0x13d0] sm:$0xff]
        %v871 = vld [vmem:[%s188 + $0x13d8] sm:$0xff]
        %v872 = vld [vmem:[%s188 + $0x13e0] sm:$0xff]
        %v873 = vld [vmem:[%s188 + $0x13e8] sm:$0xff]
        %v874 = vld [vmem:[%s188 + $0x13f0] sm:$0xff]
        %v875 = vld [vmem:[%s188 + $0x13f8] sm:$0xff]
        %v876 = vld [vmem:[%s188 + $0x1400] sm:$0xff]
        %v877 = vld [vmem:[%s188 + $0x1408] sm:$0xff]
        %v878 = vld [vmem:[%s188 + $0x1410] sm:$0xff]
        %v879 = vld [vmem:[%s188 + $0x1418] sm:$0xff]
        %v880 = vld [vmem:[%s188 + $0x1420] sm:$0xff]
        %v881 = vld [vmem:[%s188 + $0x1428] sm:$0xff]
        %v882 = vld [vmem:[%s188 + $0x1430] sm:$0xff]
        %v883 = vld [vmem:[%s188 + $0x1438] sm:$0xff]
        %v884 = vld [vmem:[%s188 + $0x1440] sm:$0xff]
        %v885 = vld [vmem:[%s188 + $0x1448] sm:$0xff]
        %v886 = vld [vmem:[%s188 + $0x1450] sm:$0xff]
        %v887 = vld [vmem:[%s188 + $0x1458] sm:$0xff]
        %v888 = vld [vmem:[%s188 + $0x1460] sm:$0xff]
        %v889 = vld [vmem:[%s188 + $0x1468] sm:$0xff]
        %v890 = vld [vmem:[%s188 + $0x1470] sm:$0xff]
        %v891 = vld [vmem:[%s188 + $0x1478] sm:$0xff]
        %v892 = vld [vmem:[%s188 + $0x1480] sm:$0xff]
        %v893 = vld [vmem:[%s188 + $0x1488] sm:$0xff]
        %v894 = vld [vmem:[%s188 + $0x1490] sm:$0xff]
        %v895 = vld [vmem:[%s188 + $0x1498] sm:$0xff]
        %v896 = vld [vmem:[%s188 + $0x14a0] sm:$0xff]
        %v897 = vld [vmem:[%s188 + $0x14a8] sm:$0xff]
        %v898 = vld [vmem:[%s188 + $0x14b0] sm:$0xff]
        %v899 = vld [vmem:[%s188 + $0x14b8] sm:$0xff]
        %v900 = vld [vmem:[%s188 + $0x14c0] sm:$0xff]
        %v901 = vld [vmem:[%s188 + $0x14c8] sm:$0xff]
        %v902 = vld [vmem:[%s188 + $0x14d0] sm:$0xff]
        %v903 = vld [vmem:[%s188 + $0x14d8] sm:$0xff]
        %v904 = vld [vmem:[%s188 + $0x14e0] sm:$0xff]
        %v905 = vld [vmem:[%s188 + $0x14e8] sm:$0xff]
        %v906 = vld [vmem:[%s188 + $0x14f0] sm:$0xff]
        %v907 = vld [vmem:[%s188 + $0x14f8] sm:$0xff]
        %v908 = vld [vmem:[%s188 + $0x1500] sm:$0xff]
        %v909 = vld [vmem:[%s188 + $0x1508] sm:$0xff]
        %v910 = vld [vmem:[%s188 + $0x1510] sm:$0xff]
        %v911 = vld [vmem:[%s188 + $0x1518] sm:$0xff]
        %v912 = vld [vmem:[%s188 + $0x1520] sm:$0xff]
        %v913 = vld [vmem:[%s188 + $0x1528] sm:$0xff]
        %v914 = vld [vmem:[%s188 + $0x1530] sm:$0xff]
        %v915 = vld [vmem:[%s188 + $0x1538] sm:$0xff]
        %v916 = vld [vmem:[%s188 + $0x1540] sm:$0xff]
        %v917 = vld [vmem:[%s188 + $0x1548] sm:$0xff]
        %v918 = vld [vmem:[%s188 + $0x1550] sm:$0xff]
        %v919 = vld [vmem:[%s188 + $0x1558] sm:$0xff]
        %v920 = vld [vmem:[%s188 + $0x1560] sm:$0xff]
        %v921 = vld [vmem:[%s188 + $0x1568] sm:$0xff]
        %v922 = vld [vmem:[%s188 + $0x1570] sm:$0xff]
        %v923 = vld [vmem:[%s188 + $0x1578] sm:$0xff]
        %v924 = vld [vmem:[%s188 + $0x1580] sm:$0xff]
        %v925 = vld [vmem:[%s188 + $0x1588] sm:$0xff]
        %v926 = vld [vmem:[%s188 + $0x1590] sm:$0xff]
        %v927 = vld [vmem:[%s188 + $0x1598] sm:$0xff]
        %v928 = vld [vmem:[%s188 + $0x15a0] sm:$0xff]
        %v929 = vld [vmem:[%s188 + $0x15a8] sm:$0xff]
        %v930 = vld [vmem:[%s188 + $0x15b0] sm:$0xff]
        %v931 = vld [vmem:[%s188 + $0x15b8] sm:$0xff]
        %v932 = vld [vmem:[%s188 + $0x15c0] sm:$0xff]
        %v933 = vld [vmem:[%s188 + $0x15c8] sm:$0xff]
        %v934 = vld [vmem:[%s188 + $0x15d0] sm:$0xff]
        %v935 = vld [vmem:[%s188 + $0x15d8] sm:$0xff]
        %v936 = vld [vmem:[%s188 + $0x15e0] sm:$0xff]
        %v937 = vld [vmem:[%s188 + $0x15e8] sm:$0xff]
        %v938 = vld [vmem:[%s188 + $0x15f0] sm:$0xff]
        %v939 = vld [vmem:[%s188 + $0x15f8] sm:$0xff]
        %v940 = vld [vmem:[%s188 + $0x1600] sm:$0xff]
        %v941 = vld [vmem:[%s188 + $0x1608] sm:$0xff]
        %v942 = vld [vmem:[%s188 + $0x1610] sm:$0xff]
        %v943 = vld [vmem:[%s188 + $0x1618] sm:$0xff]
        %v944 = vld [vmem:[%s188 + $0x1620] sm:$0xff]
        %v945 = vld [vmem:[%s188 + $0x1628] sm:$0xff]
        %v946 = vld [vmem:[%s188 + $0x1630] sm:$0xff]
        %v947 = vld [vmem:[%s188 + $0x1638] sm:$0xff]
        %v948 = vld [vmem:[%s188 + $0x1640] sm:$0xff]
        %v949 = vld [vmem:[%s188 + $0x1648] sm:$0xff]
        %v950 = vld [vmem:[%s188 + $0x1650] sm:$0xff]
        %v951 = vld [vmem:[%s188 + $0x1658] sm:$0xff]
        %v952 = vld [vmem:[%s188 + $0x1660] sm:$0xff]
        %v953 = vld [vmem:[%s188 + $0x1668] sm:$0xff]
        %v954 = vld [vmem:[%s188 + $0x1670] sm:$0xff]
        %v955 = vld [vmem:[%s188 + $0x1678] sm:$0xff]
        %v956 = vld [vmem:[%s188 + $0x1680] sm:$0xff]
        %v957 = vld [vmem:[%s188 + $0x1688] sm:$0xff]
        %v958 = vld [vmem:[%s188 + $0x1690] sm:$0xff]
        %v959 = vld [vmem:[%s188 + $0x1698] sm:$0xff]
        %v960 = vld [vmem:[%s188 + $0x16a0] sm:$0xff]
        %v961 = vld [vmem:[%s188 + $0x16a8] sm:$0xff]
        %v962 = vld [vmem:[%s188 + $0x16b0] sm:$0xff]
        %v963 = vld [vmem:[%s188 + $0x16b8] sm:$0xff]
        %v964 = vld [vmem:[%s188 + $0x16c0] sm:$0xff]
        %v965 = vld [vmem:[%s188 + $0x16c8] sm:$0xff]
        %v966 = vld [vmem:[%s188 + $0x16d0] sm:$0xff]
        %v967 = vld [vmem:[%s188 + $0x16d8] sm:$0xff]
        %v968 = vld [vmem:[%s188 + $0x16e0] sm:$0xff]
        %v969 = vld [vmem:[%s188 + $0x16e8] sm:$0xff]
        %v970 = vld [vmem:[%s188 + $0x16f0] sm:$0xff]
        %v971 = vld [vmem:[%s188 + $0x16f8] sm:$0xff]
        %v972 = vld [vmem:[%s188 + $0x1700] sm:$0xff]
        %v973 = vld [vmem:[%s188 + $0x1708] sm:$0xff]
        %v974 = vld [vmem:[%s188 + $0x1710] sm:$0xff]
        %v975 = vld [vmem:[%s188 + $0x1718] sm:$0xff]
        %v976 = vld [vmem:[%s188 + $0x1720] sm:$0xff]
        %v977 = vld [vmem:[%s188 + $0x1728] sm:$0xff]
        %v978 = vld [vmem:[%s188 + $0x1730] sm:$0xff]
        %v979 = vld [vmem:[%s188 + $0x1738] sm:$0xff]
        %v980 = vld [vmem:[%s188 + $0x1740] sm:$0xff]
        %v981 = vld [vmem:[%s188 + $0x1748] sm:$0xff]
        %v982 = vld [vmem:[%s188 + $0x1750] sm:$0xff]
        %v983 = vld [vmem:[%s188 + $0x1758] sm:$0xff]
        %v984 = vld [vmem:[%s188 + $0x1760] sm:$0xff]
        %v985 = vld [vmem:[%s188 + $0x1768] sm:$0xff]
        %v986 = vld [vmem:[%s188 + $0x1770] sm:$0xff]
        %v987 = vld [vmem:[%s188 + $0x1778] sm:$0xff]
        %v988 = vld [vmem:[%s188 + $0x1780] sm:$0xff]
        %v989 = vld [vmem:[%s188 + $0x1788] sm:$0xff]
        %v990 = vld [vmem:[%s188 + $0x1790] sm:$0xff]
        %v991 = vld [vmem:[%s188 + $0x1798] sm:$0xff]
        %v992 = vld [vmem:[%s188 + $0x17a0] sm:$0xff]
        %v993 = vld [vmem:[%s188 + $0x17a8] sm:$0xff]
        %v994 = vld [vmem:[%s188 + $0x17b0] sm:$0xff]
        %v995 = vld [vmem:[%s188 + $0x17b8] sm:$0xff]
        %v996 = vld [vmem:[%s188 + $0x17c0] sm:$0xff]
        %v997 = vld [vmem:[%s188 + $0x17c8] sm:$0xff]
        %v998 = vld [vmem:[%s188 + $0x17d0] sm:$0xff]
        %v999 = vld [vmem:[%s188 + $0x17d8] sm:$0xff]
        %v1000 = vld [vmem:[%s188 + $0x17e0] sm:$0xff]
        %v1001 = vld [vmem:[%s188 + $0x17e8] sm:$0xff]
        %v1002 = vld [vmem:[%s188 + $0x17f0] sm:$0xff]
        %v1003 = vld [vmem:[%s188 + $0x17f8] sm:$0xff]
        %v1004 = vld [vmem:[%s188 + $0x1800] sm:$0xff]
        %v1005 = vld [vmem:[%s188 + $0x1808] sm:$0xff]
        %v1006 = vld [vmem:[%s188 + $0x1810] sm:$0xff]
        %v1007 = vld [vmem:[%s188 + $0x1818] sm:$0xff]
        %v1008 = vld [vmem:[%s188 + $0x1820] sm:$0xff]
        %v1009 = vld [vmem:[%s188 + $0x1828] sm:$0xff]
        %v1010 = vld [vmem:[%s188 + $0x1830] sm:$0xff]
        %v1011 = vld [vmem:[%s188 + $0x1838] sm:$0xff]
        %v1012 = vld [vmem:[%s188 + $0x1840] sm:$0xff]
        %v1013 = vld [vmem:[%s188 + $0x1848] sm:$0xff]
        %v1014 = vld [vmem:[%s188 + $0x1850] sm:$0xff]
        %v1015 = vld [vmem:[%s188 + $0x1858] sm:$0xff]
        %v1016 = vld [vmem:[%s188 + $0x1860] sm:$0xff]
        %v1017 = vld [vmem:[%s188 + $0x1868] sm:$0xff]
        %v1018 = vld [vmem:[%s188 + $0x1870] sm:$0xff]
        %v1019 = vld [vmem:[%s188 + $0x1878] sm:$0xff]
        %v1020 = vld [vmem:[%s188 + $0x1880] sm:$0xff]
        %v1021 = vld [vmem:[%s188 + $0x1888] sm:$0xff]
        %v1022 = vld [vmem:[%s188 + $0x1890] sm:$0xff]
        %v1023 = vld [vmem:[%s188 + $0x1898] sm:$0xff]
        %v1024 = vld [vmem:[%s188 + $0x18a0] sm:$0xff]
        %v1025 = vld [vmem:[%s188 + $0x18a8] sm:$0xff]
        %v1026 = vld [vmem:[%s188 + $0x18b0] sm:$0xff]
        %v1027 = vld [vmem:[%s188 + $0x18b8] sm:$0xff]
        %v1028 = vld [vmem:[%s188 + $0x18c0] sm:$0xff]
        %v1029 = vld [vmem:[%s188 + $0x18c8] sm:$0xff]
        %v1030 = vld [vmem:[%s188 + $0x18d0] sm:$0xff]
        %v1031 = vld [vmem:[%s188 + $0x18d8] sm:$0xff]
        %v1032 = vld [vmem:[%s188 + $0x18e0] sm:$0xff]
        %v1033 = vld [vmem:[%s188 + $0x18e8] sm:$0xff]
        %v1034 = vld [vmem:[%s188 + $0x18f0] sm:$0xff]
        %v1035 = vld [vmem:[%s188 + $0x18f8] sm:$0xff]
        %v1036 = vld [vmem:[%s188 + $0x1900] sm:$0xff]
        %v1037 = vld [vmem:[%s188 + $0x1908] sm:$0xff]
        %v1038 = vld [vmem:[%s188 + $0x1910] sm:$0xff]
        %v1039 = vld [vmem:[%s188 + $0x1918] sm:$0xff]
        %v1040 = vld [vmem:[%s188 + $0x1920] sm:$0xff]
        %v1041 = vld [vmem:[%s188 + $0x1928] sm:$0xff]
        %v1042 = vld [vmem:[%s188 + $0x1930] sm:$0xff]
        %v1043 = vld [vmem:[%s188 + $0x1938] sm:$0xff]
        %v1044 = vld [vmem:[%s188 + $0x1940] sm:$0xff]
        %v1045 = vld [vmem:[%s188 + $0x1948] sm:$0xff]
        %v1046 = vld [vmem:[%s188 + $0x1950] sm:$0xff]
        %v1047 = vld [vmem:[%s188 + $0x1958] sm:$0xff]
        %v1048 = vld [vmem:[%s188 + $0x1960] sm:$0xff]
        %v1049 = vld [vmem:[%s188 + $0x1968] sm:$0xff]
        %v1050 = vld [vmem:[%s188 + $0x1970] sm:$0xff]
        %v1051 = vld [vmem:[%s188 + $0x1978] sm:$0xff]
        %v1052 = vld [vmem:[%s188 + $0x1980] sm:$0xff]
        %v1053 = vld [vmem:[%s188 + $0x1988] sm:$0xff]
        %v1054 = vld [vmem:[%s188 + $0x1990] sm:$0xff]
        %v1055 = vld [vmem:[%s188 + $0x1998] sm:$0xff]
        %v1056 = vld [vmem:[%s188 + $0x19a0] sm:$0xff]
        %v1057 = vld [vmem:[%s188 + $0x19a8] sm:$0xff]
        %v1058 = vld [vmem:[%s188 + $0x19b0] sm:$0xff]
        %v1059 = vld [vmem:[%s188 + $0x19b8] sm:$0xff]
        %v1060 = vld [vmem:[%s188 + $0x19c0] sm:$0xff]
        %v1061 = vld [vmem:[%s188 + $0x19c8] sm:$0xff]
        %v1062 = vld [vmem:[%s188 + $0x19d0] sm:$0xff]
        %v1063 = vld [vmem:[%s188 + $0x19d8] sm:$0xff]
        %v1064 = vld [vmem:[%s188 + $0x19e0] sm:$0xff]
        %v1065 = vld [vmem:[%s188 + $0x19e8] sm:$0xff]
        %v1066 = vld [vmem:[%s188 + $0x19f0] sm:$0xff]
        %v1067 = vld [vmem:[%s188 + $0x19f8] sm:$0xff]
        %v1068 = vld [vmem:[%s188 + $0x1a00] sm:$0xff]
        %v1069 = vld [vmem:[%s188 + $0x1a08] sm:$0xff]
        %v1070 = vld [vmem:[%s188 + $0x1a10] sm:$0xff]
        %v1071 = vld [vmem:[%s188 + $0x1a18] sm:$0xff]
        %v1072 = vld [vmem:[%s188 + $0x1a20] sm:$0xff]
        %v1073 = vld [vmem:[%s188 + $0x1a28] sm:$0xff]
        %v1074 = vld [vmem:[%s188 + $0x1a30] sm:$0xff]
        %v1075 = vld [vmem:[%s188 + $0x1a38] sm:$0xff]
        %v1076 = vld [vmem:[%s188 + $0x1a40] sm:$0xff]
        %v1077 = vld [vmem:[%s188 + $0x1a48] sm:$0xff]
        %v1078 = vld [vmem:[%s188 + $0x1a50] sm:$0xff]
        %v1079 = vld [vmem:[%s188 + $0x1a58] sm:$0xff]
        %v1080 = vld [vmem:[%s188 + $0x1a60] sm:$0xff]
        %v1081 = vld [vmem:[%s188 + $0x1a68] sm:$0xff]
        %v1082 = vld [vmem:[%s188 + $0x1a70] sm:$0xff]
        %v1083 = vld [vmem:[%s188 + $0x1a78] sm:$0xff]
        %v1084 = vld [vmem:[%s188 + $0x1a80] sm:$0xff]
        %v1085 = vld [vmem:[%s188 + $0x1a88] sm:$0xff]
        %v1086 = vld [vmem:[%s188 + $0x1a90] sm:$0xff]
        %v1087 = vld [vmem:[%s188 + $0x1a98] sm:$0xff]
        %v1088 = vld [vmem:[%s188 + $0x1aa0] sm:$0xff]
        %v1089 = vld [vmem:[%s188 + $0x1aa8] sm:$0xff]
        %v1090 = vld [vmem:[%s188 + $0x1ab0] sm:$0xff]
        %v1091 = vld [vmem:[%s188 + $0x1ab8] sm:$0xff]
        %v1092 = vld [vmem:[%s188 + $0x1ac0] sm:$0xff]
        %v1093 = vld [vmem:[%s188 + $0x1ac8] sm:$0xff]
        %v1094 = vld [vmem:[%s188 + $0x1ad0] sm:$0xff]
        %v1095 = vld [vmem:[%s188 + $0x1ad8] sm:$0xff]
        %v1096 = vld [vmem:[%s188 + $0x1ae0] sm:$0xff]
        %v1097 = vld [vmem:[%s188 + $0x1ae8] sm:$0xff]
        %v1098 = vld [vmem:[%s188 + $0x1af0] sm:$0xff]
        %v1099 = vld [vmem:[%s188 + $0x1af8] sm:$0xff]
        %v1100 = vld [vmem:[%s188 + $0x1b00] sm:$0xff]
        %v1101 = vld [vmem:[%s188 + $0x1b08] sm:$0xff]
        %v1102 = vld [vmem:[%s188 + $0x1b10] sm:$0xff]
        %v1103 = vld [vmem:[%s188 + $0x1b18] sm:$0xff]
        %v1104 = vld [vmem:[%s188 + $0x1b20] sm:$0xff]
        %v1105 = vld [vmem:[%s188 + $0x1b28] sm:$0xff]
        %v1106 = vld [vmem:[%s188 + $0x1b30] sm:$0xff]
        %v1107 = vld [vmem:[%s188 + $0x1b38] sm:$0xff]
        %v1108 = vld [vmem:[%s188 + $0x1b40] sm:$0xff]
        %v1109 = vld [vmem:[%s188 + $0x1b48] sm:$0xff]
        %v1110 = vld [vmem:[%s188 + $0x1b50] sm:$0xff]
        %v1111 = vld [vmem:[%s188 + $0x1b58] sm:$0xff]
        %v1112 = vld [vmem:[%s188 + $0x1b60] sm:$0xff]
        %v1113 = vld [vmem:[%s188 + $0x1b68] sm:$0xff]
        %v1114 = vld [vmem:[%s188 + $0x1b70] sm:$0xff]
        %v1115 = vld [vmem:[%s188 + $0x1b78] sm:$0xff]
        %v1116 = vld [vmem:[%s188 + $0x1b80] sm:$0xff]
        %v1117 = vld [vmem:[%s188 + $0x1b88] sm:$0xff]
        %v1118 = vld [vmem:[%s188 + $0x1b90] sm:$0xff]
        %v1119 = vld [vmem:[%s188 + $0x1b98] sm:$0xff]
        %v1120 = vld [vmem:[%s188 + $0x1ba0] sm:$0xff]
        %v1121 = vld [vmem:[%s188 + $0x1ba8] sm:$0xff]
        %v1122 = vld [vmem:[%s188 + $0x1bb0] sm:$0xff]
        %v1123 = vld [vmem:[%s188 + $0x1bb8] sm:$0xff]
        %v1124 = vld [vmem:[%s188 + $0x1bc0] sm:$0xff]
        %v1125 = vld [vmem:[%s188 + $0x1bc8] sm:$0xff]
        %v1126 = vld [vmem:[%s188 + $0x1bd0] sm:$0xff]
        %v1127 = vld [vmem:[%s188 + $0x1bd8] sm:$0xff]
        %v1128 = vld [vmem:[%s188 + $0x1be0] sm:$0xff]
        %v1129 = vld [vmem:[%s188 + $0x1be8] sm:$0xff]
        %v1130 = vld [vmem:[%s188 + $0x1bf0] sm:$0xff]
        %v1131 = vld [vmem:[%s188 + $0x1bf8] sm:$0xff]
        %v1132 = vld [vmem:[%s188 + $0x1c00] sm:$0xff]
        %v1133 = vld [vmem:[%s188 + $0x1c08] sm:$0xff]
        %v1134 = vld [vmem:[%s188 + $0x1c10] sm:$0xff]
        %v1135 = vld [vmem:[%s188 + $0x1c18] sm:$0xff]
        %v1136 = vld [vmem:[%s188 + $0x1c20] sm:$0xff]
        %v1137 = vld [vmem:[%s188 + $0x1c28] sm:$0xff]
        %v1138 = vld [vmem:[%s188 + $0x1c30] sm:$0xff]
        %v1139 = vld [vmem:[%s188 + $0x1c38] sm:$0xff]
        %v1140 = vld [vmem:[%s188 + $0x1c40] sm:$0xff]
        %v1141 = vld [vmem:[%s188 + $0x1c48] sm:$0xff]
        %v1142 = vld [vmem:[%s188 + $0x1c50] sm:$0xff]
        %v1143 = vld [vmem:[%s188 + $0x1c58] sm:$0xff]
        %v1144 = vld [vmem:[%s188 + $0x1c60] sm:$0xff]
        %v1145 = vld [vmem:[%s188 + $0x1c68] sm:$0xff]
        %v1146 = vld [vmem:[%s188 + $0x1c70] sm:$0xff]
        %v1147 = vld [vmem:[%s188 + $0x1c78] sm:$0xff]
        %v1148 = vld [vmem:[%s188 + $0x1c80] sm:$0xff]
        %v1149 = vld [vmem:[%s188 + $0x1c88] sm:$0xff]
        %v1150 = vld [vmem:[%s188 + $0x1c90] sm:$0xff]
        %v1151 = vld [vmem:[%s188 + $0x1c98] sm:$0xff]
        %v1152 = vld [vmem:[%s188 + $0x1ca0] sm:$0xff]
        %v1153 = vld [vmem:[%s188 + $0x1ca8] sm:$0xff]
        %v1154 = vld [vmem:[%s188 + $0x1cb0] sm:$0xff]
        %v1155 = vld [vmem:[%s188 + $0x1cb8] sm:$0xff]
        %v1156 = vld [vmem:[%s188 + $0x1cc0] sm:$0xff]
        %v1157 = vld [vmem:[%s188 + $0x1cc8] sm:$0xff]
        %v1158 = vld [vmem:[%s188 + $0x1cd0] sm:$0xff]
        %v1159 = vld [vmem:[%s188 + $0x1cd8] sm:$0xff]
        %v1160 = vld [vmem:[%s188 + $0x1ce0] sm:$0xff]
        %v1161 = vld [vmem:[%s188 + $0x1ce8] sm:$0xff]
        %v1162 = vld [vmem:[%s188 + $0x1cf0] sm:$0xff]
        %v1163 = vld [vmem:[%s188 + $0x1cf8] sm:$0xff]
        %v1164 = vld [vmem:[%s188 + $0x1d00] sm:$0xff]
        %v1165 = vld [vmem:[%s188 + $0x1d08] sm:$0xff]
        %v1166 = vld [vmem:[%s188 + $0x1d10] sm:$0xff]
        %v1167 = vld [vmem:[%s188 + $0x1d18] sm:$0xff]
        %v1168 = vld [vmem:[%s188 + $0x1d20] sm:$0xff]
        %v1169 = vld [vmem:[%s188 + $0x1d28] sm:$0xff]
        %v1170 = vld [vmem:[%s188 + $0x1d30] sm:$0xff]
        %v1171 = vld [vmem:[%s188 + $0x1d38] sm:$0xff]
        %v1172 = vld [vmem:[%s188 + $0x1d40] sm:$0xff]
        %v1173 = vld [vmem:[%s188 + $0x1d48] sm:$0xff]
        %v1174 = vld [vmem:[%s188 + $0x1d50] sm:$0xff]
        %v1175 = vld [vmem:[%s188 + $0x1d58] sm:$0xff]
        %v1176 = vld [vmem:[%s188 + $0x1d60] sm:$0xff]
        %v1177 = vld [vmem:[%s188 + $0x1d68] sm:$0xff]
        %v1178 = vld [vmem:[%s188 + $0x1d70] sm:$0xff]
        %v1179 = vld [vmem:[%s188 + $0x1d78] sm:$0xff]
        %v1180 = vld [vmem:[%s188 + $0x1d80] sm:$0xff]
        %v1181 = vld [vmem:[%s188 + $0x1d88] sm:$0xff]
        %v1182 = vld [vmem:[%s188 + $0x1d90] sm:$0xff]
        %v1183 = vld [vmem:[%s188 + $0x1d98] sm:$0xff]
        %v1184 = vld [vmem:[%s188 + $0x1da0] sm:$0xff]
        %v1185 = vld [vmem:[%s188 + $0x1da8] sm:$0xff]
        %v1186 = vld [vmem:[%s188 + $0x1db0] sm:$0xff]
        %v1187 = vld [vmem:[%s188 + $0x1db8] sm:$0xff]
        %v1188 = vld [vmem:[%s188 + $0x1dc0] sm:$0xff]
        %v1189 = vld [vmem:[%s188 + $0x1dc8] sm:$0xff]
        %v1190 = vld [vmem:[%s188 + $0x1dd0] sm:$0xff]
        %v1191 = vld [vmem:[%s188 + $0x1dd8] sm:$0xff]
        %v1192 = vld [vmem:[%s188 + $0x1de0] sm:$0xff]
        %v1193 = vld [vmem:[%s188 + $0x1de8] sm:$0xff]
        %v1194 = vld [vmem:[%s188 + $0x1df0] sm:$0xff]
        %v1195 = vld [vmem:[%s188 + $0x1df8] sm:$0xff]
        %v1196 = vld [vmem:[%s188 + $0x1e00] sm:$0xff]
        %v1197 = vld [vmem:[%s188 + $0x1e08] sm:$0xff]
        %v1198 = vld [vmem:[%s188 + $0x1e10] sm:$0xff]
        %v1199 = vld [vmem:[%s188 + $0x1e18] sm:$0xff]
        %v1200 = vld [vmem:[%s188 + $0x1e20] sm:$0xff]
        %v1201 = vld [vmem:[%s188 + $0x1e28] sm:$0xff]
        %v1202 = vld [vmem:[%s188 + $0x1e30] sm:$0xff]
        %v1203 = vld [vmem:[%s188 + $0x1e38] sm:$0xff]
        %v1204 = vld [vmem:[%s188 + $0x1e40] sm:$0xff]
        %v1205 = vld [vmem:[%s188 + $0x1e48] sm:$0xff]
        %v1206 = vld [vmem:[%s188 + $0x1e50] sm:$0xff]
        %v1207 = vld [vmem:[%s188 + $0x1e58] sm:$0xff]
        %v1208 = vld [vmem:[%s188 + $0x1e60] sm:$0xff]
        %v1209 = vld [vmem:[%s188 + $0x1e68] sm:$0xff]
        %v1210 = vld [vmem:[%s188 + $0x1e70] sm:$0xff]
        %v1211 = vld [vmem:[%s188 + $0x1e78] sm:$0xff]
        %v1212 = vld [vmem:[%s188 + $0x1e80] sm:$0xff]
        %v1213 = vld [vmem:[%s188 + $0x1e88] sm:$0xff]
        %v1214 = vld [vmem:[%s188 + $0x1e90] sm:$0xff]
        %v1215 = vld [vmem:[%s188 + $0x1e98] sm:$0xff]
        %v1216 = vld [vmem:[%s188 + $0x1ea0] sm:$0xff]
        %v1217 = vld [vmem:[%s188 + $0x1ea8] sm:$0xff]
        %v1218 = vld [vmem:[%s188 + $0x1eb0] sm:$0xff]
        %v1219 = vld [vmem:[%s188 + $0x1eb8] sm:$0xff]
        %v1220 = vld [vmem:[%s188 + $0x1ec0] sm:$0xff]
        %v1221 = vld [vmem:[%s188 + $0x1ec8] sm:$0xff]
        %v1222 = vld [vmem:[%s188 + $0x1ed0] sm:$0xff]
        %v1223 = vld [vmem:[%s188 + $0x1ed8] sm:$0xff]
        %v1224 = vld [vmem:[%s188 + $0x1ee0] sm:$0xff]
        %v1225 = vld [vmem:[%s188 + $0x1ee8] sm:$0xff]
        %v1226 = vld [vmem:[%s188 + $0x1ef0] sm:$0xff]
        %v1227 = vld [vmem:[%s188 + $0x1ef8] sm:$0xff]
        %v1228 = vld [vmem:[%s188 + $0x1f00] sm:$0xff]
        %v1229 = vld [vmem:[%s188 + $0x1f08] sm:$0xff]
        %v1230 = vld [vmem:[%s188 + $0x1f10] sm:$0xff]
        %v1231 = vld [vmem:[%s188 + $0x1f18] sm:$0xff]
        %v1232 = vld [vmem:[%s188 + $0x1f20] sm:$0xff]
        %v1233 = vld [vmem:[%s188 + $0x1f28] sm:$0xff]
        %v1234 = vld [vmem:[%s188 + $0x1f30] sm:$0xff]
        %v1235 = vld [vmem:[%s188 + $0x1f38] sm:$0xff]
        %v1236 = vld [vmem:[%s188 + $0x1f40] sm:$0xff]
        %v1237 = vld [vmem:[%s188 + $0x1f48] sm:$0xff]
        %v1238 = vld [vmem:[%s188 + $0x1f50] sm:$0xff]
        %v1239 = vld [vmem:[%s188 + $0x1f58] sm:$0xff]
        %v1240 = vld [vmem:[%s188 + $0x1f60] sm:$0xff]
        %v1241 = vld [vmem:[%s188 + $0x1f68] sm:$0xff]
        %v1242 = vld [vmem:[%s188 + $0x1f70] sm:$0xff]
        %v1243 = vld [vmem:[%s188 + $0x1f78] sm:$0xff]
        %v1244 = vld [vmem:[%s188 + $0x1f80] sm:$0xff]
        %v1245 = vld [vmem:[%s188 + $0x1f88] sm:$0xff]
        %v1246 = vld [vmem:[%s188 + $0x1f90] sm:$0xff]
        %v1247 = vld [vmem:[%s188 + $0x1f98] sm:$0xff]
        %v1248 = vld [vmem:[%s188 + $0x1fa0] sm:$0xff]
        %v1249 = vld [vmem:[%s188 + $0x1fa8] sm:$0xff]
        %v1250 = vld [vmem:[%s188 + $0x1fb0] sm:$0xff]
        %v1251 = vld [vmem:[%s188 + $0x1fb8] sm:$0xff]
        %v1252 = vld [vmem:[%s188 + $0x1fc0] sm:$0xff]
        %v1253 = vld [vmem:[%s188 + $0x1fc8] sm:$0xff]
        %v1254 = vld [vmem:[%s188 + $0x1fd0] sm:$0xff]
        %v1255 = vld [vmem:[%s188 + $0x1fd8] sm:$0xff]
        %v1256 = vld [vmem:[%s188 + $0x1fe0] sm:$0xff]
        %v1257 = vld [vmem:[%s188 + $0x1fe8] sm:$0xff]
        %v1258 = vld [vmem:[%s188 + $0x1ff0] sm:$0xff]
        %v1259 = vld [vmem:[%s188 + $0x1ff8] sm:$0xff]
        %v1260 = vld [vmem:[%s188 + $0x2000] sm:$0xff]
        %v1261 = vld [vmem:[%s188 + $0x2008] sm:$0xff]
        %v1262 = vld [vmem:[%s188 + $0x2010] sm:$0xff]
        %v1263 = vld [vmem:[%s188 + $0x2018] sm:$0xff]
        %v1264 = vld [vmem:[%s188 + $0x2020] sm:$0xff]
        %v1265 = vld [vmem:[%s188 + $0x2028] sm:$0xff]
        %v1266 = vld [vmem:[%s188 + $0x2030] sm:$0xff]
        %v1267 = vld [vmem:[%s188 + $0x2038] sm:$0xff]
        %v1268 = vld [vmem:[%s188 + $0x2040] sm:$0xff]
        %v1269 = vld [vmem:[%s188 + $0x2048] sm:$0xff]
        %v1270 = vld [vmem:[%s188 + $0x2050] sm:$0xff]
        %v1271 = vld [vmem:[%s188 + $0x2058] sm:$0xff]
        %v1272 = vld [vmem:[%s188 + $0x2060] sm:$0xff]
        %v1273 = vld [vmem:[%s188 + $0x2068] sm:$0xff]
        %v1274 = vld [vmem:[%s188 + $0x2070] sm:$0xff]
        %v1275 = vld [vmem:[%s188 + $0x2078] sm:$0xff]
        %v1276 = vld [vmem:[%s188 + $0x2080] sm:$0xff]
        %v1277 = vld [vmem:[%s188 + $0x2088] sm:$0xff]
        %v1278 = vld [vmem:[%s188 + $0x2090] sm:$0xff]
        %v1279 = vld [vmem:[%s188 + $0x2098] sm:$0xff]
        %v1280 = vld [vmem:[%s188 + $0x20a0] sm:$0xff]
        %v1281 = vld [vmem:[%s188 + $0x20a8] sm:$0xff]
        %v1282 = vld [vmem:[%s188 + $0x20b0] sm:$0xff]
        %v1283 = vld [vmem:[%s188 + $0x20b8] sm:$0xff]
        %v1284 = vld [vmem:[%s188 + $0x20c0] sm:$0xff]
        %v1285 = vld [vmem:[%s188 + $0x20c8] sm:$0xff]
        %v1286 = vld [vmem:[%s188 + $0x20d0] sm:$0xff]
        %v1287 = vld [vmem:[%s188 + $0x20d8] sm:$0xff]
        %v1288 = vld [vmem:[%s188 + $0x20e0] sm:$0xff]
        %v1289 = vld [vmem:[%s188 + $0x20e8] sm:$0xff]
        %v1290 = vld [vmem:[%s188 + $0x20f0] sm:$0xff]
        %v1291 = vld [vmem:[%s188 + $0x20f8] sm:$0xff]
        %v1292 = vld [vmem:[%s188 + $0x2100] sm:$0xff]
        %v1293 = vld [vmem:[%s188 + $0x2108] sm:$0xff]
        %v1294 = vld [vmem:[%s188 + $0x2110] sm:$0xff]
        %v1295 = vld [vmem:[%s188 + $0x2118] sm:$0xff]
        %v1296 = vld [vmem:[%s188 + $0x2120] sm:$0xff]
        %v1297 = vld [vmem:[%s188 + $0x2128] sm:$0xff]
        %v1298 = vld [vmem:[%s188 + $0x2130] sm:$0xff]
        %v1299 = vld [vmem:[%s188 + $0x2138] sm:$0xff]
        %v1300 = vld [vmem:[%s188 + $0x2140] sm:$0xff]
        %v1301 = vld [vmem:[%s188 + $0x2148] sm:$0xff]
        %v1302 = vld [vmem:[%s188 + $0x2150] sm:$0xff]
        %v1303 = vld [vmem:[%s188 + $0x2158] sm:$0xff]
        %v1304 = vld [vmem:[%s188 + $0x2160] sm:$0xff]
        %v1305 = vld [vmem:[%s188 + $0x2168] sm:$0xff]
        %v1306 = vld [vmem:[%s188 + $0x2170] sm:$0xff]
        %v1307 = vld [vmem:[%s188 + $0x2178] sm:$0xff]
        %v1308 = vld [vmem:[%s188 + $0x2180] sm:$0xff]
        %v1309 = vld [vmem:[%s188 + $0x2188] sm:$0xff]
        %v1310 = vld [vmem:[%s188 + $0x2190] sm:$0xff]
        %v1311 = vld [vmem:[%s188 + $0x2198] sm:$0xff]
        %v1312 = vld [vmem:[%s188 + $0x21a0] sm:$0xff]
        %v1313 = vld [vmem:[%s188 + $0x21a8] sm:$0xff]
        %v1314 = vld [vmem:[%s188 + $0x21b0] sm:$0xff]
        %v1315 = vld [vmem:[%s188 + $0x21b8] sm:$0xff]
        %v1316 = vld [vmem:[%s188 + $0x21c0] sm:$0xff]
        %v1317 = vld [vmem:[%s188 + $0x21c8] sm:$0xff]
        %v1318 = vld [vmem:[%s188 + $0x21d0] sm:$0xff]
        %v1319 = vld [vmem:[%s188 + $0x21d8] sm:$0xff]
        %v1320 = vld [vmem:[%s188 + $0x21e0] sm:$0xff]
        %v1321 = vld [vmem:[%s188 + $0x21e8] sm:$0xff]
        %v1322 = vld [vmem:[%s188 + $0x21f0] sm:$0xff]
        %v1323 = vld [vmem:[%s188 + $0x21f8] sm:$0xff]
        %v1324 = vld [vmem:[%s188 + $0x2200] sm:$0xff]
        %v1325 = vld [vmem:[%s188 + $0x2208] sm:$0xff]
        %v1326 = vld [vmem:[%s188 + $0x2210] sm:$0xff]
        %v1327 = vld [vmem:[%s188 + $0x2218] sm:$0xff]
        %v1328 = vld [vmem:[%s188 + $0x2220] sm:$0xff]
        %v1329 = vld [vmem:[%s188 + $0x2228] sm:$0xff]
        %v1330 = vld [vmem:[%s188 + $0x2230] sm:$0xff]
        %v1331 = vld [vmem:[%s188 + $0x2238] sm:$0xff]
        %v1332 = vld [vmem:[%s188 + $0x2240] sm:$0xff]
        %v1333 = vld [vmem:[%s188 + $0x2248] sm:$0xff]
        %v1334 = vld [vmem:[%s188 + $0x2250] sm:$0xff]
        %v1335 = vld [vmem:[%s188 + $0x2258] sm:$0xff]
        %v1336 = vld [vmem:[%s188 + $0x2260] sm:$0xff]
        %v1337 = vld [vmem:[%s188 + $0x2268] sm:$0xff]
        %v1338 = vld [vmem:[%s188 + $0x2270] sm:$0xff]
        %v1339 = vld [vmem:[%s188 + $0x2278] sm:$0xff]
        %v1340 = vld [vmem:[%s188 + $0x2280] sm:$0xff]
        %v1341 = vld [vmem:[%s188 + $0x2288] sm:$0xff]
        %v1342 = vld [vmem:[%s188 + $0x2290] sm:$0xff]
        %v1343 = vld [vmem:[%s188 + $0x2298] sm:$0xff]
        %v1344 = vld [vmem:[%s188 + $0x22a0] sm:$0xff]
        %v1345 = vld [vmem:[%s188 + $0x22a8] sm:$0xff]
        %v1346 = vld [vmem:[%s188 + $0x22b0] sm:$0xff]
        %v1347 = vld [vmem:[%s188 + $0x22b8] sm:$0xff]
        %v1348 = vld [vmem:[%s188 + $0x22c0] sm:$0xff]
        %v1349 = vld [vmem:[%s188 + $0x22c8] sm:$0xff]
        %v1350 = vld [vmem:[%s188 + $0x22d0] sm:$0xff]
        %v1351 = vld [vmem:[%s188 + $0x22d8] sm:$0xff]
        %v1352 = vld [vmem:[%s188 + $0x22e0] sm:$0xff]
        %v1353 = vld [vmem:[%s188 + $0x22e8] sm:$0xff]
        %v1354 = vld [vmem:[%s188 + $0x22f0] sm:$0xff]
        %v1355 = vld [vmem:[%s188 + $0x22f8] sm:$0xff]
        %v1356 = vld [vmem:[%s188 + $0x2300] sm:$0xff]
        %v1357 = vld [vmem:[%s188 + $0x2308] sm:$0xff]
        %v1358 = vld [vmem:[%s188 + $0x2310] sm:$0xff]
        %v1359 = vld [vmem:[%s188 + $0x2318] sm:$0xff]
        %v1360 = vld [vmem:[%s188 + $0x2320] sm:$0xff]
        %v1361 = vld [vmem:[%s188 + $0x2328] sm:$0xff]
        %v1362 = vld [vmem:[%s188 + $0x2330] sm:$0xff]
        %v1363 = vld [vmem:[%s188 + $0x2338] sm:$0xff]
        %v1364 = vld [vmem:[%s188 + $0x2340] sm:$0xff]
        %v1365 = vld [vmem:[%s188 + $0x2348] sm:$0xff]
        %v1366 = vld [vmem:[%s188 + $0x2350] sm:$0xff]
        %v1367 = vld [vmem:[%s188 + $0x2358] sm:$0xff]
        %v1368 = vld [vmem:[%s188 + $0x2360] sm:$0xff]
        %v1369 = vld [vmem:[%s188 + $0x2368] sm:$0xff]
        %v1370 = vld [vmem:[%s188 + $0x2370] sm:$0xff]
        %v1371 = vld [vmem:[%s188 + $0x2378] sm:$0xff]
        %v1372 = vld [vmem:[%s188 + $0x2380] sm:$0xff]
        %v1373 = vld [vmem:[%s188 + $0x2388] sm:$0xff]
        %v1374 = vld [vmem:[%s188 + $0x2390] sm:$0xff]
        %v1375 = vld [vmem:[%s188 + $0x2398] sm:$0xff]
        %v1376 = vld [vmem:[%s188 + $0x23a0] sm:$0xff]
        %v1377 = vld [vmem:[%s188 + $0x23a8] sm:$0xff]
        %v1378 = vld [vmem:[%s188 + $0x23b0] sm:$0xff]
        %v1379 = vld [vmem:[%s188 + $0x23b8] sm:$0xff]
        %v1380 = vld [vmem:[%s188 + $0x23c0] sm:$0xff]
        %v1381 = vld [vmem:[%s188 + $0x23c8] sm:$0xff]
        %v1382 = vld [vmem:[%s188 + $0x23d0] sm:$0xff]
        %v1383 = vld [vmem:[%s188 + $0x23d8] sm:$0xff]
        %v1384 = vld [vmem:[%s188 + $0x23e0] sm:$0xff]
        %v1385 = vld [vmem:[%s188 + $0x23e8] sm:$0xff]
        %v1386 = vld [vmem:[%s188 + $0x23f0] sm:$0xff]
        %v1387 = vld [vmem:[%s188 + $0x23f8] sm:$0xff]
        %v1388 = vld [vmem:[%s188 + $0x2400] sm:$0xff]
        %v1389 = vld [vmem:[%s188 + $0x2408] sm:$0xff]
        %v1390 = vld [vmem:[%s188 + $0x2410] sm:$0xff]
        %v1391 = vld [vmem:[%s188 + $0x2418] sm:$0xff]
        %v1392 = vld [vmem:[%s188 + $0x2420] sm:$0xff]
        %v1393 = vld [vmem:[%s188 + $0x2428] sm:$0xff]
        %v1394 = vld [vmem:[%s188 + $0x2430] sm:$0xff]
        %v1395 = vld [vmem:[%s188 + $0x2438] sm:$0xff]
        %v1396 = vld [vmem:[%s188 + $0x2440] sm:$0xff]
        %v1397 = vld [vmem:[%s188 + $0x2448] sm:$0xff]
        %v1398 = vld [vmem:[%s188 + $0x2450] sm:$0xff]
        %v1399 = vld [vmem:[%s188 + $0x2458] sm:$0xff]
        %v1400 = vld [vmem:[%s188 + $0x2460] sm:$0xff]
        %v1401 = vld [vmem:[%s188 + $0x2468] sm:$0xff]
        %v1402 = vld [vmem:[%s188 + $0x2470] sm:$0xff]
        %v1403 = vld [vmem:[%s188 + $0x2478] sm:$0xff]
        %v1404 = vld [vmem:[%s188 + $0x2480] sm:$0xff]
        %v1405 = vld [vmem:[%s188 + $0x2488] sm:$0xff]
        %v1406 = vld [vmem:[%s188 + $0x2490] sm:$0xff]
        %v1407 = vld [vmem:[%s188 + $0x2498] sm:$0xff]
        %v1408 = vld [vmem:[%s188 + $0x24a0] sm:$0xff]
        %v1409 = vld [vmem:[%s188 + $0x24a8] sm:$0xff]
        %v1410 = vld [vmem:[%s188 + $0x24b0] sm:$0xff]
        %v1411 = vld [vmem:[%s188 + $0x24b8] sm:$0xff]
        %v1412 = vld [vmem:[%s188 + $0x24c0] sm:$0xff]
        %v1413 = vld [vmem:[%s188 + $0x24c8] sm:$0xff]
        %v1414 = vld [vmem:[%s188 + $0x24d0] sm:$0xff]
        %v1415 = vld [vmem:[%s188 + $0x24d8] sm:$0xff]
        %v1416 = vld [vmem:[%s188 + $0x24e0] sm:$0xff]
        %v1417 = vld [vmem:[%s188 + $0x24e8] sm:$0xff]
        %v1418 = vld [vmem:[%s188 + $0x24f0] sm:$0xff]
        %v1419 = vld [vmem:[%s188 + $0x24f8] sm:$0xff]
        %v1420 = vld [vmem:[%s188 + $0x2500] sm:$0xff]
        %v1421 = vld [vmem:[%s188 + $0x2508] sm:$0xff]
        %v1422 = vld [vmem:[%s188 + $0x2510] sm:$0xff]
        %v1423 = vld [vmem:[%s188 + $0x2518] sm:$0xff]
        %v1424 = vld [vmem:[%s188 + $0x2520] sm:$0xff]
        %v1425 = vld [vmem:[%s188 + $0x2528] sm:$0xff]
        %v1426 = vld [vmem:[%s188 + $0x2530] sm:$0xff]
        %v1427 = vld [vmem:[%s188 + $0x2538] sm:$0xff]
        %v1428 = vld [vmem:[%s188 + $0x2540] sm:$0xff]
        %v1429 = vld [vmem:[%s188 + $0x2548] sm:$0xff]
        %v1430 = vld [vmem:[%s188 + $0x2550] sm:$0xff]
        %v1431 = vld [vmem:[%s188 + $0x2558] sm:$0xff]
        %v1432 = vld [vmem:[%s188 + $0x2560] sm:$0xff]
        %v1433 = vld [vmem:[%s188 + $0x2568] sm:$0xff]
        %v1434 = vld [vmem:[%s188 + $0x2570] sm:$0xff]
        %v1435 = vld [vmem:[%s188 + $0x2578] sm:$0xff]
        %v1436 = vld [vmem:[%s188 + $0x2580] sm:$0xff]
        %v1437 = vld [vmem:[%s188 + $0x2588] sm:$0xff]
        %v1438 = vld [vmem:[%s188 + $0x2590] sm:$0xff]
        %v1439 = vld [vmem:[%s188 + $0x2598] sm:$0xff]
        %v1440 = vld [vmem:[%s188 + $0x25a0] sm:$0xff]
        %v1441 = vld [vmem:[%s188 + $0x25a8] sm:$0xff]
        %v1442 = vld [vmem:[%s188 + $0x25b0] sm:$0xff]
        %v1443 = vld [vmem:[%s188 + $0x25b8] sm:$0xff]
        %v1444 = vld [vmem:[%s188 + $0x25c0] sm:$0xff]
        %v1445 = vld [vmem:[%s188 + $0x25c8] sm:$0xff]
        %v1446 = vld [vmem:[%s188 + $0x25d0] sm:$0xff]
        %v1447 = vld [vmem:[%s188 + $0x25d8] sm:$0xff]
        %v1448 = vld [vmem:[%s188 + $0x25e0] sm:$0xff]
        %v1449 = vld [vmem:[%s188 + $0x25e8] sm:$0xff]
        %v1450 = vld [vmem:[%s188 + $0x25f0] sm:$0xff]
        %v1451 = vld [vmem:[%s188 + $0x25f8] sm:$0xff]
        %v1452 = vld [vmem:[%s188 + $0x2600] sm:$0xff]
        %v1453 = vld [vmem:[%s188 + $0x2608] sm:$0xff]
        %v1454 = vld [vmem:[%s188 + $0x2610] sm:$0xff]
        %v1455 = vld [vmem:[%s188 + $0x2618] sm:$0xff]
        %v1456 = vld [vmem:[%s188 + $0x2620] sm:$0xff]
        %v1457 = vld [vmem:[%s188 + $0x2628] sm:$0xff]
        %v1458 = vld [vmem:[%s188 + $0x2630] sm:$0xff]
        %v1459 = vld [vmem:[%s188 + $0x2638] sm:$0xff]
        %v1460 = vld [vmem:[%s188 + $0x2640] sm:$0xff]
        %v1461 = vld [vmem:[%s188 + $0x2648] sm:$0xff]
        %v1462 = vld [vmem:[%s188 + $0x2650] sm:$0xff]
        %v1463 = vld [vmem:[%s188 + $0x2658] sm:$0xff]
        %v1464 = vld [vmem:[%s188 + $0x2660] sm:$0xff]
        %v1465 = vld [vmem:[%s188 + $0x2668] sm:$0xff]
        %v1466 = vld [vmem:[%s188 + $0x2670] sm:$0xff]
        %v1467 = vld [vmem:[%s188 + $0x2678] sm:$0xff]
        %v1468 = vld [vmem:[%s188 + $0x2680] sm:$0xff]
        %v1469 = vld [vmem:[%s188 + $0x2688] sm:$0xff]
        %v1470 = vld [vmem:[%s188 + $0x2690] sm:$0xff]
        %v1471 = vld [vmem:[%s188 + $0x2698] sm:$0xff]
        %v1472 = vld [vmem:[%s188 + $0x26a0] sm:$0xff]
        %v1473 = vld [vmem:[%s188 + $0x26a8] sm:$0xff]
        %v1474 = vld [vmem:[%s188 + $0x26b0] sm:$0xff]
        %v1475 = vld [vmem:[%s188 + $0x26b8] sm:$0xff]
        %v1476 = vld [vmem:[%s188 + $0x26c0] sm:$0xff]
        %v1477 = vld [vmem:[%s188 + $0x26c8] sm:$0xff]
        %v1478 = vld [vmem:[%s188 + $0x26d0] sm:$0xff]
        %v1479 = vld [vmem:[%s188 + $0x26d8] sm:$0xff]
        %v1480 = vld [vmem:[%s188 + $0x26e0] sm:$0xff]
        %v1481 = vld [vmem:[%s188 + $0x26e8] sm:$0xff]
        %v1482 = vld [vmem:[%s188 + $0x26f0] sm:$0xff]
        %v1483 = vld [vmem:[%s188 + $0x26f8] sm:$0xff]
        %v1484 = vld [vmem:[%s188 + $0x2700] sm:$0xff]
        %v1485 = vld [vmem:[%s188 + $0x2708] sm:$0xff]
        %v1486 = vld [vmem:[%s188 + $0x2710] sm:$0xff]
        %v1487 = vld [vmem:[%s188 + $0x2718] sm:$0xff]
        %v1488 = vld [vmem:[%s188 + $0x2720] sm:$0xff]
        %v1489 = vld [vmem:[%s188 + $0x2728] sm:$0xff]
        %v1490 = vld [vmem:[%s188 + $0x2730] sm:$0xff]
        %v1491 = vld [vmem:[%s188 + $0x2738] sm:$0xff]
        %v1492 = vld [vmem:[%s188 + $0x2740] sm:$0xff]
        %v1493 = vld [vmem:[%s188 + $0x2748] sm:$0xff]
        %v1494 = vld [vmem:[%s188 + $0x2750] sm:$0xff]
        %v1495 = vld [vmem:[%s188 + $0x2758] sm:$0xff]
        %v1496 = vld [vmem:[%s188 + $0x2760] sm:$0xff]
        %v1497 = vld [vmem:[%s188 + $0x2768] sm:$0xff]
        %v1498 = vld [vmem:[%s188 + $0x2770] sm:$0xff]
        %v1499 = vld [vmem:[%s188 + $0x2778] sm:$0xff]
        %v1500 = vld [vmem:[%s188 + $0x2780] sm:$0xff]
        %v1501 = vld [vmem:[%s188 + $0x2788] sm:$0xff]
        %v1502 = vld [vmem:[%s188 + $0x2790] sm:$0xff]
        %v1503 = vld [vmem:[%s188 + $0x2798] sm:$0xff]
        %v1504 = vld [vmem:[%s188 + $0x27a0] sm:$0xff]
        %v1505 = vld [vmem:[%s188 + $0x27a8] sm:$0xff]
        %v1506 = vld [vmem:[%s188 + $0x27b0] sm:$0xff]
        %v1507 = vld [vmem:[%s188 + $0x27b8] sm:$0xff]
        %v1508 = vld [vmem:[%s188 + $0x27c0] sm:$0xff]
        %v1509 = vld [vmem:[%s188 + $0x27c8] sm:$0xff]
        %v1510 = vld [vmem:[%s188 + $0x27d0] sm:$0xff]
        %v1511 = vld [vmem:[%s188 + $0x27d8] sm:$0xff]
        %v1512 = vld [vmem:[%s188 + $0x27e0] sm:$0xff]
        %v1513 = vld [vmem:[%s188 + $0x27e8] sm:$0xff]
        %v1514 = vld [vmem:[%s188 + $0x27f0] sm:$0xff]
        %v1515 = vld [vmem:[%s188 + $0x27f8] sm:$0xff]
        %v1516 = vld [vmem:[%s188 + $0x2800] sm:$0xff]
        %v1517 = vld [vmem:[%s188 + $0x2808] sm:$0xff]
        %v1518 = vld [vmem:[%s188 + $0x2810] sm:$0xff]
        %v1519 = vld [vmem:[%s188 + $0x2818] sm:$0xff]
        %v1520 = vld [vmem:[%s188 + $0x2820] sm:$0xff]
        %v1521 = vld [vmem:[%s188 + $0x2828] sm:$0xff]
        %v1522 = vld [vmem:[%s188 + $0x2830] sm:$0xff]
        %v1523 = vld [vmem:[%s188 + $0x2838] sm:$0xff]
        %v1524 = vld [vmem:[%s188 + $0x2840] sm:$0xff]
        %v1525 = vld [vmem:[%s188 + $0x2848] sm:$0xff]
        %v1526 = vld [vmem:[%s188 + $0x2850] sm:$0xff]
        %v1527 = vld [vmem:[%s188 + $0x2858] sm:$0xff]
        %v1528 = vld [vmem:[%s188 + $0x2860] sm:$0xff]
        %v1529 = vld [vmem:[%s188 + $0x2868] sm:$0xff]
        %v1530 = vld [vmem:[%s188 + $0x2870] sm:$0xff]
        %v1531 = vld [vmem:[%s188 + $0x2878] sm:$0xff]
        %v1532 = vld [vmem:[%s188 + $0x2880] sm:$0xff]
        %v1533 = vld [vmem:[%s188 + $0x2888] sm:$0xff]
        %v1534 = vld [vmem:[%s188 + $0x2890] sm:$0xff]
        %v1535 = vld [vmem:[%s188 + $0x2898] sm:$0xff]
        %v1536 = vld [vmem:[%s188 + $0x28a0] sm:$0xff]
        %v1537 = vld [vmem:[%s188 + $0x28a8] sm:$0xff]
        %v1538 = vld [vmem:[%s188 + $0x28b0] sm:$0xff]
        %v1539 = vld [vmem:[%s188 + $0x28b8] sm:$0xff]
        %v1540 = vld [vmem:[%s188 + $0x28c0] sm:$0xff]
        %v1541 = vld [vmem:[%s188 + $0x28c8] sm:$0xff]
        %v1542 = vld [vmem:[%s188 + $0x28d0] sm:$0xff]
        %v1543 = vld [vmem:[%s188 + $0x28d8] sm:$0xff]
        %v1544 = vld [vmem:[%s188 + $0x28e0] sm:$0xff]
        %v1545 = vld [vmem:[%s188 + $0x28e8] sm:$0xff]
        %v1546 = vld [vmem:[%s188 + $0x28f0] sm:$0xff]
        %v1547 = vld [vmem:[%s188 + $0x28f8] sm:$0xff]
        %v1548 = vld [vmem:[%s188 + $0x2900] sm:$0xff]
        %v1549 = vld [vmem:[%s188 + $0x2908] sm:$0xff]
        %v1550 = vld [vmem:[%s188 + $0x2910] sm:$0xff]
        %v1551 = vld [vmem:[%s188 + $0x2918] sm:$0xff]
        %v1552 = vld [vmem:[%s188 + $0x2920] sm:$0xff]
        %v1553 = vld [vmem:[%s188 + $0x2928] sm:$0xff]
        %v1554 = vld [vmem:[%s188 + $0x2930] sm:$0xff]
        %v1555 = vld [vmem:[%s188 + $0x2938] sm:$0xff]
        %v1556 = vld [vmem:[%s188 + $0x2940] sm:$0xff]
        %v1557 = vld [vmem:[%s188 + $0x2948] sm:$0xff]
        %v1558 = vld [vmem:[%s188 + $0x2950] sm:$0xff]
        %v1559 = vld [vmem:[%s188 + $0x2958] sm:$0xff]
        %v1560 = vld [vmem:[%s188 + $0x2960] sm:$0xff]
        %v1561 = vld [vmem:[%s188 + $0x2968] sm:$0xff]
        %v1562 = vld [vmem:[%s188 + $0x2970] sm:$0xff]
        %v1563 = vld [vmem:[%s188 + $0x2978] sm:$0xff]
        %v1564 = vld [vmem:[%s188 + $0x2980] sm:$0xff]
        %v1565 = vld [vmem:[%s188 + $0x2988] sm:$0xff]
        %v1566 = vld [vmem:[%s188 + $0x2990] sm:$0xff]
        %v1567 = vld [vmem:[%s188 + $0x2998] sm:$0xff]
        %v1568 = vld [vmem:[%s188 + $0x29a0] sm:$0xff]
        %v1569 = vld [vmem:[%s188 + $0x29a8] sm:$0xff]
        %v1570 = vld [vmem:[%s188 + $0x29b0] sm:$0xff]
        %v1571 = vld [vmem:[%s188 + $0x29b8] sm:$0xff]
        %v1572 = vld [vmem:[%s188 + $0x29c0] sm:$0xff]
        %v1573 = vld [vmem:[%s188 + $0x29c8] sm:$0xff]
        %v1574 = vld [vmem:[%s188 + $0x29d0] sm:$0xff]
        %v1575 = vld [vmem:[%s188 + $0x29d8] sm:$0xff]
        %v1576 = vld [vmem:[%s188 + $0x29e0] sm:$0xff]
        %v1577 = vld [vmem:[%s188 + $0x29e8] sm:$0xff]
        %v1578 = vld [vmem:[%s188 + $0x29f0] sm:$0xff]
        %v1579 = vld [vmem:[%s188 + $0x29f8] sm:$0xff]
        %v1580 = vld [vmem:[%s188 + $0x2a00] sm:$0xff]
        %v1581 = vld [vmem:[%s188 + $0x2a08] sm:$0xff]
        %v1582 = vld [vmem:[%s188 + $0x2a10] sm:$0xff]
        %v1583 = vld [vmem:[%s188 + $0x2a18] sm:$0xff]
        %v1584 = vld [vmem:[%s188 + $0x2a20] sm:$0xff]
        %v1585 = vld [vmem:[%s188 + $0x2a28] sm:$0xff]
        %v1586 = vld [vmem:[%s188 + $0x2a30] sm:$0xff]
        %v1587 = vld [vmem:[%s188 + $0x2a38] sm:$0xff]
        %v1588 = vld [vmem:[%s188 + $0x2a40] sm:$0xff]
        %v1589 = vld [vmem:[%s188 + $0x2a48] sm:$0xff]
        %v1590 = vld [vmem:[%s188 + $0x2a50] sm:$0xff]
        %v1591 = vld [vmem:[%s188 + $0x2a58] sm:$0xff]
        %v1592 = vld [vmem:[%s188 + $0x2a60] sm:$0xff]
        %v1593 = vld [vmem:[%s188 + $0x2a68] sm:$0xff]
        %v1594 = vld [vmem:[%s188 + $0x2a70] sm:$0xff]
        %v1595 = vld [vmem:[%s188 + $0x2a78] sm:$0xff]
        %v1596 = vld [vmem:[%s188 + $0x2a80] sm:$0xff]
        %v1597 = vld [vmem:[%s188 + $0x2a88] sm:$0xff]
        %v1598 = vld [vmem:[%s188 + $0x2a90] sm:$0xff]
        %v1599 = vld [vmem:[%s188 + $0x2a98] sm:$0xff]
        %v1600 = vld [vmem:[%s188 + $0x2aa0] sm:$0xff]
        %v1601 = vld [vmem:[%s188 + $0x2aa8] sm:$0xff]
        %v1602 = vld [vmem:[%s188 + $0x2ab0] sm:$0xff]
        %v1603 = vld [vmem:[%s188 + $0x2ab8] sm:$0xff]
        %v1604 = vld [vmem:[%s188 + $0x2ac0] sm:$0xff]
        %v1605 = vld [vmem:[%s188 + $0x2ac8] sm:$0xff]
        %v1606 = vld [vmem:[%s188 + $0x2ad0] sm:$0xff]
        %v1607 = vld [vmem:[%s188 + $0x2ad8] sm:$0xff]
        %v1608 = vld [vmem:[%s188 + $0x2ae0] sm:$0xff]
        %v1609 = vld [vmem:[%s188 + $0x2ae8] sm:$0xff]
        %v1610 = vld [vmem:[%s188 + $0x2af0] sm:$0xff]
        %v1611 = vld [vmem:[%s188 + $0x2af8] sm:$0xff]
        %v1612 = vld [vmem:[%s188 + $0x2b00] sm:$0xff]
        %v1613 = vld [vmem:[%s188 + $0x2b08] sm:$0xff]
        %v1614 = vld [vmem:[%s188 + $0x2b10] sm:$0xff]
        %v1615 = vld [vmem:[%s188 + $0x2b18] sm:$0xff]
        %v1616 = vld [vmem:[%s188 + $0x2b20] sm:$0xff]
        %v1617 = vld [vmem:[%s188 + $0x2b28] sm:$0xff]
        %v1618 = vld [vmem:[%s188 + $0x2b30] sm:$0xff]
        %v1619 = vld [vmem:[%s188 + $0x2b38] sm:$0xff]
        %v1620 = vld [vmem:[%s188 + $0x2b40] sm:$0xff]
        %v1621 = vld [vmem:[%s188 + $0x2b48] sm:$0xff]
        %v1622 = vld [vmem:[%s188 + $0x2b50] sm:$0xff]
        %v1623 = vld [vmem:[%s188 + $0x2b58] sm:$0xff]
        %v1624 = vld [vmem:[%s188 + $0x2b60] sm:$0xff]
        %v1625 = vld [vmem:[%s188 + $0x2b68] sm:$0xff]
        %v1626 = vld [vmem:[%s188 + $0x2b70] sm:$0xff]
        %v1627 = vld [vmem:[%s188 + $0x2b78] sm:$0xff]
        %v1628 = vld [vmem:[%s188 + $0x2b80] sm:$0xff]
        %v1629 = vld [vmem:[%s188 + $0x2b88] sm:$0xff]
        %v1630 = vld [vmem:[%s188 + $0x2b90] sm:$0xff]
        %v1631 = vld [vmem:[%s188 + $0x2b98] sm:$0xff]
        %v1632 = vld [vmem:[%s188 + $0x2ba0] sm:$0xff]
        %v1633 = vld [vmem:[%s188 + $0x2ba8] sm:$0xff]
        %v1634 = vld [vmem:[%s188 + $0x2bb0] sm:$0xff]
        %v1635 = vld [vmem:[%s188 + $0x2bb8] sm:$0xff]
        %v1636 = vld [vmem:[%s188 + $0x2bc0] sm:$0xff]
        %v1637 = vld [vmem:[%s188 + $0x2bc8] sm:$0xff]
        %v1638 = vld [vmem:[%s188 + $0x2bd0] sm:$0xff]
        %v1639 = vld [vmem:[%s188 + $0x2bd8] sm:$0xff]
        %v1640 = vld [vmem:[%s188 + $0x2be0] sm:$0xff]
        %v1641 = vld [vmem:[%s188 + $0x2be8] sm:$0xff]
        %v1642 = vld [vmem:[%s188 + $0x2bf0] sm:$0xff]
        %v1643 = vld [vmem:[%s188 + $0x2bf8] sm:$0xff]
        %v1644 = vld [vmem:[%s188 + $0x2c00] sm:$0xff]
        %v1645 = vld [vmem:[%s188 + $0x2c08] sm:$0xff]
        %v1646 = vld [vmem:[%s188 + $0x2c10] sm:$0xff]
        %v1647 = vld [vmem:[%s188 + $0x2c18] sm:$0xff]
        %v1648 = vld [vmem:[%s188 + $0x2c20] sm:$0xff]
        %v1649 = vld [vmem:[%s188 + $0x2c28] sm:$0xff]
        %v1650 = vld [vmem:[%s188 + $0x2c30] sm:$0xff]
        %v1651 = vld [vmem:[%s188 + $0x2c38] sm:$0xff]
        %v1652 = vld [vmem:[%s188 + $0x2c40] sm:$0xff]
        %v1653 = vld [vmem:[%s188 + $0x2c48] sm:$0xff]
        %v1654 = vld [vmem:[%s188 + $0x2c50] sm:$0xff]
        %v1655 = vld [vmem:[%s188 + $0x2c58] sm:$0xff]
        %v1656 = vld [vmem:[%s188 + $0x2c60] sm:$0xff]
        %v1657 = vld [vmem:[%s188 + $0x2c68] sm:$0xff]
        %v1658 = vld [vmem:[%s188 + $0x2c70] sm:$0xff]
        %v1659 = vld [vmem:[%s188 + $0x2c78] sm:$0xff]
        %v1660 = vld [vmem:[%s188 + $0x2c80] sm:$0xff]
        %v1661 = vld [vmem:[%s188 + $0x2c88] sm:$0xff]
        %v1662 = vld [vmem:[%s188 + $0x2c90] sm:$0xff]
        %v1663 = vld [vmem:[%s188 + $0x2c98] sm:$0xff]
        %v1664 = vld [vmem:[%s188 + $0x2ca0] sm:$0xff]
        %v1665 = vld [vmem:[%s188 + $0x2ca8] sm:$0xff]
        %v1666 = vld [vmem:[%s188 + $0x2cb0] sm:$0xff]
        %v1667 = vld [vmem:[%s188 + $0x2cb8] sm:$0xff]
        %v1668 = vld [vmem:[%s188 + $0x2cc0] sm:$0xff]
        %v1669 = vld [vmem:[%s188 + $0x2cc8] sm:$0xff]
        %v1670 = vld [vmem:[%s188 + $0x2cd0] sm:$0xff]
        %v1671 = vld [vmem:[%s188 + $0x2cd8] sm:$0xff]
        %v1672 = vld [vmem:[%s188 + $0x2ce0] sm:$0xff]
        %v1673 = vld [vmem:[%s188 + $0x2ce8] sm:$0xff]
        %v1674 = vld [vmem:[%s188 + $0x2cf0] sm:$0xff]
        %v1675 = vld [vmem:[%s188 + $0x2cf8] sm:$0xff]
        %v1676 = vld [vmem:[%s188 + $0x2d00] sm:$0xff]
        %v1677 = vld [vmem:[%s188 + $0x2d08] sm:$0xff]
        %v1678 = vld [vmem:[%s188 + $0x2d10] sm:$0xff]
        %v1679 = vld [vmem:[%s188 + $0x2d18] sm:$0xff]
        %v1680 = vld [vmem:[%s188 + $0x2d20] sm:$0xff]
        %v1681 = vld [vmem:[%s188 + $0x2d28] sm:$0xff]
        %v1682 = vld [vmem:[%s188 + $0x2d30] sm:$0xff]
        %v1683 = vld [vmem:[%s188 + $0x2d38] sm:$0xff]
        %v1684 = vld [vmem:[%s188 + $0x2d40] sm:$0xff]
        %v1685 = vld [vmem:[%s188 + $0x2d48] sm:$0xff]
        %v1686 = vld [vmem:[%s188 + $0x2d50] sm:$0xff]
        %v1687 = vld [vmem:[%s188 + $0x2d58] sm:$0xff]
        %v1688 = vld [vmem:[%s188 + $0x2d60] sm:$0xff]
        %v1689 = vld [vmem:[%s188 + $0x2d68] sm:$0xff]
        %v1690 = vld [vmem:[%s188 + $0x2d70] sm:$0xff]
        %v1691 = vld [vmem:[%s188 + $0x2d78] sm:$0xff]
        %v1692 = vld [vmem:[%s188 + $0x2d80] sm:$0xff]
        %v1693 = vld [vmem:[%s188 + $0x2d88] sm:$0xff]
        %v1694 = vld [vmem:[%s188 + $0x2d90] sm:$0xff]
        %v1695 = vld [vmem:[%s188 + $0x2d98] sm:$0xff]
        %v1696 = vld [vmem:[%s188 + $0x2da0] sm:$0xff]
        %v1697 = vld [vmem:[%s188 + $0x2da8] sm:$0xff]
        %v1698 = vld [vmem:[%s188 + $0x2db0] sm:$0xff]
        %v1699 = vld [vmem:[%s188 + $0x2db8] sm:$0xff]
        %v1700 = vld [vmem:[%s188 + $0x2dc0] sm:$0xff]
        %v1701 = vld [vmem:[%s188 + $0x2dc8] sm:$0xff]
        %v1702 = vld [vmem:[%s188 + $0x2dd0] sm:$0xff]
        %v1703 = vld [vmem:[%s188 + $0x2dd8] sm:$0xff]
        %v1704 = vld [vmem:[%s188 + $0x2de0] sm:$0xff]
        %v1705 = vld [vmem:[%s188 + $0x2de8] sm:$0xff]
        %v1706 = vld [vmem:[%s188 + $0x2df0] sm:$0xff]
        %v1707 = vld [vmem:[%s188 + $0x2df8] sm:$0xff]
        %v1708 = vld [vmem:[%s188 + $0x2e00] sm:$0xff]
        %v1709 = vld [vmem:[%s188 + $0x2e08] sm:$0xff]
        %v1710 = vld [vmem:[%s188 + $0x2e10] sm:$0xff]
        %v1711 = vld [vmem:[%s188 + $0x2e18] sm:$0xff]
        %v1712 = vld [vmem:[%s188 + $0x2e20] sm:$0xff]
        %v1713 = vld [vmem:[%s188 + $0x2e28] sm:$0xff]
        %v1714 = vld [vmem:[%s188 + $0x2e30] sm:$0xff]
        %v1715 = vld [vmem:[%s188 + $0x2e38] sm:$0xff]
        %v1716 = vld [vmem:[%s188 + $0x2e40] sm:$0xff]
        %v1717 = vld [vmem:[%s188 + $0x2e48] sm:$0xff]
        %v1718 = vld [vmem:[%s188 + $0x2e50] sm:$0xff]
        %v1719 = vld [vmem:[%s188 + $0x2e58] sm:$0xff]
        %v1720 = vld [vmem:[%s188 + $0x2e60] sm:$0xff]
        %v1721 = vld [vmem:[%s188 + $0x2e68] sm:$0xff]
        %v1722 = vld [vmem:[%s188 + $0x2e70] sm:$0xff]
        %v1723 = vld [vmem:[%s188 + $0x2e78] sm:$0xff]
        %v1724 = vld [vmem:[%s188 + $0x2e80] sm:$0xff]
        %v1725 = vld [vmem:[%s188 + $0x2e88] sm:$0xff]
        %v1726 = vld [vmem:[%s188 + $0x2e90] sm:$0xff]
        %v1727 = vld [vmem:[%s188 + $0x2e98] sm:$0xff]
        %v1728 = vld [vmem:[%s188 + $0x2ea0] sm:$0xff]
        %v1729 = vld [vmem:[%s188 + $0x2ea8] sm:$0xff]
        %v1730 = vld [vmem:[%s188 + $0x2eb0] sm:$0xff]
        %v1731 = vld [vmem:[%s188 + $0x2eb8] sm:$0xff]
        %v1732 = vld [vmem:[%s188 + $0x2ec0] sm:$0xff]
        %v1733 = vld [vmem:[%s188 + $0x2ec8] sm:$0xff]
        %v1734 = vld [vmem:[%s188 + $0x2ed0] sm:$0xff]
        %v1735 = vld [vmem:[%s188 + $0x2ed8] sm:$0xff]
        %v1736 = vld [vmem:[%s188 + $0x2ee0] sm:$0xff]
        %v1737 = vld [vmem:[%s188 + $0x2ee8] sm:$0xff]
        %v1738 = vld [vmem:[%s188 + $0x2ef0] sm:$0xff]
        %v1739 = vld [vmem:[%s188 + $0x2ef8] sm:$0xff]
        %v1740 = vld [vmem:[%s188 + $0x2f00] sm:$0xff]
        %v1741 = vld [vmem:[%s188 + $0x2f08] sm:$0xff]
        %v1742 = vld [vmem:[%s188 + $0x2f10] sm:$0xff]
        %v1743 = vld [vmem:[%s188 + $0x2f18] sm:$0xff]
        %v1744 = vld [vmem:[%s188 + $0x2f20] sm:$0xff]
        %v1745 = vld [vmem:[%s188 + $0x2f28] sm:$0xff]
        %v1746 = vld [vmem:[%s188 + $0x2f30] sm:$0xff]
        %v1747 = vld [vmem:[%s188 + $0x2f38] sm:$0xff]
        %v1748 = vld [vmem:[%s188 + $0x2f40] sm:$0xff]
        %v1749 = vld [vmem:[%s188 + $0x2f48] sm:$0xff]
        %v1750 = vld [vmem:[%s188 + $0x2f50] sm:$0xff]
        %v1751 = vld [vmem:[%s188 + $0x2f58] sm:$0xff]
        %v1752 = vld [vmem:[%s188 + $0x2f60] sm:$0xff]
        %v1753 = vld [vmem:[%s188 + $0x2f68] sm:$0xff]
        %v1754 = vld [vmem:[%s188 + $0x2f70] sm:$0xff]
        %v1755 = vld [vmem:[%s188 + $0x2f78] sm:$0xff]
        %v1756 = vld [vmem:[%s188 + $0x2f80] sm:$0xff]
        %v1757 = vld [vmem:[%s188 + $0x2f88] sm:$0xff]
        %v1758 = vld [vmem:[%s188 + $0x2f90] sm:$0xff]
        %v1759 = vld [vmem:[%s188 + $0x2f98] sm:$0xff]
        %v1760 = vld [vmem:[%s188 + $0x2fa0] sm:$0xff]
        %v1761 = vld [vmem:[%s188 + $0x2fa8] sm:$0xff]
        %v1762 = vld [vmem:[%s188 + $0x2fb0] sm:$0xff]
        %v1763 = vld [vmem:[%s188 + $0x2fb8] sm:$0xff]
        %v1764 = vld [vmem:[%s188 + $0x2fc0] sm:$0xff]
        %v1765 = vld [vmem:[%s188 + $0x2fc8] sm:$0xff]
        %v1766 = vld [vmem:[%s188 + $0x2fd0] sm:$0xff]
        %v1767 = vld [vmem:[%s188 + $0x2fd8] sm:$0xff]
        %v1768 = vld [vmem:[%s188 + $0x2fe0] sm:$0xff]
        %v1769 = vld [vmem:[%s188 + $0x2fe8] sm:$0xff]
        %v1770 = vld [vmem:[%s188 + $0x2ff0] sm:$0xff]
        %v1771 = vld [vmem:[%s188 + $0x2ff8] sm:$0xff]
        %v1772 = vld [vmem:[%s188 + $0x3000] sm:$0xff]
        %v1773 = vld [vmem:[%s188 + $0x3008] sm:$0xff]
        %v1774 = vld [vmem:[%s188 + $0x3010] sm:$0xff]
        %v1775 = vld [vmem:[%s188 + $0x3018] sm:$0xff]
        %v1776 = vld [vmem:[%s188 + $0x3020] sm:$0xff]
        %v1777 = vld [vmem:[%s188 + $0x3028] sm:$0xff]
        %v1778 = vld [vmem:[%s188 + $0x3030] sm:$0xff]
        %v1779 = vld [vmem:[%s188 + $0x3038] sm:$0xff]
        %v1780 = vld [vmem:[%s188 + $0x3040] sm:$0xff]
        %v1781 = vld [vmem:[%s188 + $0x3048] sm:$0xff]
        %v1782 = vld [vmem:[%s188 + $0x3050] sm:$0xff]
        %v1783 = vld [vmem:[%s188 + $0x3058] sm:$0xff]
        %v1784 = vld [vmem:[%s188 + $0x3060] sm:$0xff]
        %v1785 = vld [vmem:[%s188 + $0x3068] sm:$0xff]
        %v1786 = vld [vmem:[%s188 + $0x3070] sm:$0xff]
        %v1787 = vld [vmem:[%s188 + $0x3078] sm:$0xff]
        %v1788 = vld [vmem:[%s188 + $0x3080] sm:$0xff]
        %v1789 = vld [vmem:[%s188 + $0x3088] sm:$0xff]
        %v1790 = vld [vmem:[%s188 + $0x3090] sm:$0xff]
        %v1791 = vld [vmem:[%s188 + $0x3098] sm:$0xff]
        %v1792 = vld [vmem:[%s188 + $0x30a0] sm:$0xff]
        %v1793 = vld [vmem:[%s188 + $0x30a8] sm:$0xff]
        %v1794 = vld [vmem:[%s188 + $0x30b0] sm:$0xff]
        %v1795 = vld [vmem:[%s188 + $0x30b8] sm:$0xff]
        %v1796 = vld [vmem:[%s188 + $0x30c0] sm:$0xff]
        %v1797 = vld [vmem:[%s188 + $0x30c8] sm:$0xff]
        %v1798 = vld [vmem:[%s188 + $0x30d0] sm:$0xff]
        %v1799 = vld [vmem:[%s188 + $0x30d8] sm:$0xff]
        %v1800 = vld [vmem:[%s188 + $0x30e0] sm:$0xff]
        %v1801 = vld [vmem:[%s188 + $0x30e8] sm:$0xff]
        %v1802 = vld [vmem:[%s188 + $0x30f0] sm:$0xff]
        %v1803 = vld [vmem:[%s188 + $0x30f8] sm:$0xff]
        %v1804 = vld [vmem:[%s188 + $0x3100] sm:$0xff]
        %v1805 = vld [vmem:[%s188 + $0x3108] sm:$0xff]
        %v1806 = vld [vmem:[%s188 + $0x3110] sm:$0xff]
        %v1807 = vld [vmem:[%s188 + $0x3118] sm:$0xff]
        %v1808 = vld [vmem:[%s188 + $0x3120] sm:$0xff]
        %v1809 = vld [vmem:[%s188 + $0x3128] sm:$0xff]
        %v1810 = vld [vmem:[%s188 + $0x3130] sm:$0xff]
        %v1811 = vld [vmem:[%s188 + $0x3138] sm:$0xff]
        %v1812 = vld [vmem:[%s188 + $0x3140] sm:$0xff]
        %v1813 = vld [vmem:[%s188 + $0x3148] sm:$0xff]
        %v1814 = vld [vmem:[%s188 + $0x3150] sm:$0xff]
        %v1815 = vld [vmem:[%s188 + $0x3158] sm:$0xff]
        %v1816 = vld [vmem:[%s188 + $0x3160] sm:$0xff]
        %v1817 = vld [vmem:[%s188 + $0x3168] sm:$0xff]
        %v1818 = vld [vmem:[%s188 + $0x3170] sm:$0xff]
        %v1819 = vld [vmem:[%s188 + $0x3178] sm:$0xff]
        %v1820 = vld [vmem:[%s188 + $0x3180] sm:$0xff]
        %v1821 = vld [vmem:[%s188 + $0x3188] sm:$0xff]
        %v1822 = vld [vmem:[%s188 + $0x3190] sm:$0xff]
        %v1823 = vld [vmem:[%s188 + $0x3198] sm:$0xff]
        %v1824 = vld [vmem:[%s188 + $0x31a0] sm:$0xff]
        %v1825 = vld [vmem:[%s188 + $0x31a8] sm:$0xff]
        %v1826 = vld [vmem:[%s188 + $0x31b0] sm:$0xff]
        %v1827 = vld [vmem:[%s188 + $0x31b8] sm:$0xff]
        %v1828 = vld [vmem:[%s188 + $0x31c0] sm:$0xff]
        %v1829 = vld [vmem:[%s188 + $0x31c8] sm:$0xff]
        %v1830 = vld [vmem:[%s188 + $0x31d0] sm:$0xff]
        %v1831 = vld [vmem:[%s188 + $0x31d8] sm:$0xff]
        %v1832 = vld [vmem:[%s188 + $0x31e0] sm:$0xff]
        %v1833 = vld [vmem:[%s188 + $0x31e8] sm:$0xff]
        %v1834 = vld [vmem:[%s188 + $0x31f0] sm:$0xff]
        %v1835 = vld [vmem:[%s188 + $0x31f8] sm:$0xff]
        %v1836 = vld [vmem:[%s188 + $0x3200] sm:$0xff]
        %v1837 = vld [vmem:[%s188 + $0x3208] sm:$0xff]
        %v1838 = vld [vmem:[%s188 + $0x3210] sm:$0xff]
        %v1839 = vld [vmem:[%s188 + $0x3218] sm:$0xff]
        %v1840 = vld [vmem:[%s188 + $0x3220] sm:$0xff]
        %v1841 = vld [vmem:[%s188 + $0x3228] sm:$0xff]
        %v1842 = vld [vmem:[%s188 + $0x3230] sm:$0xff]
        %v1843 = vld [vmem:[%s188 + $0x3238] sm:$0xff]
        %v1844 = vld [vmem:[%s188 + $0x3240] sm:$0xff]
        %v1845 = vld [vmem:[%s188 + $0x3248] sm:$0xff]
        %v1846 = vld [vmem:[%s188 + $0x3250] sm:$0xff]
        %v1847 = vld [vmem:[%s188 + $0x3258] sm:$0xff]
        %v1848 = vld [vmem:[%s188 + $0x3260] sm:$0xff]
        %v1849 = vld [vmem:[%s188 + $0x3268] sm:$0xff]
        %v1850 = vld [vmem:[%s188 + $0x3270] sm:$0xff]
        %v1851 = vld [vmem:[%s188 + $0x3278] sm:$0xff]
        %v1852 = vld [vmem:[%s188 + $0x3280] sm:$0xff]
        %v1853 = vld [vmem:[%s188 + $0x3288] sm:$0xff]
        %v1854 = vld [vmem:[%s188 + $0x3290] sm:$0xff]
        %v1855 = vld [vmem:[%s188 + $0x3298] sm:$0xff]
        %v1856 = vld [vmem:[%s188 + $0x32a0] sm:$0xff]
        %v1857 = vld [vmem:[%s188 + $0x32a8] sm:$0xff]
        %v1858 = vld [vmem:[%s188 + $0x32b0] sm:$0xff]
        %v1859 = vld [vmem:[%s188 + $0x32b8] sm:$0xff]
        %v1860 = vld [vmem:[%s188 + $0x32c0] sm:$0xff]
        %v1861 = vld [vmem:[%s188 + $0x32c8] sm:$0xff]
        %v1862 = vld [vmem:[%s188 + $0x32d0] sm:$0xff]
        %v1863 = vld [vmem:[%s188 + $0x32d8] sm:$0xff]
        %v1864 = vld [vmem:[%s188 + $0x32e0] sm:$0xff]
        %v1865 = vld [vmem:[%s188 + $0x32e8] sm:$0xff]
        %v1866 = vld [vmem:[%s188 + $0x32f0] sm:$0xff]
        %v1867 = vld [vmem:[%s188 + $0x32f8] sm:$0xff]
        %v1868 = vld [vmem:[%s188 + $0x3300] sm:$0xff]
        %v1869 = vld [vmem:[%s188 + $0x3308] sm:$0xff]
        %v1870 = vld [vmem:[%s188 + $0x3310] sm:$0xff]
        %v1871 = vld [vmem:[%s188 + $0x3318] sm:$0xff]
        %v1872 = vld [vmem:[%s188 + $0x3320] sm:$0xff]
        %v1873 = vld [vmem:[%s188 + $0x3328] sm:$0xff]
        %v1874 = vld [vmem:[%s188 + $0x3330] sm:$0xff]
        %v1875 = vld [vmem:[%s188 + $0x3338] sm:$0xff]
        %v1876 = vld [vmem:[%s188 + $0x3340] sm:$0xff]
        %v1877 = vld [vmem:[%s188 + $0x3348] sm:$0xff]
        %v1878 = vld [vmem:[%s188 + $0x3350] sm:$0xff]
        %v1879 = vld [vmem:[%s188 + $0x3358] sm:$0xff]
        %v1880 = vld [vmem:[%s188 + $0x3360] sm:$0xff]
        %v1881 = vld [vmem:[%s188 + $0x3368] sm:$0xff]
        %v1882 = vld [vmem:[%s188 + $0x3370] sm:$0xff]
        %v1883 = vld [vmem:[%s188 + $0x3378] sm:$0xff]
        %v1884 = vld [vmem:[%s188 + $0x3380] sm:$0xff]
        %v1885 = vld [vmem:[%s188 + $0x3388] sm:$0xff]
        %v1886 = vld [vmem:[%s188 + $0x3390] sm:$0xff]
        %v1887 = vld [vmem:[%s188 + $0x3398] sm:$0xff]
        %v1888 = vld [vmem:[%s188 + $0x33a0] sm:$0xff]
        %v1889 = vld [vmem:[%s188 + $0x33a8] sm:$0xff]
        %v1890 = vld [vmem:[%s188 + $0x33b0] sm:$0xff]
        %v1891 = vld [vmem:[%s188 + $0x33b8] sm:$0xff]
        %v1892 = vld [vmem:[%s188 + $0x33c0] sm:$0xff]
        %v1893 = vld [vmem:[%s188 + $0x33c8] sm:$0xff]
        %v1894 = vld [vmem:[%s188 + $0x33d0] sm:$0xff]
        %v1895 = vld [vmem:[%s188 + $0x33d8] sm:$0xff]
        %v1896 = vld [vmem:[%s188 + $0x33e0] sm:$0xff]
        %v1897 = vld [vmem:[%s188 + $0x33e8] sm:$0xff]
        %v1898 = vld [vmem:[%s188 + $0x33f0] sm:$0xff]
        %v1899 = vld [vmem:[%s188 + $0x33f8] sm:$0xff]
        %v1900 = vld [vmem:[%s188 + $0x3400] sm:$0xff]
        %v1901 = vld [vmem:[%s188 + $0x3408] sm:$0xff]
        %v1902 = vld [vmem:[%s188 + $0x3410] sm:$0xff]
        %v1903 = vld [vmem:[%s188 + $0x3418] sm:$0xff]
        %v1904 = vld [vmem:[%s188 + $0x3420] sm:$0xff]
        %v1905 = vld [vmem:[%s188 + $0x3428] sm:$0xff]
        %v1906 = vld [vmem:[%s188 + $0x3430] sm:$0xff]
        %v1907 = vld [vmem:[%s188 + $0x3438] sm:$0xff]
        %v1908 = vld [vmem:[%s188 + $0x3440] sm:$0xff]
        %v1909 = vld [vmem:[%s188 + $0x3448] sm:$0xff]
        %v1910 = vld [vmem:[%s188 + $0x3450] sm:$0xff]
        %v1911 = vld [vmem:[%s188 + $0x3458] sm:$0xff]
        %v1912 = vld [vmem:[%s188 + $0x3460] sm:$0xff]
        %v1913 = vld [vmem:[%s188 + $0x3468] sm:$0xff]
        %v1914 = vld [vmem:[%s188 + $0x3470] sm:$0xff]
        %v1915 = vld [vmem:[%s188 + $0x3478] sm:$0xff]
        %v1916 = vld [vmem:[%s188 + $0x3480] sm:$0xff]
        %v1917 = vld [vmem:[%s188 + $0x3488] sm:$0xff]
        %v1918 = vld [vmem:[%s188 + $0x3490] sm:$0xff]
        %v1919 = vld [vmem:[%s188 + $0x3498] sm:$0xff]
        %v1920 = vld [vmem:[%s188 + $0x34a0] sm:$0xff]
        %v1921 = vld [vmem:[%s188 + $0x34a8] sm:$0xff]
        %v1922 = vld [vmem:[%s188 + $0x34b0] sm:$0xff]
        %v1923 = vld [vmem:[%s188 + $0x34b8] sm:$0xff]
        %v1924 = vld [vmem:[%s188 + $0x34c0] sm:$0xff]
        %v1925 = vld [vmem:[%s188 + $0x34c8] sm:$0xff]
        %v1926 = vld [vmem:[%s188 + $0x34d0] sm:$0xff]
        %v1927 = vld [vmem:[%s188 + $0x34d8] sm:$0xff]
        %v1928 = vld [vmem:[%s188 + $0x34e0] sm:$0xff]
        %v1929 = vld [vmem:[%s188 + $0x34e8] sm:$0xff]
        %v1930 = vld [vmem:[%s188 + $0x34f0] sm:$0xff]
        %v1931 = vld [vmem:[%s188 + $0x34f8] sm:$0xff]
        %v1932 = vld [vmem:[%s188 + $0x3500] sm:$0xff]
        %v1933 = vld [vmem:[%s188 + $0x3508] sm:$0xff]
        %v1934 = vld [vmem:[%s188 + $0x3510] sm:$0xff]
        %v1935 = vld [vmem:[%s188 + $0x3518] sm:$0xff]
        %v1936 = vld [vmem:[%s188 + $0x3520] sm:$0xff]
        %v1937 = vld [vmem:[%s188 + $0x3528] sm:$0xff]
        %v1938 = vld [vmem:[%s188 + $0x3530] sm:$0xff]
        %v1939 = vld [vmem:[%s188 + $0x3538] sm:$0xff]
        %v1940 = vld [vmem:[%s188 + $0x3540] sm:$0xff]
        %v1941 = vld [vmem:[%s188 + $0x3548] sm:$0xff]
        %v1942 = vld [vmem:[%s188 + $0x3550] sm:$0xff]
        %v1943 = vld [vmem:[%s188 + $0x3558] sm:$0xff]
        %v1944 = vld [vmem:[%s188 + $0x3560] sm:$0xff]
        %v1945 = vld [vmem:[%s188 + $0x3568] sm:$0xff]
        %v1946 = vld [vmem:[%s188 + $0x3570] sm:$0xff]
        %v1947 = vld [vmem:[%s188 + $0x3578] sm:$0xff]
        %v1948 = vld [vmem:[%s188 + $0x3580] sm:$0xff]
        %v1949 = vld [vmem:[%s188 + $0x3588] sm:$0xff]
        %v1950 = vld [vmem:[%s188 + $0x3590] sm:$0xff]
        %v1951 = vld [vmem:[%s188 + $0x3598] sm:$0xff]
        %v1952 = vld [vmem:[%s188 + $0x35a0] sm:$0xff]
        %v1953 = vld [vmem:[%s188 + $0x35a8] sm:$0xff]
        %v1954 = vld [vmem:[%s188 + $0x35b0] sm:$0xff]
        %v1955 = vld [vmem:[%s188 + $0x35b8] sm:$0xff]
        %v1956 = vld [vmem:[%s188 + $0x35c0] sm:$0xff]
        %v1957 = vld [vmem:[%s188 + $0x35c8] sm:$0xff]
        %v1958 = vld [vmem:[%s188 + $0x35d0] sm:$0xff]
        %v1959 = vld [vmem:[%s188 + $0x35d8] sm:$0xff]
        %v1960 = vld [vmem:[%s188 + $0x35e0] sm:$0xff]
        %v1961 = vld [vmem:[%s188 + $0x35e8] sm:$0xff]
        %v1962 = vld [vmem:[%s188 + $0x35f0] sm:$0xff]
        %v1963 = vld [vmem:[%s188 + $0x35f8] sm:$0xff]
        %v1964 = vld [vmem:[%s188 + $0x3600] sm:$0xff]
        %v1965 = vld [vmem:[%s188 + $0x3608] sm:$0xff]
        %v1966 = vld [vmem:[%s188 + $0x3610] sm:$0xff]
        %v1967 = vld [vmem:[%s188 + $0x3618] sm:$0xff]
        %v1968 = vld [vmem:[%s188 + $0x3620] sm:$0xff]
        %v1969 = vld [vmem:[%s188 + $0x3628] sm:$0xff]
        %v1970 = vld [vmem:[%s188 + $0x3630] sm:$0xff]
        %v1971 = vld [vmem:[%s188 + $0x3638] sm:$0xff]
        %v1972 = vld [vmem:[%s188 + $0x3640] sm:$0xff]
        %v1973 = vld [vmem:[%s188 + $0x3648] sm:$0xff]
        %v1974 = vld [vmem:[%s188 + $0x3650] sm:$0xff]
        %v1975 = vld [vmem:[%s188 + $0x3658] sm:$0xff]
        %v1976 = vld [vmem:[%s188 + $0x3660] sm:$0xff]
        %v1977 = vld [vmem:[%s188 + $0x3668] sm:$0xff]
        %v1978 = vld [vmem:[%s188 + $0x3670] sm:$0xff]
        %v1979 = vld [vmem:[%s188 + $0x3678] sm:$0xff]
        %v1980 = vld [vmem:[%s188 + $0x3680] sm:$0xff]
        %v1981 = vld [vmem:[%s188 + $0x3688] sm:$0xff]
        %v1982 = vld [vmem:[%s188 + $0x3690] sm:$0xff]
        %v1983 = vld [vmem:[%s188 + $0x3698] sm:$0xff]
        %v1984 = vld [vmem:[%s188 + $0x36a0] sm:$0xff]
        %v1985 = vld [vmem:[%s188 + $0x36a8] sm:$0xff]
        %v1986 = vld [vmem:[%s188 + $0x36b0] sm:$0xff]
        %v1987 = vld [vmem:[%s188 + $0x36b8] sm:$0xff]
        %v1988 = vld [vmem:[%s188 + $0x36c0] sm:$0xff]
        %v1989 = vld [vmem:[%s188 + $0x36c8] sm:$0xff]
        %v1990 = vld [vmem:[%s188 + $0x36d0] sm:$0xff]
        %v1991 = vld [vmem:[%s188 + $0x36d8] sm:$0xff]
        %v1992 = vld [vmem:[%s188 + $0x36e0] sm:$0xff]
        %v1993 = vld [vmem:[%s188 + $0x36e8] sm:$0xff]
        %v1994 = vld [vmem:[%s188 + $0x36f0] sm:$0xff]
        %v1995 = vld [vmem:[%s188 + $0x36f8] sm:$0xff]
        %v1996 = vld [vmem:[%s188 + $0x3700] sm:$0xff]
        %v1997 = vld [vmem:[%s188 + $0x3708] sm:$0xff]
        %v1998 = vld [vmem:[%s188 + $0x3710] sm:$0xff]
        %v1999 = vld [vmem:[%s188 + $0x3718] sm:$0xff]
        %v2000 = vld [vmem:[%s188 + $0x3720] sm:$0xff]
        %v2001 = vld [vmem:[%s188 + $0x3728] sm:$0xff]
        %v2002 = vld [vmem:[%s188 + $0x3730] sm:$0xff]
        %v2003 = vld [vmem:[%s188 + $0x3738] sm:$0xff]
        %v2004 = vld [vmem:[%s188 + $0x3740] sm:$0xff]
        %v2005 = vld [vmem:[%s188 + $0x3748] sm:$0xff]
        %v2006 = vld [vmem:[%s188 + $0x3750] sm:$0xff]
        %v2007 = vld [vmem:[%s188 + $0x3758] sm:$0xff]
        %v2008 = vld [vmem:[%s188 + $0x3760] sm:$0xff]
        %v2009 = vld [vmem:[%s188 + $0x3768] sm:$0xff]
        %v2010 = vld [vmem:[%s188 + $0x3770] sm:$0xff]
        %v2011 = vld [vmem:[%s188 + $0x3778] sm:$0xff]
        %v2012 = vld [vmem:[%s188 + $0x3780] sm:$0xff]
        %v2013 = vld [vmem:[%s188 + $0x3788] sm:$0xff]
        %v2014 = vld [vmem:[%s188 + $0x3790] sm:$0xff]
        %v2015 = vld [vmem:[%s188 + $0x3798] sm:$0xff]
        %v2016 = vld [vmem:[%s188 + $0x37a0] sm:$0xff]
        %v2017 = vld [vmem:[%s188 + $0x37a8] sm:$0xff]
        %v2018 = vld [vmem:[%s188 + $0x37b0] sm:$0xff]
        %v2019 = vld [vmem:[%s188 + $0x37b8] sm:$0xff]
        %v2020 = vld [vmem:[%s188 + $0x37c0] sm:$0xff]
        %v2021 = vld [vmem:[%s188 + $0x37c8] sm:$0xff]
        %v2022 = vld [vmem:[%s188 + $0x37d0] sm:$0xff]
        %v2023 = vld [vmem:[%s188 + $0x37d8] sm:$0xff]
        %v2024 = vld [vmem:[%s188 + $0x37e0] sm:$0xff]
        %v2025 = vld [vmem:[%s188 + $0x37e8] sm:$0xff]
        %v2026 = vld [vmem:[%s188 + $0x37f0] sm:$0xff]
        %v2027 = vld [vmem:[%s188 + $0x37f8] sm:$0xff]
        %v2028 = vld [vmem:[%s188 + $0x3800] sm:$0xff]
        %v2029 = vld [vmem:[%s188 + $0x3808] sm:$0xff]
        %v2030 = vld [vmem:[%s188 + $0x3810] sm:$0xff]
        %v2031 = vld [vmem:[%s188 + $0x3818] sm:$0xff]
        %v2032 = vld [vmem:[%s188 + $0x3820] sm:$0xff]
        %v2033 = vld [vmem:[%s188 + $0x3828] sm:$0xff]
        %v2034 = vld [vmem:[%s188 + $0x3830] sm:$0xff]
        %v2035 = vld [vmem:[%s188 + $0x3838] sm:$0xff]
        %v2036 = vld [vmem:[%s188 + $0x3840] sm:$0xff]
        %v2037 = vld [vmem:[%s188 + $0x3848] sm:$0xff]
        %v2038 = vld [vmem:[%s188 + $0x3850] sm:$0xff]
        %v2039 = vld [vmem:[%s188 + $0x3858] sm:$0xff]
        %v2040 = vld [vmem:[%s188 + $0x3860] sm:$0xff]
        %v2041 = vld [vmem:[%s188 + $0x3868] sm:$0xff]
        %v2042 = vld [vmem:[%s188 + $0x3870] sm:$0xff]
        %v2043 = vld [vmem:[%s188 + $0x3878] sm:$0xff]
        %v2044 = vld [vmem:[%s188 + $0x3880] sm:$0xff]
        %v2045 = vld [vmem:[%s188 + $0x3888] sm:$0xff]
        %v2046 = vld [vmem:[%s188 + $0x3890] sm:$0xff]
        %v2047 = vld [vmem:[%s188 + $0x3898] sm:$0xff]
        %v2048 = vld [vmem:[%s188 + $0x38a0] sm:$0xff]
        %v2049 = vld [vmem:[%s188 + $0x38a8] sm:$0xff]
        %v2050 = vld [vmem:[%s188 + $0x38b0] sm:$0xff]
        %v2051 = vld [vmem:[%s188 + $0x38b8] sm:$0xff]
        %v2052 = vld [vmem:[%s188 + $0x38c0] sm:$0xff]
        %v2053 = vld [vmem:[%s188 + $0x38c8] sm:$0xff]
        %v2054 = vld [vmem:[%s188 + $0x38d0] sm:$0xff]
        %v2055 = vld [vmem:[%s188 + $0x38d8] sm:$0xff]
        %v2056 = vld [vmem:[%s188 + $0x38e0] sm:$0xff]
        %v2057 = vld [vmem:[%s188 + $0x38e8] sm:$0xff]
        %v2058 = vld [vmem:[%s188 + $0x38f0] sm:$0xff]
        %v2059 = vld [vmem:[%s188 + $0x38f8] sm:$0xff]
        %v2060 = vld [vmem:[%s188 + $0x3900] sm:$0xff]
        %v2061 = vld [vmem:[%s188 + $0x3908] sm:$0xff]
        %v2062 = vld [vmem:[%s188 + $0x3910] sm:$0xff]
        %v2063 = vld [vmem:[%s188 + $0x3918] sm:$0xff]
        %v2064 = vld [vmem:[%s188 + $0x3920] sm:$0xff]
        %v2065 = vld [vmem:[%s188 + $0x3928] sm:$0xff]
        %v2066 = vld [vmem:[%s188 + $0x3930] sm:$0xff]
        %v2067 = vld [vmem:[%s188 + $0x3938] sm:$0xff]
        %v2068 = vld [vmem:[%s188 + $0x3940] sm:$0xff]
        %v2069 = vld [vmem:[%s188 + $0x3948] sm:$0xff]
        %v2070 = vld [vmem:[%s188 + $0x3950] sm:$0xff]
        %v2071 = vld [vmem:[%s188 + $0x3958] sm:$0xff]
        %v2072 = vld [vmem:[%s188 + $0x3960] sm:$0xff]
        %v2073 = vld [vmem:[%s188 + $0x3968] sm:$0xff]
        %v2074 = vld [vmem:[%s188 + $0x3970] sm:$0xff]
        %v2075 = vld [vmem:[%s188 + $0x3978] sm:$0xff]
        %v2076 = vld [vmem:[%s188 + $0x3980] sm:$0xff]
        %v2077 = vld [vmem:[%s188 + $0x3988] sm:$0xff]
        %v2078 = vld [vmem:[%s188 + $0x3990] sm:$0xff]
        %v2079 = vld [vmem:[%s188 + $0x3998] sm:$0xff]
        %v2080 = vld [vmem:[%s188 + $0x39a0] sm:$0xff]
        %v2081 = vld [vmem:[%s188 + $0x39a8] sm:$0xff]
        %v2082 = vld [vmem:[%s188 + $0x39b0] sm:$0xff]
        %v2083 = vld [vmem:[%s188 + $0x39b8] sm:$0xff]
        %v2084 = vld [vmem:[%s188 + $0x39c0] sm:$0xff]
        %v2085 = vld [vmem:[%s188 + $0x39c8] sm:$0xff]
        %v2086 = vld [vmem:[%s188 + $0x39d0] sm:$0xff]
        %v2087 = vld [vmem:[%s188 + $0x39d8] sm:$0xff]
        %v2088 = vld [vmem:[%s188 + $0x39e0] sm:$0xff]
        %v2089 = vld [vmem:[%s188 + $0x39e8] sm:$0xff]
        %v2090 = vld [vmem:[%s188 + $0x39f0] sm:$0xff]
        %v2091 = vld [vmem:[%s188 + $0x39f8] sm:$0xff]
        %v2092 = vld [vmem:[%s188 + $0x3a00] sm:$0xff]
        %v2093 = vld [vmem:[%s188 + $0x3a08] sm:$0xff]
        %v2094 = vld [vmem:[%s188 + $0x3a10] sm:$0xff]
        %v2095 = vld [vmem:[%s188 + $0x3a18] sm:$0xff]
        %v2096 = vld [vmem:[%s188 + $0x3a20] sm:$0xff]
        %v2097 = vld [vmem:[%s188 + $0x3a28] sm:$0xff]
        %v2098 = vld [vmem:[%s188 + $0x3a30] sm:$0xff]
        %v2099 = vld [vmem:[%s188 + $0x3a38] sm:$0xff]
        %v2100 = vld [vmem:[%s188 + $0x3a40] sm:$0xff]
        %v2101 = vld [vmem:[%s188 + $0x3a48] sm:$0xff]
        %v2102 = vld [vmem:[%s188 + $0x3a50] sm:$0xff]
        %v2103 = vld [vmem:[%s188 + $0x3a58] sm:$0xff]
        %v2104 = vld [vmem:[%s188 + $0x3a60] sm:$0xff]
        %v2105 = vld [vmem:[%s188 + $0x3a68] sm:$0xff]
        %v2106 = vld [vmem:[%s188 + $0x3a70] sm:$0xff]
        %v2107 = vld [vmem:[%s188 + $0x3a78] sm:$0xff]
        %v2108 = vld [vmem:[%s188 + $0x3a80] sm:$0xff]
        %v2109 = vld [vmem:[%s188 + $0x3a88] sm:$0xff]
        %v2110 = vld [vmem:[%s188 + $0x3a90] sm:$0xff]
        %v2111 = vld [vmem:[%s188 + $0x3a98] sm:$0xff]
        %v2112 = vld [vmem:[%s188 + $0x3aa0] sm:$0xff]
        %v2113 = vld [vmem:[%s188 + $0x3aa8] sm:$0xff]
        %v2114 = vld [vmem:[%s188 + $0x3ab0] sm:$0xff]
        %v2115 = vld [vmem:[%s188 + $0x3ab8] sm:$0xff]
        %v2116 = vld [vmem:[%s188 + $0x3ac0] sm:$0xff]
        %v2117 = vld [vmem:[%s188 + $0x3ac8] sm:$0xff]
        %v2118 = vld [vmem:[%s188 + $0x3ad0] sm:$0xff]
        %v2119 = vld [vmem:[%s188 + $0x3ad8] sm:$0xff]
        %v2120 = vld [vmem:[%s188 + $0x3ae0] sm:$0xff]
        %v2121 = vld [vmem:[%s188 + $0x3ae8] sm:$0xff]
        %v2122 = vld [vmem:[%s188 + $0x3af0] sm:$0xff]
        %v2123 = vld [vmem:[%s188 + $0x3af8] sm:$0xff]
        %v2124 = vld [vmem:[%s188 + $0x3b00] sm:$0xff]
        %v2125 = vld [vmem:[%s188 + $0x3b08] sm:$0xff]
        %v2126 = vld [vmem:[%s188 + $0x3b10] sm:$0xff]
        %v2127 = vld [vmem:[%s188 + $0x3b18] sm:$0xff]
        %v2128 = vld [vmem:[%s188 + $0x3b20] sm:$0xff]
        %v2129 = vld [vmem:[%s188 + $0x3b28] sm:$0xff]
        %v2130 = vld [vmem:[%s188 + $0x3b30] sm:$0xff]
        %v2131 = vld [vmem:[%s188 + $0x3b38] sm:$0xff]
        %v2132 = vld [vmem:[%s188 + $0x3b40] sm:$0xff]
        %v2133 = vld [vmem:[%s188 + $0x3b48] sm:$0xff]
        %v2134 = vld [vmem:[%s188 + $0x3b50] sm:$0xff]
        %v2135 = vld [vmem:[%s188 + $0x3b58] sm:$0xff]
        %v2136 = vld [vmem:[%s188 + $0x3b60] sm:$0xff]
        %v2137 = vld [vmem:[%s188 + $0x3b68] sm:$0xff]
        %v2138 = vld [vmem:[%s188 + $0x3b70] sm:$0xff]
        %v2139 = vld [vmem:[%s188 + $0x3b78] sm:$0xff]
        %v2140 = vld [vmem:[%s188 + $0x3b80] sm:$0xff]
        %v2141 = vld [vmem:[%s188 + $0x3b88] sm:$0xff]
        %v2142 = vld [vmem:[%s188 + $0x3b90] sm:$0xff]
        %v2143 = vld [vmem:[%s188 + $0x3b98] sm:$0xff]
        %v2144 = vld [vmem:[%s188 + $0x3ba0] sm:$0xff]
        %v2145 = vld [vmem:[%s188 + $0x3ba8] sm:$0xff]
        %v2146 = vld [vmem:[%s188 + $0x3bb0] sm:$0xff]
        %v2147 = vld [vmem:[%s188 + $0x3bb8] sm:$0xff]
        %v2148 = vld [vmem:[%s188 + $0x3bc0] sm:$0xff]
        %v2149 = vld [vmem:[%s188 + $0x3bc8] sm:$0xff]
        %v2150 = vld [vmem:[%s188 + $0x3bd0] sm:$0xff]
        %v2151 = vld [vmem:[%s188 + $0x3bd8] sm:$0xff]
        %v2152 = vld [vmem:[%s188 + $0x3be0] sm:$0xff]
        %v2153 = vld [vmem:[%s188 + $0x3be8] sm:$0xff]
        %v2154 = vld [vmem:[%s188 + $0x3bf0] sm:$0xff]
        %v2155 = vld [vmem:[%s188 + $0x3bf8] sm:$0xff]
        %v2156 = vld [vmem:[%s188 + $0x3c00] sm:$0xff]
        %v2157 = vld [vmem:[%s188 + $0x3c08] sm:$0xff]
        %v2158 = vld [vmem:[%s188 + $0x3c10] sm:$0xff]
        %v2159 = vld [vmem:[%s188 + $0x3c18] sm:$0xff]
        %v2160 = vld [vmem:[%s188 + $0x3c20] sm:$0xff]
        %v2161 = vld [vmem:[%s188 + $0x3c28] sm:$0xff]
        %v2162 = vld [vmem:[%s188 + $0x3c30] sm:$0xff]
        %v2163 = vld [vmem:[%s188 + $0x3c38] sm:$0xff]
        %v2164 = vld [vmem:[%s188 + $0x3c40] sm:$0xff]
        %v2165 = vld [vmem:[%s188 + $0x3c48] sm:$0xff]
        %v2166 = vld [vmem:[%s188 + $0x3c50] sm:$0xff]
        %v2167 = vld [vmem:[%s188 + $0x3c58] sm:$0xff]
        %v2168 = vld [vmem:[%s188 + $0x3c60] sm:$0xff]
        %v2169 = vld [vmem:[%s188 + $0x3c68] sm:$0xff]
        %v2170 = vld [vmem:[%s188 + $0x3c70] sm:$0xff]
        %v2171 = vld [vmem:[%s188 + $0x3c78] sm:$0xff]
        %v2172 = vld [vmem:[%s188 + $0x3c80] sm:$0xff]
        %v2173 = vld [vmem:[%s188 + $0x3c88] sm:$0xff]
        %v2174 = vld [vmem:[%s188 + $0x3c90] sm:$0xff]
        %v2175 = vld [vmem:[%s188 + $0x3c98] sm:$0xff]
        %v2176 = vld [vmem:[%s188 + $0x3ca0] sm:$0xff]
        %v2177 = vld [vmem:[%s188 + $0x3ca8] sm:$0xff]
        %v2178 = vld [vmem:[%s188 + $0x3cb0] sm:$0xff]
        %v2179 = vld [vmem:[%s188 + $0x3cb8] sm:$0xff]
        %v2180 = vld [vmem:[%s188 + $0x3cc0] sm:$0xff]
        %v2181 = vld [vmem:[%s188 + $0x3cc8] sm:$0xff]
        %v2182 = vld [vmem:[%s188 + $0x3cd0] sm:$0xff]
        %v2183 = vld [vmem:[%s188 + $0x3cd8] sm:$0xff]
        %v2184 = vld [vmem:[%s188 + $0x3ce0] sm:$0xff]
        %v2185 = vld [vmem:[%s188 + $0x3ce8] sm:$0xff]
        %v2186 = vld [vmem:[%s188 + $0x3cf0] sm:$0xff]
        %v2187 = vld [vmem:[%s188 + $0x3cf8] sm:$0xff]
        %v2188 = vld [vmem:[%s188 + $0x3d00] sm:$0xff]
        %v2189 = vld [vmem:[%s188 + $0x3d08] sm:$0xff]
        %v2190 = vld [vmem:[%s188 + $0x3d10] sm:$0xff]
        %v2191 = vld [vmem:[%s188 + $0x3d18] sm:$0xff]
        %v2192 = vld [vmem:[%s188 + $0x3d20] sm:$0xff]
        %v2193 = vld [vmem:[%s188 + $0x3d28] sm:$0xff]
        %v2194 = vld [vmem:[%s188 + $0x3d30] sm:$0xff]
        %v2195 = vld [vmem:[%s188 + $0x3d38] sm:$0xff]
        %v2196 = vld [vmem:[%s188 + $0x3d40] sm:$0xff]
        %v2197 = vld [vmem:[%s188 + $0x3d48] sm:$0xff]
        %v2198 = vld [vmem:[%s188 + $0x3d50] sm:$0xff]
        %v2199 = vld [vmem:[%s188 + $0x3d58] sm:$0xff]
        %v2200 = vld [vmem:[%s188 + $0x3d60] sm:$0xff]
        %v2201 = vld [vmem:[%s188 + $0x3d68] sm:$0xff]
        %v2202 = vld [vmem:[%s188 + $0x3d70] sm:$0xff]
        %v2203 = vld [vmem:[%s188 + $0x3d78] sm:$0xff]
        %v2204 = vld [vmem:[%s188 + $0x3d80] sm:$0xff]
        %v2205 = vld [vmem:[%s188 + $0x3d88] sm:$0xff]
        %v2206 = vld [vmem:[%s188 + $0x3d90] sm:$0xff]
        %v2207 = vld [vmem:[%s188 + $0x3d98] sm:$0xff]
        %v2208 = vld [vmem:[%s188 + $0x3da0] sm:$0xff]
        %v2209 = vld [vmem:[%s188 + $0x3da8] sm:$0xff]
        %v2210 = vld [vmem:[%s188 + $0x3db0] sm:$0xff]
        %v2211 = vld [vmem:[%s188 + $0x3db8] sm:$0xff]
        %v2212 = vld [vmem:[%s188 + $0x3dc0] sm:$0xff]
        %v2213 = vld [vmem:[%s188 + $0x3dc8] sm:$0xff]
        %v2214 = vld [vmem:[%s188 + $0x3dd0] sm:$0xff]
        %v2215 = vld [vmem:[%s188 + $0x3dd8] sm:$0xff]
        %v2216 = vld [vmem:[%s188 + $0x3de0] sm:$0xff]
        %v2217 = vld [vmem:[%s188 + $0x3de8] sm:$0xff]
        %v2218 = vld [vmem:[%s188 + $0x3df0] sm:$0xff]
        %v2219 = vld [vmem:[%s188 + $0x3df8] sm:$0xff]
        %v2220 = vld [vmem:[%s188 + $0x3e00] sm:$0x3]
        %v2221 = vld [vmem:[%s188 + $0x3e08] sm:$0x3]
        %v2222 = vld [vmem:[%s188 + $0x3e10] sm:$0x3]
        %v2223 = vld [vmem:[%s188 + $0x3e18] sm:$0x3]
        %v2224 = vld [vmem:[%s188 + $0x3e20] sm:$0x3]
        %v2225 = vld [vmem:[%s188 + $0x3e28] sm:$0x3]
        %v2226 = vld [vmem:[%s188 + $0x3e30] sm:$0x3]
        %v2227 = vld [vmem:[%s188 + $0x3e38] sm:$0x3]
        %v2228 = vld [vmem:[%s188 + $0x3e40] sm:$0x3]
        %v2229 = vld [vmem:[%s188 + $0x3e48] sm:$0x3]
        %v2230 = vld [vmem:[%s188 + $0x3e50] sm:$0x3]
        %v2231 = vld [vmem:[%s188 + $0x3e58] sm:$0x3]
        %v2232 = vld [vmem:[%s188 + $0x3e60] sm:$0x3]
        %v2233 = vld [vmem:[%s188 + $0x3e68] sm:$0x3]
        %v2234 = vld [vmem:[%s188 + $0x3e70] sm:$0x3]
        %v2235 = vld [vmem:[%s188 + $0x3e78] sm:$0x3]
        %v2236 = vld [vmem:[%s188 + $0x3e80] sm:$0x3]
        %v2237 = vld [vmem:[%s188 + $0x3e88] sm:$0x3]
        %v2238 = vld [vmem:[%s188 + $0x3e90] sm:$0x3]
        %v2239 = vld [vmem:[%s188 + $0x3e98] sm:$0x3]
        %v2240 = vld [vmem:[%s188 + $0x3ea0] sm:$0x3]
        %v2241 = vld [vmem:[%s188 + $0x3ea8] sm:$0x3]
        %v2242 = vld [vmem:[%s188 + $0x3eb0] sm:$0x3]
        %v2243 = vld [vmem:[%s188 + $0x3eb8] sm:$0x3]
        %v2244 = vld [vmem:[%s188 + $0x3ec0] sm:$0x3]
        %v2245 = vld [vmem:[%s188 + $0x3ec8] sm:$0x3]
        %v2246 = vld [vmem:[%s188 + $0x3ed0] sm:$0x3]
        %v2247 = vld [vmem:[%s188 + $0x3ed8] sm:$0x3]
        %v2248 = vld [vmem:[%s188 + $0x3ee0] sm:$0x3]
        %v2249 = vld [vmem:[%s188 + $0x3ee8] sm:$0x3]
        %v2250 = vld [vmem:[%s188 + $0x3ef0] sm:$0x3]
        %v2251 = vld [vmem:[%s188 + $0x3ef8] sm:$0x3]
        %v2252 = vld [vmem:[%s188 + $0x3f00] sm:$0x3]
        %v2253 = vld [vmem:[%s188 + $0x3f08] sm:$0x3]
        %v2254 = vld [vmem:[%s188 + $0x3f10] sm:$0x3]
        %v2255 = vld [vmem:[%s188 + $0x3f18] sm:$0x3]
        %v2256 = vld [vmem:[%s188 + $0x3f20] sm:$0x3]
        %v2257 = vld [vmem:[%s188 + $0x3f28] sm:$0x3]
        %v2258 = vld [vmem:[%s188 + $0x3f30] sm:$0x3]
        %v2259 = vld [vmem:[%s188 + $0x3f38] sm:$0x3]
        %v2260 = vld [vmem:[%s188 + $0x3f40] sm:$0x3]
        %v2261 = vld [vmem:[%s188 + $0x3f48] sm:$0x3]
        %v2262 = vld [vmem:[%s188 + $0x3f50] sm:$0x3]
        %v2263 = vld [vmem:[%s188 + $0x3f58] sm:$0x3]
        %v2264 = vld [vmem:[%s188 + $0x3f60] sm:$0x3]
        %v2265 = vld [vmem:[%s188 + $0x3f68] sm:$0x3]
        %v2266 = vld [vmem:[%s188 + $0x3f70] sm:$0x3]
        %v2267 = vld [vmem:[%s188 + $0x3f78] sm:$0x3]
        %v2268 = vld [vmem:[%s188 + $0x3f80] sm:$0x3]
        %v2269 = vld [vmem:[%s188 + $0x3f88] sm:$0x3]
        %v2270 = vld [vmem:[%s188 + $0x3f90] sm:$0x3]
        %v2271 = vld [vmem:[%s188 + $0x3f98] sm:$0x3]
        %v2272 = vld [vmem:[%s188 + $0x3fa0] sm:$0x3]
        %v2273 = vld [vmem:[%s188 + $0x3fa8] sm:$0x3]
        %v2274 = vld [vmem:[%s188 + $0x3fb0] sm:$0x3]
        %v2275 = vld [vmem:[%s188 + $0x3fb8] sm:$0x3]
        %v2276 = vld [vmem:[%s188 + $0x3fc0] sm:$0x3]
        %v2277 = vld [vmem:[%s188 + $0x3fc8] sm:$0x3]
        %v2278 = vld [vmem:[%s188 + $0x3fd0] sm:$0x3]
        %v2279 = vld [vmem:[%s188 + $0x3fd8] sm:$0x3]
        %v2280 = vld [vmem:[%s188 + $0x3fe0] sm:$0x3]
        %v2281 = vld [vmem:[%s188 + $0x3fe8] sm:$0x3]
        %v2282 = vld [vmem:[%s188 + $0x3ff0] sm:$0x3]
        %v2283 = vld [vmem:[%s188 + $0x3ff8] sm:$0x3]
        %v2284 = vld [vmem:[%s198] sm:$0xff]
        %v2285 = vld [vmem:[%s198 + $0x8] sm:$0xff]
        %v2286 = vld [vmem:[%s198 + $0x10] sm:$0xff]
        %v2287 = vld [vmem:[%s198 + $0x18] sm:$0xff]
        %v2288 = vld [vmem:[%s198 + $0x20] sm:$0xff]
        %v2289 = vld [vmem:[%s198 + $0x28] sm:$0xff]
        %v2290 = vld [vmem:[%s198 + $0x30] sm:$0xff]
        %v2291 = vld [vmem:[%s198 + $0x38] sm:$0xff]
        %v2300 = vperm.slane %v2284, 0
        %v2301 = vperm.slane %v2284, 1
        %v2302 = vperm.slane %v2284, 2
        %v2303 = vperm.slane %v2284, 3
        %v2304 = vperm.slane %v2284, 4
        %v2305 = vperm.slane %v2284, 5
        %v2306 = vperm.slane %v2284, 6
        %v2307 = vperm.slane %v2284, 7
        %v2308 = vperm.slane %v2285, 0
        %v2309 = vperm.slane %v2285, 1
        %v2310 = vperm.slane %v2285, 2
        %v2311 = vperm.slane %v2285, 3
        %v2312 = vperm.slane %v2285, 4
        %v2313 = vperm.slane %v2285, 5
        %v2314 = vperm.slane %v2285, 6
        %v2315 = vperm.slane %v2285, 7
        %v2316 = vperm.slane %v2286, 0
        %v2317 = vperm.slane %v2286, 1
        %v2318 = vperm.slane %v2286, 2
        %v2319 = vperm.slane %v2286, 3
        %v2320 = vperm.slane %v2286, 4
        %v2321 = vperm.slane %v2286, 5
        %v2322 = vperm.slane %v2286, 6
        %v2323 = vperm.slane %v2286, 7
        %v2324 = vperm.slane %v2287, 0
        %v2325 = vperm.slane %v2287, 1
        %v2326 = vperm.slane %v2287, 2
        %v2327 = vperm.slane %v2287, 3
        %v2328 = vperm.slane %v2287, 4
        %v2329 = vperm.slane %v2287, 5
        %v2330 = vperm.slane %v2287, 6
        %v2331 = vperm.slane %v2287, 7
        %v2332 = vperm.slane %v2288, 0
        %v2333 = vperm.slane %v2288, 1
        %v2334 = vperm.slane %v2288, 2
        %v2335 = vperm.slane %v2288, 3
        %v2336 = vperm.slane %v2288, 4
        %v2337 = vperm.slane %v2288, 5
        %v2338 = vperm.slane %v2288, 6
        %v2339 = vperm.slane %v2288, 7
        %v2340 = vperm.slane %v2289, 0
        %v2341 = vperm.slane %v2289, 1
        %v2342 = vperm.slane %v2289, 2
        %v2343 = vperm.slane %v2289, 3
        %v2344 = vperm.slane %v2289, 4
        %v2345 = vperm.slane %v2289, 5
        %v2346 = vperm.slane %v2289, 6
        %v2347 = vperm.slane %v2289, 7
        %v2348 = vperm.slane %v2290, 0
        %v2349 = vperm.slane %v2290, 1
        %v2350 = vperm.slane %v2290, 2
        %v2351 = vperm.slane %v2290, 3
        %v2352 = vperm.slane %v2290, 4
        %v2353 = vperm.slane %v2290, 5
        %v2354 = vperm.slane %v2290, 6
        %v2355 = vperm.slane %v2290, 7
        %v2356 = vperm.slane %v2291, 0
        %v2357 = vperm.slane %v2291, 1
        %v2358 = vperm.slane %v2291, 2
        %v2359 = vperm.slane %v2291, 3
        %v2360 = vperm.slane %v2291, 4
        %v2361 = vperm.slane %v2291, 5
        %v2362 = vperm.slane %v2291, 6
        %v2363 = vperm.slane %v2291, 7
        %2429 = vst [vmem:[#allocation1] ss:$4 sm:$0xff] %v235
        %v2430 = vld.sshfl [vmem:[#allocation1] sm:$0xff pattern:$0x73625140]
        %v2431 = vld.sshfl [vmem:[#allocation1 + $0x8] sm:$0xff pattern:$0x73625140]
        %vm2433 = vcmask 998400
        %v2434 = vsel %vm2433, %v2431, 0
        %vm2436 = vcmask 1041408
        %v2438 = vsel %vm2436, %v2220, 0
        %v2441 = vsel %vm2436, %v2221, 0
        %v2444 = vsel %vm2436, %v2222, 0
        %v2447 = vsel %vm2436, %v2223, 0
        %v2450 = vsel %vm2436, %v2224, 0
        %v2453 = vsel %vm2436, %v2225, 0
        %v2456 = vsel %vm2436, %v2226, 0
        %v2459 = vsel %vm2436, %v2227, 0
        %v2462 = vsel %vm2436, %v2228, 0
        %v2465 = vsel %vm2436, %v2229, 0
        %v2468 = vsel %vm2436, %v2230, 0
        %v2471 = vsel %vm2436, %v2231, 0
        %v2474 = vsel %vm2436, %v2232, 0
        %v2477 = vsel %vm2436, %v2233, 0
        %v2480 = vsel %vm2436, %v2234, 0
        %v2483 = vsel %vm2436, %v2235, 0
        %v2486 = vsel %vm2436, %v2236, 0
        %v2489 = vsel %vm2436, %v2237, 0
        %v2492 = vsel %vm2436, %v2238, 0
        %v2495 = vsel %vm2436, %v2239, 0
        %v2498 = vsel %vm2436, %v2240, 0
        %v2501 = vsel %vm2436, %v2241, 0
        %v2504 = vsel %vm2436, %v2242, 0
        %v2507 = vsel %vm2436, %v2243, 0
        %v2510 = vsel %vm2436, %v2244, 0
        %v2513 = vsel %vm2436, %v2245, 0
        %v2516 = vsel %vm2436, %v2246, 0
        %v2519 = vsel %vm2436, %v2247, 0
        %v2522 = vsel %vm2436, %v2248, 0
        %v2525 = vsel %vm2436, %v2249, 0
        %v2528 = vsel %vm2436, %v2250, 0
        %v2531 = vsel %vm2436, %v2251, 0
        %v2534 = vsel %vm2436, %v2252, 0
        %v2537 = vsel %vm2436, %v2253, 0
        %v2540 = vsel %vm2436, %v2254, 0
        %v2543 = vsel %vm2436, %v2255, 0
        %v2546 = vsel %vm2436, %v2256, 0
        %v2549 = vsel %vm2436, %v2257, 0
        %v2552 = vsel %vm2436, %v2258, 0
        %v2555 = vsel %vm2436, %v2259, 0
        %v2558 = vsel %vm2436, %v2260, 0
        %v2561 = vsel %vm2436, %v2261, 0
        %v2564 = vsel %vm2436, %v2262, 0
        %v2567 = vsel %vm2436, %v2263, 0
        %v2570 = vsel %vm2436, %v2264, 0
        %v2573 = vsel %vm2436, %v2265, 0
        %v2576 = vsel %vm2436, %v2266, 0
        %v2579 = vsel %vm2436, %v2267, 0
        %v2582 = vsel %vm2436, %v2268, 0
        %v2585 = vsel %vm2436, %v2269, 0
        %v2588 = vsel %vm2436, %v2270, 0
        %v2591 = vsel %vm2436, %v2271, 0
        %v2594 = vsel %vm2436, %v2272, 0
        %v2597 = vsel %vm2436, %v2273, 0
        %v2600 = vsel %vm2436, %v2274, 0
        %v2603 = vsel %vm2436, %v2275, 0
        %v2606 = vsel %vm2436, %v2276, 0
        %v2609 = vsel %vm2436, %v2277, 0
        %v2612 = vsel %vm2436, %v2278, 0
        %v2615 = vsel %vm2436, %v2279, 0
        %v2618 = vsel %vm2436, %v2280, 0
        %v2621 = vsel %vm2436, %v2281, 0
        %v2624 = vsel %vm2436, %v2282, 0
        %v2627 = vsel %vm2436, %v2283, 0
        %2629 = vmatpush.msra.mxu0 %v1196
        %2630 = vmatpush.msra.mxu0 %v1132
        %2631 = vmatpush.msra.mxu0 %v1068
        %2632 = vmatpush.msra.mxu0 %v1004
        %2633 = vmatpush.msra.mxu0 %v940
        %2634 = vmatpush.msra.mxu0 %v876
        %2635 = vmatpush.msra.mxu0 %v812
        %2636 = vmatpush.msra.mxu0 %v748
        %2637 = vmatpush.msra.mxu0 %v684
        %2638 = vmatpush.msra.mxu0 %v620
        %2639 = vmatpush.msra.mxu0 %v556
        %2640 = vmatpush.msra.mxu0 %v492
        %2641 = vmatpush.msra.mxu0 %v428
        %2642 = vmatpush.msra.mxu0 %v364
        %2643 = vmatpush.msra.mxu0 %v300
        %2644 = vmatpush.msra.mxu0 %v236
        %2645 = vmatmul.f32.gmra.mxu0 %v2430
        %v2646 = vpop.f32.mrf.mxu0
        %v2647 = vadd.f32 %v2300, %v2646
        %2648 = vdwg.mxu0
        %2649 = vmatpush.msra.mxu0 %v2438
        %2650 = vmatpush.msra.mxu0 %v2156
        %2651 = vmatpush.msra.mxu0 %v2092
        %2652 = vmatpush.msra.mxu0 %v2028
        %2653 = vmatpush.msra.mxu0 %v1964
        %2654 = vmatpush.msra.mxu0 %v1900
        %2655 = vmatpush.msra.mxu0 %v1836
        %2656 = vmatpush.msra.mxu0 %v1772
        %2657 = vmatpush.msra.mxu0 %v1708
        %2658 = vmatpush.msra.mxu0 %v1644
        %2659 = vmatpush.msra.mxu0 %v1580
        %2660 = vmatpush.msra.mxu0 %v1516
        %2661 = vmatpush.msra.mxu0 %v1452
        %2662 = vmatpush.msra.mxu0 %v1388
        %2663 = vmatpush.msra.mxu0 %v1324
        %2664 = vmatpush.msra.mxu0 %v1260
        %2665 = vmatmul.f32.gmra.mxu0 %v2434
        %v2666 = vpop.f32.mrf.mxu0
        %v2667 = vadd.f32 %v2647, %v2666
        %2668 = vdwg.mxu0
        %2669 = vmatpush.msra.mxu0 %v1197
        %2670 = vmatpush.msra.mxu0 %v1133
        %2671 = vmatpush.msra.mxu0 %v1069
        %2672 = vmatpush.msra.mxu0 %v1005
        %2673 = vmatpush.msra.mxu0 %v941
        %2674 = vmatpush.msra.mxu0 %v877
        %2675 = vmatpush.msra.mxu0 %v813
        %2676 = vmatpush.msra.mxu0 %v749
        %2677 = vmatpush.msra.mxu0 %v685
        %2678 = vmatpush.msra.mxu0 %v621
        %2679 = vmatpush.msra.mxu0 %v557
        %2680 = vmatpush.msra.mxu0 %v493
        %2681 = vmatpush.msra.mxu0 %v429
        %2682 = vmatpush.msra.mxu0 %v365
        %2683 = vmatpush.msra.mxu0 %v301
        %2684 = vmatpush.msra.mxu0 %v237
        %2685 = vmatmul.f32.gmra.mxu0 %v2430
        %v2686 = vpop.f32.mrf.mxu0
        %v2687 = vadd.f32 %v2301, %v2686
        %2688 = vdwg.mxu0
        %2689 = vmatpush.msra.mxu0 %v2441
        %2690 = vmatpush.msra.mxu0 %v2157
        %2691 = vmatpush.msra.mxu0 %v2093
        %2692 = vmatpush.msra.mxu0 %v2029
        %2693 = vmatpush.msra.mxu0 %v1965
        %2694 = vmatpush.msra.mxu0 %v1901
        %2695 = vmatpush.msra.mxu0 %v1837
        %2696 = vmatpush.msra.mxu0 %v1773
        %2697 = vmatpush.msra.mxu0 %v1709
        %2698 = vmatpush.msra.mxu0 %v1645
        %2699 = vmatpush.msra.mxu0 %v1581
        %2700 = vmatpush.msra.mxu0 %v1517
        %2701 = vmatpush.msra.mxu0 %v1453
        %2702 = vmatpush.msra.mxu0 %v1389
        %2703 = vmatpush.msra.mxu0 %v1325
        %2704 = vmatpush.msra.mxu0 %v1261
        %2705 = vmatmul.f32.gmra.mxu0 %v2434
        %v2706 = vpop.f32.mrf.mxu0
        %v2707 = vadd.f32 %v2687, %v2706
        %2708 = vdwg.mxu0
        %2709 = vmatpush.msra.mxu0 %v1198
        %2710 = vmatpush.msra.mxu0 %v1134
        %2711 = vmatpush.msra.mxu0 %v1070
        %2712 = vmatpush.msra.mxu0 %v1006
        %2713 = vmatpush.msra.mxu0 %v942
        %2714 = vmatpush.msra.mxu0 %v878
        %2715 = vmatpush.msra.mxu0 %v814
        %2716 = vmatpush.msra.mxu0 %v750
        %2717 = vmatpush.msra.mxu0 %v686
        %2718 = vmatpush.msra.mxu0 %v622
        %2719 = vmatpush.msra.mxu0 %v558
        %2720 = vmatpush.msra.mxu0 %v494
        %2721 = vmatpush.msra.mxu0 %v430
        %2722 = vmatpush.msra.mxu0 %v366
        %2723 = vmatpush.msra.mxu0 %v302
        %2724 = vmatpush.msra.mxu0 %v238
        %2725 = vmatmul.f32.gmra.mxu0 %v2430
        %v2726 = vpop.f32.mrf.mxu0
        %v2727 = vadd.f32 %v2302, %v2726
        %2728 = vdwg.mxu0
        %2729 = vmatpush.msra.mxu0 %v2444
        %2730 = vmatpush.msra.mxu0 %v2158
        %2731 = vmatpush.msra.mxu0 %v2094
        %2732 = vmatpush.msra.mxu0 %v2030
        %2733 = vmatpush.msra.mxu0 %v1966
        %2734 = vmatpush.msra.mxu0 %v1902
        %2735 = vmatpush.msra.mxu0 %v1838
        %2736 = vmatpush.msra.mxu0 %v1774
        %2737 = vmatpush.msra.mxu0 %v1710
        %2738 = vmatpush.msra.mxu0 %v1646
        %2739 = vmatpush.msra.mxu0 %v1582
        %2740 = vmatpush.msra.mxu0 %v1518
        %2741 = vmatpush.msra.mxu0 %v1454
        %2742 = vmatpush.msra.mxu0 %v1390
        %2743 = vmatpush.msra.mxu0 %v1326
        %2744 = vmatpush.msra.mxu0 %v1262
        %2745 = vmatmul.f32.gmra.mxu0 %v2434
        %v2746 = vpop.f32.mrf.mxu0
        %v2747 = vadd.f32 %v2727, %v2746
        %2748 = vdwg.mxu0
        %2749 = vmatpush.msra.mxu0 %v1199
        %2750 = vmatpush.msra.mxu0 %v1135
        %2751 = vmatpush.msra.mxu0 %v1071
        %2752 = vmatpush.msra.mxu0 %v1007
        %2753 = vmatpush.msra.mxu0 %v943
        %2754 = vmatpush.msra.mxu0 %v879
        %2755 = vmatpush.msra.mxu0 %v815
        %2756 = vmatpush.msra.mxu0 %v751
        %2757 = vmatpush.msra.mxu0 %v687
        %2758 = vmatpush.msra.mxu0 %v623
        %2759 = vmatpush.msra.mxu0 %v559
        %2760 = vmatpush.msra.mxu0 %v495
        %2761 = vmatpush.msra.mxu0 %v431
        %2762 = vmatpush.msra.mxu0 %v367
        %2763 = vmatpush.msra.mxu0 %v303
        %2764 = vmatpush.msra.mxu0 %v239
        %2765 = vmatmul.f32.gmra.mxu0 %v2430
        %v2766 = vpop.f32.mrf.mxu0
        %v2767 = vadd.f32 %v2303, %v2766
        %2768 = vdwg.mxu0
        %2769 = vmatpush.msra.mxu0 %v2447
        %2770 = vmatpush.msra.mxu0 %v2159
        %2771 = vmatpush.msra.mxu0 %v2095
        %2772 = vmatpush.msra.mxu0 %v2031
        %2773 = vmatpush.msra.mxu0 %v1967
        %2774 = vmatpush.msra.mxu0 %v1903
        %2775 = vmatpush.msra.mxu0 %v1839
        %2776 = vmatpush.msra.mxu0 %v1775
        %2777 = vmatpush.msra.mxu0 %v1711
        %2778 = vmatpush.msra.mxu0 %v1647
        %2779 = vmatpush.msra.mxu0 %v1583
        %2780 = vmatpush.msra.mxu0 %v1519
        %2781 = vmatpush.msra.mxu0 %v1455
        %2782 = vmatpush.msra.mxu0 %v1391
        %2783 = vmatpush.msra.mxu0 %v1327
        %2784 = vmatpush.msra.mxu0 %v1263
        %2785 = vmatmul.f32.gmra.mxu0 %v2434
        %v2786 = vpop.f32.mrf.mxu0
        %v2787 = vadd.f32 %v2767, %v2786
        %2788 = vdwg.mxu0
        %2789 = vmatpush.msra.mxu0 %v1200
        %2790 = vmatpush.msra.mxu0 %v1136
        %2791 = vmatpush.msra.mxu0 %v1072
        %2792 = vmatpush.msra.mxu0 %v1008
        %2793 = vmatpush.msra.mxu0 %v944
        %2794 = vmatpush.msra.mxu0 %v880
        %2795 = vmatpush.msra.mxu0 %v816
        %2796 = vmatpush.msra.mxu0 %v752
        %2797 = vmatpush.msra.mxu0 %v688
        %2798 = vmatpush.msra.mxu0 %v624
        %2799 = vmatpush.msra.mxu0 %v560
        %2800 = vmatpush.msra.mxu0 %v496
        %2801 = vmatpush.msra.mxu0 %v432
        %2802 = vmatpush.msra.mxu0 %v368
        %2803 = vmatpush.msra.mxu0 %v304
        %2804 = vmatpush.msra.mxu0 %v240
        %2805 = vmatmul.f32.gmra.mxu0 %v2430
        %v2806 = vpop.f32.mrf.mxu0
        %v2807 = vadd.f32 %v2304, %v2806
        %2808 = vdwg.mxu0
        %2809 = vmatpush.msra.mxu0 %v2450
        %2810 = vmatpush.msra.mxu0 %v2160
        %2811 = vmatpush.msra.mxu0 %v2096
        %2812 = vmatpush.msra.mxu0 %v2032
        %2813 = vmatpush.msra.mxu0 %v1968
        %2814 = vmatpush.msra.mxu0 %v1904
        %2815 = vmatpush.msra.mxu0 %v1840
        %2816 = vmatpush.msra.mxu0 %v1776
        %2817 = vmatpush.msra.mxu0 %v1712
        %2818 = vmatpush.msra.mxu0 %v1648
        %2819 = vmatpush.msra.mxu0 %v1584
        %2820 = vmatpush.msra.mxu0 %v1520
        %2821 = vmatpush.msra.mxu0 %v1456
        %2822 = vmatpush.msra.mxu0 %v1392
        %2823 = vmatpush.msra.mxu0 %v1328
        %2824 = vmatpush.msra.mxu0 %v1264
        %2825 = vmatmul.f32.gmra.mxu0 %v2434
        %v2826 = vpop.f32.mrf.mxu0
        %v2827 = vadd.f32 %v2807, %v2826
        %2828 = vdwg.mxu0
        %2829 = vmatpush.msra.mxu0 %v1201
        %2830 = vmatpush.msra.mxu0 %v1137
        %2831 = vmatpush.msra.mxu0 %v1073
        %2832 = vmatpush.msra.mxu0 %v1009
        %2833 = vmatpush.msra.mxu0 %v945
        %2834 = vmatpush.msra.mxu0 %v881
        %2835 = vmatpush.msra.mxu0 %v817
        %2836 = vmatpush.msra.mxu0 %v753
        %2837 = vmatpush.msra.mxu0 %v689
        %2838 = vmatpush.msra.mxu0 %v625
        %2839 = vmatpush.msra.mxu0 %v561
        %2840 = vmatpush.msra.mxu0 %v497
        %2841 = vmatpush.msra.mxu0 %v433
        %2842 = vmatpush.msra.mxu0 %v369
        %2843 = vmatpush.msra.mxu0 %v305
        %2844 = vmatpush.msra.mxu0 %v241
        %2845 = vmatmul.f32.gmra.mxu0 %v2430
        %v2846 = vpop.f32.mrf.mxu0
        %v2847 = vadd.f32 %v2305, %v2846
        %2848 = vdwg.mxu0
        %2849 = vmatpush.msra.mxu0 %v2453
        %2850 = vmatpush.msra.mxu0 %v2161
        %2851 = vmatpush.msra.mxu0 %v2097
        %2852 = vmatpush.msra.mxu0 %v2033
        %2853 = vmatpush.msra.mxu0 %v1969
        %2854 = vmatpush.msra.mxu0 %v1905
        %2855 = vmatpush.msra.mxu0 %v1841
        %2856 = vmatpush.msra.mxu0 %v1777
        %2857 = vmatpush.msra.mxu0 %v1713
        %2858 = vmatpush.msra.mxu0 %v1649
        %2859 = vmatpush.msra.mxu0 %v1585
        %2860 = vmatpush.msra.mxu0 %v1521
        %2861 = vmatpush.msra.mxu0 %v1457
        %2862 = vmatpush.msra.mxu0 %v1393
        %2863 = vmatpush.msra.mxu0 %v1329
        %2864 = vmatpush.msra.mxu0 %v1265
        %2865 = vmatmul.f32.gmra.mxu0 %v2434
        %v2866 = vpop.f32.mrf.mxu0
        %v2867 = vadd.f32 %v2847, %v2866
        %2868 = vdwg.mxu0
        %2869 = vmatpush.msra.mxu0 %v1202
        %2870 = vmatpush.msra.mxu0 %v1138
        %2871 = vmatpush.msra.mxu0 %v1074
        %2872 = vmatpush.msra.mxu0 %v1010
        %2873 = vmatpush.msra.mxu0 %v946
        %2874 = vmatpush.msra.mxu0 %v882
        %2875 = vmatpush.msra.mxu0 %v818
        %2876 = vmatpush.msra.mxu0 %v754
        %2877 = vmatpush.msra.mxu0 %v690
        %2878 = vmatpush.msra.mxu0 %v626
        %2879 = vmatpush.msra.mxu0 %v562
        %2880 = vmatpush.msra.mxu0 %v498
        %2881 = vmatpush.msra.mxu0 %v434
        %2882 = vmatpush.msra.mxu0 %v370
        %2883 = vmatpush.msra.mxu0 %v306
        %2884 = vmatpush.msra.mxu0 %v242
        %2885 = vmatmul.f32.gmra.mxu0 %v2430
        %v2886 = vpop.f32.mrf.mxu0
        %v2887 = vadd.f32 %v2306, %v2886
        %2888 = vdwg.mxu0
        %2889 = vmatpush.msra.mxu0 %v2456
        %2890 = vmatpush.msra.mxu0 %v2162
        %2891 = vmatpush.msra.mxu0 %v2098
        %2892 = vmatpush.msra.mxu0 %v2034
        %2893 = vmatpush.msra.mxu0 %v1970
        %2894 = vmatpush.msra.mxu0 %v1906
        %2895 = vmatpush.msra.mxu0 %v1842
        %2896 = vmatpush.msra.mxu0 %v1778
        %2897 = vmatpush.msra.mxu0 %v1714
        %2898 = vmatpush.msra.mxu0 %v1650
        %2899 = vmatpush.msra.mxu0 %v1586
        %2900 = vmatpush.msra.mxu0 %v1522
        %2901 = vmatpush.msra.mxu0 %v1458
        %2902 = vmatpush.msra.mxu0 %v1394
        %2903 = vmatpush.msra.mxu0 %v1330
        %2904 = vmatpush.msra.mxu0 %v1266
        %2905 = vmatmul.f32.gmra.mxu0 %v2434
        %v2906 = vpop.f32.mrf.mxu0
        %v2907 = vadd.f32 %v2887, %v2906
        %2908 = vdwg.mxu0
        %2909 = vmatpush.msra.mxu0 %v1203
        %2910 = vmatpush.msra.mxu0 %v1139
        %2911 = vmatpush.msra.mxu0 %v1075
        %2912 = vmatpush.msra.mxu0 %v1011
        %2913 = vmatpush.msra.mxu0 %v947
        %2914 = vmatpush.msra.mxu0 %v883
        %2915 = vmatpush.msra.mxu0 %v819
        %2916 = vmatpush.msra.mxu0 %v755
        %2917 = vmatpush.msra.mxu0 %v691
        %2918 = vmatpush.msra.mxu0 %v627
        %2919 = vmatpush.msra.mxu0 %v563
        %2920 = vmatpush.msra.mxu0 %v499
        %2921 = vmatpush.msra.mxu0 %v435
        %2922 = vmatpush.msra.mxu0 %v371
        %2923 = vmatpush.msra.mxu0 %v307
        %2924 = vmatpush.msra.mxu0 %v243
        %2925 = vmatmul.f32.gmra.mxu0 %v2430
        %v2926 = vpop.f32.mrf.mxu0
        %v2927 = vadd.f32 %v2307, %v2926
        %2928 = vdwg.mxu0
        %2929 = vmatpush.msra.mxu0 %v2459
        %2930 = vmatpush.msra.mxu0 %v2163
        %2931 = vmatpush.msra.mxu0 %v2099
        %2932 = vmatpush.msra.mxu0 %v2035
        %2933 = vmatpush.msra.mxu0 %v1971
        %2934 = vmatpush.msra.mxu0 %v1907
        %2935 = vmatpush.msra.mxu0 %v1843
        %2936 = vmatpush.msra.mxu0 %v1779
        %2937 = vmatpush.msra.mxu0 %v1715
        %2938 = vmatpush.msra.mxu0 %v1651
        %2939 = vmatpush.msra.mxu0 %v1587
        %2940 = vmatpush.msra.mxu0 %v1523
        %2941 = vmatpush.msra.mxu0 %v1459
        %2942 = vmatpush.msra.mxu0 %v1395
        %2943 = vmatpush.msra.mxu0 %v1331
        %2944 = vmatpush.msra.mxu0 %v1267
        %2945 = vmatmul.f32.gmra.mxu0 %v2434
        %v2946 = vpop.f32.mrf.mxu0
        %v2947 = vadd.f32 %v2927, %v2946
        %2948 = vdwg.mxu0
        %2949 = vmatpush.msra.mxu0 %v1204
        %2950 = vmatpush.msra.mxu0 %v1140
        %2951 = vmatpush.msra.mxu0 %v1076
        %2952 = vmatpush.msra.mxu0 %v1012
        %2953 = vmatpush.msra.mxu0 %v948
        %2954 = vmatpush.msra.mxu0 %v884
        %2955 = vmatpush.msra.mxu0 %v820
        %2956 = vmatpush.msra.mxu0 %v756
        %2957 = vmatpush.msra.mxu0 %v692
        %2958 = vmatpush.msra.mxu0 %v628
        %2959 = vmatpush.msra.mxu0 %v564
        %2960 = vmatpush.msra.mxu0 %v500
        %2961 = vmatpush.msra.mxu0 %v436
        %2962 = vmatpush.msra.mxu0 %v372
        %2963 = vmatpush.msra.mxu0 %v308
        %2964 = vmatpush.msra.mxu0 %v244
        %2965 = vmatmul.f32.gmra.mxu0 %v2430
        %v2966 = vpop.f32.mrf.mxu0
        %v2967 = vadd.f32 %v2308, %v2966
        %2968 = vdwg.mxu0
        %2969 = vmatpush.msra.mxu0 %v2462
        %2970 = vmatpush.msra.mxu0 %v2164
        %2971 = vmatpush.msra.mxu0 %v2100
        %2972 = vmatpush.msra.mxu0 %v2036
        %2973 = vmatpush.msra.mxu0 %v1972
        %2974 = vmatpush.msra.mxu0 %v1908
        %2975 = vmatpush.msra.mxu0 %v1844
        %2976 = vmatpush.msra.mxu0 %v1780
        %2977 = vmatpush.msra.mxu0 %v1716
        %2978 = vmatpush.msra.mxu0 %v1652
        %2979 = vmatpush.msra.mxu0 %v1588
        %2980 = vmatpush.msra.mxu0 %v1524
        %2981 = vmatpush.msra.mxu0 %v1460
        %2982 = vmatpush.msra.mxu0 %v1396
        %2983 = vmatpush.msra.mxu0 %v1332
        %2984 = vmatpush.msra.mxu0 %v1268
        %2985 = vmatmul.f32.gmra.mxu0 %v2434
        %v2986 = vpop.f32.mrf.mxu0
        %v2987 = vadd.f32 %v2967, %v2986
        %2988 = vdwg.mxu0
        %2989 = vmatpush.msra.mxu0 %v1205
        %2990 = vmatpush.msra.mxu0 %v1141
        %2991 = vmatpush.msra.mxu0 %v1077
        %2992 = vmatpush.msra.mxu0 %v1013
        %2993 = vmatpush.msra.mxu0 %v949
        %2994 = vmatpush.msra.mxu0 %v885
        %2995 = vmatpush.msra.mxu0 %v821
        %2996 = vmatpush.msra.mxu0 %v757
        %2997 = vmatpush.msra.mxu0 %v693
        %2998 = vmatpush.msra.mxu0 %v629
        %2999 = vmatpush.msra.mxu0 %v565
        %3000 = vmatpush.msra.mxu0 %v501
        %3001 = vmatpush.msra.mxu0 %v437
        %3002 = vmatpush.msra.mxu0 %v373
        %3003 = vmatpush.msra.mxu0 %v309
        %3004 = vmatpush.msra.mxu0 %v245
        %3005 = vmatmul.f32.gmra.mxu0 %v2430
        %v3006 = vpop.f32.mrf.mxu0
        %v3007 = vadd.f32 %v2309, %v3006
        %3008 = vdwg.mxu0
        %3009 = vmatpush.msra.mxu0 %v2465
        %3010 = vmatpush.msra.mxu0 %v2165
        %3011 = vmatpush.msra.mxu0 %v2101
        %3012 = vmatpush.msra.mxu0 %v2037
        %3013 = vmatpush.msra.mxu0 %v1973
        %3014 = vmatpush.msra.mxu0 %v1909
        %3015 = vmatpush.msra.mxu0 %v1845
        %3016 = vmatpush.msra.mxu0 %v1781
        %3017 = vmatpush.msra.mxu0 %v1717
        %3018 = vmatpush.msra.mxu0 %v1653
        %3019 = vmatpush.msra.mxu0 %v1589
        %3020 = vmatpush.msra.mxu0 %v1525
        %3021 = vmatpush.msra.mxu0 %v1461
        %3022 = vmatpush.msra.mxu0 %v1397
        %3023 = vmatpush.msra.mxu0 %v1333
        %3024 = vmatpush.msra.mxu0 %v1269
        %3025 = vmatmul.f32.gmra.mxu0 %v2434
        %v3026 = vpop.f32.mrf.mxu0
        %v3027 = vadd.f32 %v3007, %v3026
        %3028 = vdwg.mxu0
        %3029 = vmatpush.msra.mxu0 %v1206
        %3030 = vmatpush.msra.mxu0 %v1142
        %3031 = vmatpush.msra.mxu0 %v1078
        %3032 = vmatpush.msra.mxu0 %v1014
        %3033 = vmatpush.msra.mxu0 %v950
        %3034 = vmatpush.msra.mxu0 %v886
        %3035 = vmatpush.msra.mxu0 %v822
        %3036 = vmatpush.msra.mxu0 %v758
        %3037 = vmatpush.msra.mxu0 %v694
        %3038 = vmatpush.msra.mxu0 %v630
        %3039 = vmatpush.msra.mxu0 %v566
        %3040 = vmatpush.msra.mxu0 %v502
        %3041 = vmatpush.msra.mxu0 %v438
        %3042 = vmatpush.msra.mxu0 %v374
        %3043 = vmatpush.msra.mxu0 %v310
        %3044 = vmatpush.msra.mxu0 %v246
        %3045 = vmatmul.f32.gmra.mxu0 %v2430
        %v3046 = vpop.f32.mrf.mxu0
        %v3047 = vadd.f32 %v2310, %v3046
        %3048 = vdwg.mxu0
        %3049 = vmatpush.msra.mxu0 %v2468
        %3050 = vmatpush.msra.mxu0 %v2166
        %3051 = vmatpush.msra.mxu0 %v2102
        %3052 = vmatpush.msra.mxu0 %v2038
        %3053 = vmatpush.msra.mxu0 %v1974
        %3054 = vmatpush.msra.mxu0 %v1910
        %3055 = vmatpush.msra.mxu0 %v1846
        %3056 = vmatpush.msra.mxu0 %v1782
        %3057 = vmatpush.msra.mxu0 %v1718
        %3058 = vmatpush.msra.mxu0 %v1654
        %3059 = vmatpush.msra.mxu0 %v1590
        %3060 = vmatpush.msra.mxu0 %v1526
        %3061 = vmatpush.msra.mxu0 %v1462
        %3062 = vmatpush.msra.mxu0 %v1398
        %3063 = vmatpush.msra.mxu0 %v1334
        %3064 = vmatpush.msra.mxu0 %v1270
        %3065 = vmatmul.f32.gmra.mxu0 %v2434
        %v3066 = vpop.f32.mrf.mxu0
        %v3067 = vadd.f32 %v3047, %v3066
        %3068 = vdwg.mxu0
        %3069 = vmatpush.msra.mxu0 %v1207
        %3070 = vmatpush.msra.mxu0 %v1143
        %3071 = vmatpush.msra.mxu0 %v1079
        %3072 = vmatpush.msra.mxu0 %v1015
        %3073 = vmatpush.msra.mxu0 %v951
        %3074 = vmatpush.msra.mxu0 %v887
        %3075 = vmatpush.msra.mxu0 %v823
        %3076 = vmatpush.msra.mxu0 %v759
        %3077 = vmatpush.msra.mxu0 %v695
        %3078 = vmatpush.msra.mxu0 %v631
        %3079 = vmatpush.msra.mxu0 %v567
        %3080 = vmatpush.msra.mxu0 %v503
        %3081 = vmatpush.msra.mxu0 %v439
        %3082 = vmatpush.msra.mxu0 %v375
        %3083 = vmatpush.msra.mxu0 %v311
        %3084 = vmatpush.msra.mxu0 %v247
        %3085 = vmatmul.f32.gmra.mxu0 %v2430
        %v3086 = vpop.f32.mrf.mxu0
        %v3087 = vadd.f32 %v2311, %v3086
        %3088 = vdwg.mxu0
        %3089 = vmatpush.msra.mxu0 %v2471
        %3090 = vmatpush.msra.mxu0 %v2167
        %3091 = vmatpush.msra.mxu0 %v2103
        %3092 = vmatpush.msra.mxu0 %v2039
        %3093 = vmatpush.msra.mxu0 %v1975
        %3094 = vmatpush.msra.mxu0 %v1911
        %3095 = vmatpush.msra.mxu0 %v1847
        %3096 = vmatpush.msra.mxu0 %v1783
        %3097 = vmatpush.msra.mxu0 %v1719
        %3098 = vmatpush.msra.mxu0 %v1655
        %3099 = vmatpush.msra.mxu0 %v1591
        %3100 = vmatpush.msra.mxu0 %v1527
        %3101 = vmatpush.msra.mxu0 %v1463
        %3102 = vmatpush.msra.mxu0 %v1399
        %3103 = vmatpush.msra.mxu0 %v1335
        %3104 = vmatpush.msra.mxu0 %v1271
        %3105 = vmatmul.f32.gmra.mxu0 %v2434
        %v3106 = vpop.f32.mrf.mxu0
        %v3107 = vadd.f32 %v3087, %v3106
        %3108 = vdwg.mxu0
        %3109 = vmatpush.msra.mxu0 %v1208
        %3110 = vmatpush.msra.mxu0 %v1144
        %3111 = vmatpush.msra.mxu0 %v1080
        %3112 = vmatpush.msra.mxu0 %v1016
        %3113 = vmatpush.msra.mxu0 %v952
        %3114 = vmatpush.msra.mxu0 %v888
        %3115 = vmatpush.msra.mxu0 %v824
        %3116 = vmatpush.msra.mxu0 %v760
        %3117 = vmatpush.msra.mxu0 %v696
        %3118 = vmatpush.msra.mxu0 %v632
        %3119 = vmatpush.msra.mxu0 %v568
        %3120 = vmatpush.msra.mxu0 %v504
        %3121 = vmatpush.msra.mxu0 %v440
        %3122 = vmatpush.msra.mxu0 %v376
        %3123 = vmatpush.msra.mxu0 %v312
        %3124 = vmatpush.msra.mxu0 %v248
        %3125 = vmatmul.f32.gmra.mxu0 %v2430
        %v3126 = vpop.f32.mrf.mxu0
        %v3127 = vadd.f32 %v2312, %v3126
        %3128 = vdwg.mxu0
        %3129 = vmatpush.msra.mxu0 %v2474
        %3130 = vmatpush.msra.mxu0 %v2168
        %3131 = vmatpush.msra.mxu0 %v2104
        %3132 = vmatpush.msra.mxu0 %v2040
        %3133 = vmatpush.msra.mxu0 %v1976
        %3134 = vmatpush.msra.mxu0 %v1912
        %3135 = vmatpush.msra.mxu0 %v1848
        %3136 = vmatpush.msra.mxu0 %v1784
        %3137 = vmatpush.msra.mxu0 %v1720
        %3138 = vmatpush.msra.mxu0 %v1656
        %3139 = vmatpush.msra.mxu0 %v1592
        %3140 = vmatpush.msra.mxu0 %v1528
        %3141 = vmatpush.msra.mxu0 %v1464
        %3142 = vmatpush.msra.mxu0 %v1400
        %3143 = vmatpush.msra.mxu0 %v1336
        %3144 = vmatpush.msra.mxu0 %v1272
        %3145 = vmatmul.f32.gmra.mxu0 %v2434
        %v3146 = vpop.f32.mrf.mxu0
        %v3147 = vadd.f32 %v3127, %v3146
        %3148 = vdwg.mxu0
        %3149 = vmatpush.msra.mxu0 %v1209
        %3150 = vmatpush.msra.mxu0 %v1145
        %3151 = vmatpush.msra.mxu0 %v1081
        %3152 = vmatpush.msra.mxu0 %v1017
        %3153 = vmatpush.msra.mxu0 %v953
        %3154 = vmatpush.msra.mxu0 %v889
        %3155 = vmatpush.msra.mxu0 %v825
        %3156 = vmatpush.msra.mxu0 %v761
        %3157 = vmatpush.msra.mxu0 %v697
        %3158 = vmatpush.msra.mxu0 %v633
        %3159 = vmatpush.msra.mxu0 %v569
        %3160 = vmatpush.msra.mxu0 %v505
        %3161 = vmatpush.msra.mxu0 %v441
        %3162 = vmatpush.msra.mxu0 %v377
        %3163 = vmatpush.msra.mxu0 %v313
        %3164 = vmatpush.msra.mxu0 %v249
        %3165 = vmatmul.f32.gmra.mxu0 %v2430
        %v3166 = vpop.f32.mrf.mxu0
        %v3167 = vadd.f32 %v2313, %v3166
        %3168 = vdwg.mxu0
        %3169 = vmatpush.msra.mxu0 %v2477
        %3170 = vmatpush.msra.mxu0 %v2169
        %3171 = vmatpush.msra.mxu0 %v2105
        %3172 = vmatpush.msra.mxu0 %v2041
        %3173 = vmatpush.msra.mxu0 %v1977
        %3174 = vmatpush.msra.mxu0 %v1913
        %3175 = vmatpush.msra.mxu0 %v1849
        %3176 = vmatpush.msra.mxu0 %v1785
        %3177 = vmatpush.msra.mxu0 %v1721
        %3178 = vmatpush.msra.mxu0 %v1657
        %3179 = vmatpush.msra.mxu0 %v1593
        %3180 = vmatpush.msra.mxu0 %v1529
        %3181 = vmatpush.msra.mxu0 %v1465
        %3182 = vmatpush.msra.mxu0 %v1401
        %3183 = vmatpush.msra.mxu0 %v1337
        %3184 = vmatpush.msra.mxu0 %v1273
        %3185 = vmatmul.f32.gmra.mxu0 %v2434
        %v3186 = vpop.f32.mrf.mxu0
        %v3187 = vadd.f32 %v3167, %v3186
        %3188 = vdwg.mxu0
        %3189 = vmatpush.msra.mxu0 %v1210
        %3190 = vmatpush.msra.mxu0 %v1146
        %3191 = vmatpush.msra.mxu0 %v1082
        %3192 = vmatpush.msra.mxu0 %v1018
        %3193 = vmatpush.msra.mxu0 %v954
        %3194 = vmatpush.msra.mxu0 %v890
        %3195 = vmatpush.msra.mxu0 %v826
        %3196 = vmatpush.msra.mxu0 %v762
        %3197 = vmatpush.msra.mxu0 %v698
        %3198 = vmatpush.msra.mxu0 %v634
        %3199 = vmatpush.msra.mxu0 %v570
        %3200 = vmatpush.msra.mxu0 %v506
        %3201 = vmatpush.msra.mxu0 %v442
        %3202 = vmatpush.msra.mxu0 %v378
        %3203 = vmatpush.msra.mxu0 %v314
        %3204 = vmatpush.msra.mxu0 %v250
        %3205 = vmatmul.f32.gmra.mxu0 %v2430
        %v3206 = vpop.f32.mrf.mxu0
        %v3207 = vadd.f32 %v2314, %v3206
        %3208 = vdwg.mxu0
        %3209 = vmatpush.msra.mxu0 %v2480
        %3210 = vmatpush.msra.mxu0 %v2170
        %3211 = vmatpush.msra.mxu0 %v2106
        %3212 = vmatpush.msra.mxu0 %v2042
        %3213 = vmatpush.msra.mxu0 %v1978
        %3214 = vmatpush.msra.mxu0 %v1914
        %3215 = vmatpush.msra.mxu0 %v1850
        %3216 = vmatpush.msra.mxu0 %v1786
        %3217 = vmatpush.msra.mxu0 %v1722
        %3218 = vmatpush.msra.mxu0 %v1658
        %3219 = vmatpush.msra.mxu0 %v1594
        %3220 = vmatpush.msra.mxu0 %v1530
        %3221 = vmatpush.msra.mxu0 %v1466
        %3222 = vmatpush.msra.mxu0 %v1402
        %3223 = vmatpush.msra.mxu0 %v1338
        %3224 = vmatpush.msra.mxu0 %v1274
        %3225 = vmatmul.f32.gmra.mxu0 %v2434
        %v3226 = vpop.f32.mrf.mxu0
        %v3227 = vadd.f32 %v3207, %v3226
        %3228 = vdwg.mxu0
        %3229 = vmatpush.msra.mxu0 %v1211
        %3230 = vmatpush.msra.mxu0 %v1147
        %3231 = vmatpush.msra.mxu0 %v1083
        %3232 = vmatpush.msra.mxu0 %v1019
        %3233 = vmatpush.msra.mxu0 %v955
        %3234 = vmatpush.msra.mxu0 %v891
        %3235 = vmatpush.msra.mxu0 %v827
        %3236 = vmatpush.msra.mxu0 %v763
        %3237 = vmatpush.msra.mxu0 %v699
        %3238 = vmatpush.msra.mxu0 %v635
        %3239 = vmatpush.msra.mxu0 %v571
        %3240 = vmatpush.msra.mxu0 %v507
        %3241 = vmatpush.msra.mxu0 %v443
        %3242 = vmatpush.msra.mxu0 %v379
        %3243 = vmatpush.msra.mxu0 %v315
        %3244 = vmatpush.msra.mxu0 %v251
        %3245 = vmatmul.f32.gmra.mxu0 %v2430
        %v3246 = vpop.f32.mrf.mxu0
        %v3247 = vadd.f32 %v2315, %v3246
        %3248 = vdwg.mxu0
        %3249 = vmatpush.msra.mxu0 %v2483
        %3250 = vmatpush.msra.mxu0 %v2171
        %3251 = vmatpush.msra.mxu0 %v2107
        %3252 = vmatpush.msra.mxu0 %v2043
        %3253 = vmatpush.msra.mxu0 %v1979
        %3254 = vmatpush.msra.mxu0 %v1915
        %3255 = vmatpush.msra.mxu0 %v1851
        %3256 = vmatpush.msra.mxu0 %v1787
        %3257 = vmatpush.msra.mxu0 %v1723
        %3258 = vmatpush.msra.mxu0 %v1659
        %3259 = vmatpush.msra.mxu0 %v1595
        %3260 = vmatpush.msra.mxu0 %v1531
        %3261 = vmatpush.msra.mxu0 %v1467
        %3262 = vmatpush.msra.mxu0 %v1403
        %3263 = vmatpush.msra.mxu0 %v1339
        %3264 = vmatpush.msra.mxu0 %v1275
        %3265 = vmatmul.f32.gmra.mxu0 %v2434
        %v3266 = vpop.f32.mrf.mxu0
        %v3267 = vadd.f32 %v3247, %v3266
        %3268 = vdwg.mxu0
        %3269 = vmatpush.msra.mxu0 %v1212
        %3270 = vmatpush.msra.mxu0 %v1148
        %3271 = vmatpush.msra.mxu0 %v1084
        %3272 = vmatpush.msra.mxu0 %v1020
        %3273 = vmatpush.msra.mxu0 %v956
        %3274 = vmatpush.msra.mxu0 %v892
        %3275 = vmatpush.msra.mxu0 %v828
        %3276 = vmatpush.msra.mxu0 %v764
        %3277 = vmatpush.msra.mxu0 %v700
        %3278 = vmatpush.msra.mxu0 %v636
        %3279 = vmatpush.msra.mxu0 %v572
        %3280 = vmatpush.msra.mxu0 %v508
        %3281 = vmatpush.msra.mxu0 %v444
        %3282 = vmatpush.msra.mxu0 %v380
        %3283 = vmatpush.msra.mxu0 %v316
        %3284 = vmatpush.msra.mxu0 %v252
        %3285 = vmatmul.f32.gmra.mxu0 %v2430
        %v3286 = vpop.f32.mrf.mxu0
        %v3287 = vadd.f32 %v2316, %v3286
        %3288 = vdwg.mxu0
        %3289 = vmatpush.msra.mxu0 %v2486
        %3290 = vmatpush.msra.mxu0 %v2172
        %3291 = vmatpush.msra.mxu0 %v2108
        %3292 = vmatpush.msra.mxu0 %v2044
        %3293 = vmatpush.msra.mxu0 %v1980
        %3294 = vmatpush.msra.mxu0 %v1916
        %3295 = vmatpush.msra.mxu0 %v1852
        %3296 = vmatpush.msra.mxu0 %v1788
        %3297 = vmatpush.msra.mxu0 %v1724
        %3298 = vmatpush.msra.mxu0 %v1660
        %3299 = vmatpush.msra.mxu0 %v1596
        %3300 = vmatpush.msra.mxu0 %v1532
        %3301 = vmatpush.msra.mxu0 %v1468
        %3302 = vmatpush.msra.mxu0 %v1404
        %3303 = vmatpush.msra.mxu0 %v1340
        %3304 = vmatpush.msra.mxu0 %v1276
        %3305 = vmatmul.f32.gmra.mxu0 %v2434
        %v3306 = vpop.f32.mrf.mxu0
        %v3307 = vadd.f32 %v3287, %v3306
        %3308 = vdwg.mxu0
        %3309 = vmatpush.msra.mxu0 %v1213
        %3310 = vmatpush.msra.mxu0 %v1149
        %3311 = vmatpush.msra.mxu0 %v1085
        %3312 = vmatpush.msra.mxu0 %v1021
        %3313 = vmatpush.msra.mxu0 %v957
        %3314 = vmatpush.msra.mxu0 %v893
        %3315 = vmatpush.msra.mxu0 %v829
        %3316 = vmatpush.msra.mxu0 %v765
        %3317 = vmatpush.msra.mxu0 %v701
        %3318 = vmatpush.msra.mxu0 %v637
        %3319 = vmatpush.msra.mxu0 %v573
        %3320 = vmatpush.msra.mxu0 %v509
        %3321 = vmatpush.msra.mxu0 %v445
        %3322 = vmatpush.msra.mxu0 %v381
        %3323 = vmatpush.msra.mxu0 %v317
        %3324 = vmatpush.msra.mxu0 %v253
        %3325 = vmatmul.f32.gmra.mxu0 %v2430
        %v3326 = vpop.f32.mrf.mxu0
        %v3327 = vadd.f32 %v2317, %v3326
        %3328 = vdwg.mxu0
        %3329 = vmatpush.msra.mxu0 %v2489
        %3330 = vmatpush.msra.mxu0 %v2173
        %3331 = vmatpush.msra.mxu0 %v2109
        %3332 = vmatpush.msra.mxu0 %v2045
        %3333 = vmatpush.msra.mxu0 %v1981
        %3334 = vmatpush.msra.mxu0 %v1917
        %3335 = vmatpush.msra.mxu0 %v1853
        %3336 = vmatpush.msra.mxu0 %v1789
        %3337 = vmatpush.msra.mxu0 %v1725
        %3338 = vmatpush.msra.mxu0 %v1661
        %3339 = vmatpush.msra.mxu0 %v1597
        %3340 = vmatpush.msra.mxu0 %v1533
        %3341 = vmatpush.msra.mxu0 %v1469
        %3342 = vmatpush.msra.mxu0 %v1405
        %3343 = vmatpush.msra.mxu0 %v1341
        %3344 = vmatpush.msra.mxu0 %v1277
        %3345 = vmatmul.f32.gmra.mxu0 %v2434
        %v3346 = vpop.f32.mrf.mxu0
        %v3347 = vadd.f32 %v3327, %v3346
        %3348 = vdwg.mxu0
        %3349 = vmatpush.msra.mxu0 %v1214
        %3350 = vmatpush.msra.mxu0 %v1150
        %3351 = vmatpush.msra.mxu0 %v1086
        %3352 = vmatpush.msra.mxu0 %v1022
        %3353 = vmatpush.msra.mxu0 %v958
        %3354 = vmatpush.msra.mxu0 %v894
        %3355 = vmatpush.msra.mxu0 %v830
        %3356 = vmatpush.msra.mxu0 %v766
        %3357 = vmatpush.msra.mxu0 %v702
        %3358 = vmatpush.msra.mxu0 %v638
        %3359 = vmatpush.msra.mxu0 %v574
        %3360 = vmatpush.msra.mxu0 %v510
        %3361 = vmatpush.msra.mxu0 %v446
        %3362 = vmatpush.msra.mxu0 %v382
        %3363 = vmatpush.msra.mxu0 %v318
        %3364 = vmatpush.msra.mxu0 %v254
        %3365 = vmatmul.f32.gmra.mxu0 %v2430
        %v3366 = vpop.f32.mrf.mxu0
        %v3367 = vadd.f32 %v2318, %v3366
        %3368 = vdwg.mxu0
        %3369 = vmatpush.msra.mxu0 %v2492
        %3370 = vmatpush.msra.mxu0 %v2174
        %3371 = vmatpush.msra.mxu0 %v2110
        %3372 = vmatpush.msra.mxu0 %v2046
        %3373 = vmatpush.msra.mxu0 %v1982
        %3374 = vmatpush.msra.mxu0 %v1918
        %3375 = vmatpush.msra.mxu0 %v1854
        %3376 = vmatpush.msra.mxu0 %v1790
        %3377 = vmatpush.msra.mxu0 %v1726
        %3378 = vmatpush.msra.mxu0 %v1662
        %3379 = vmatpush.msra.mxu0 %v1598
        %3380 = vmatpush.msra.mxu0 %v1534
        %3381 = vmatpush.msra.mxu0 %v1470
        %3382 = vmatpush.msra.mxu0 %v1406
        %3383 = vmatpush.msra.mxu0 %v1342
        %3384 = vmatpush.msra.mxu0 %v1278
        %3385 = vmatmul.f32.gmra.mxu0 %v2434
        %v3386 = vpop.f32.mrf.mxu0
        %v3387 = vadd.f32 %v3367, %v3386
        %3388 = vdwg.mxu0
        %3389 = vmatpush.msra.mxu0 %v1215
        %3390 = vmatpush.msra.mxu0 %v1151
        %3391 = vmatpush.msra.mxu0 %v1087
        %3392 = vmatpush.msra.mxu0 %v1023
        %3393 = vmatpush.msra.mxu0 %v959
        %3394 = vmatpush.msra.mxu0 %v895
        %3395 = vmatpush.msra.mxu0 %v831
        %3396 = vmatpush.msra.mxu0 %v767
        %3397 = vmatpush.msra.mxu0 %v703
        %3398 = vmatpush.msra.mxu0 %v639
        %3399 = vmatpush.msra.mxu0 %v575
        %3400 = vmatpush.msra.mxu0 %v511
        %3401 = vmatpush.msra.mxu0 %v447
        %3402 = vmatpush.msra.mxu0 %v383
        %3403 = vmatpush.msra.mxu0 %v319
        %3404 = vmatpush.msra.mxu0 %v255
        %3405 = vmatmul.f32.gmra.mxu0 %v2430
        %v3406 = vpop.f32.mrf.mxu0
        %v3407 = vadd.f32 %v2319, %v3406
        %3408 = vdwg.mxu0
        %3409 = vmatpush.msra.mxu0 %v2495
        %3410 = vmatpush.msra.mxu0 %v2175
        %3411 = vmatpush.msra.mxu0 %v2111
        %3412 = vmatpush.msra.mxu0 %v2047
        %3413 = vmatpush.msra.mxu0 %v1983
        %3414 = vmatpush.msra.mxu0 %v1919
        %3415 = vmatpush.msra.mxu0 %v1855
        %3416 = vmatpush.msra.mxu0 %v1791
        %3417 = vmatpush.msra.mxu0 %v1727
        %3418 = vmatpush.msra.mxu0 %v1663
        %3419 = vmatpush.msra.mxu0 %v1599
        %3420 = vmatpush.msra.mxu0 %v1535
        %3421 = vmatpush.msra.mxu0 %v1471
        %3422 = vmatpush.msra.mxu0 %v1407
        %3423 = vmatpush.msra.mxu0 %v1343
        %3424 = vmatpush.msra.mxu0 %v1279
        %3425 = vmatmul.f32.gmra.mxu0 %v2434
        %v3426 = vpop.f32.mrf.mxu0
        %v3427 = vadd.f32 %v3407, %v3426
        %3428 = vdwg.mxu0
        %3429 = vmatpush.msra.mxu0 %v1216
        %3430 = vmatpush.msra.mxu0 %v1152
        %3431 = vmatpush.msra.mxu0 %v1088
        %3432 = vmatpush.msra.mxu0 %v1024
        %3433 = vmatpush.msra.mxu0 %v960
        %3434 = vmatpush.msra.mxu0 %v896
        %3435 = vmatpush.msra.mxu0 %v832
        %3436 = vmatpush.msra.mxu0 %v768
        %3437 = vmatpush.msra.mxu0 %v704
        %3438 = vmatpush.msra.mxu0 %v640
        %3439 = vmatpush.msra.mxu0 %v576
        %3440 = vmatpush.msra.mxu0 %v512
        %3441 = vmatpush.msra.mxu0 %v448
        %3442 = vmatpush.msra.mxu0 %v384
        %3443 = vmatpush.msra.mxu0 %v320
        %3444 = vmatpush.msra.mxu0 %v256
        %3445 = vmatmul.f32.gmra.mxu0 %v2430
        %v3446 = vpop.f32.mrf.mxu0
        %v3447 = vadd.f32 %v2320, %v3446
        %3448 = vdwg.mxu0
        %3449 = vmatpush.msra.mxu0 %v2498
        %3450 = vmatpush.msra.mxu0 %v2176
        %3451 = vmatpush.msra.mxu0 %v2112
        %3452 = vmatpush.msra.mxu0 %v2048
        %3453 = vmatpush.msra.mxu0 %v1984
        %3454 = vmatpush.msra.mxu0 %v1920
        %3455 = vmatpush.msra.mxu0 %v1856
        %3456 = vmatpush.msra.mxu0 %v1792
        %3457 = vmatpush.msra.mxu0 %v1728
        %3458 = vmatpush.msra.mxu0 %v1664
        %3459 = vmatpush.msra.mxu0 %v1600
        %3460 = vmatpush.msra.mxu0 %v1536
        %3461 = vmatpush.msra.mxu0 %v1472
        %3462 = vmatpush.msra.mxu0 %v1408
        %3463 = vmatpush.msra.mxu0 %v1344
        %3464 = vmatpush.msra.mxu0 %v1280
        %3465 = vmatmul.f32.gmra.mxu0 %v2434
        %v3466 = vpop.f32.mrf.mxu0
        %v3467 = vadd.f32 %v3447, %v3466
        %3468 = vdwg.mxu0
        %3469 = vmatpush.msra.mxu0 %v1217
        %3470 = vmatpush.msra.mxu0 %v1153
        %3471 = vmatpush.msra.mxu0 %v1089
        %3472 = vmatpush.msra.mxu0 %v1025
        %3473 = vmatpush.msra.mxu0 %v961
        %3474 = vmatpush.msra.mxu0 %v897
        %3475 = vmatpush.msra.mxu0 %v833
        %3476 = vmatpush.msra.mxu0 %v769
        %3477 = vmatpush.msra.mxu0 %v705
        %3478 = vmatpush.msra.mxu0 %v641
        %3479 = vmatpush.msra.mxu0 %v577
        %3480 = vmatpush.msra.mxu0 %v513
        %3481 = vmatpush.msra.mxu0 %v449
        %3482 = vmatpush.msra.mxu0 %v385
        %3483 = vmatpush.msra.mxu0 %v321
        %3484 = vmatpush.msra.mxu0 %v257
        %3485 = vmatmul.f32.gmra.mxu0 %v2430
        %v3486 = vpop.f32.mrf.mxu0
        %v3487 = vadd.f32 %v2321, %v3486
        %3488 = vdwg.mxu0
        %3489 = vmatpush.msra.mxu0 %v2501
        %3490 = vmatpush.msra.mxu0 %v2177
        %3491 = vmatpush.msra.mxu0 %v2113
        %3492 = vmatpush.msra.mxu0 %v2049
        %3493 = vmatpush.msra.mxu0 %v1985
        %3494 = vmatpush.msra.mxu0 %v1921
        %3495 = vmatpush.msra.mxu0 %v1857
        %3496 = vmatpush.msra.mxu0 %v1793
        %3497 = vmatpush.msra.mxu0 %v1729
        %3498 = vmatpush.msra.mxu0 %v1665
        %3499 = vmatpush.msra.mxu0 %v1601
        %3500 = vmatpush.msra.mxu0 %v1537
        %3501 = vmatpush.msra.mxu0 %v1473
        %3502 = vmatpush.msra.mxu0 %v1409
        %3503 = vmatpush.msra.mxu0 %v1345
        %3504 = vmatpush.msra.mxu0 %v1281
        %3505 = vmatmul.f32.gmra.mxu0 %v2434
        %v3506 = vpop.f32.mrf.mxu0
        %v3507 = vadd.f32 %v3487, %v3506
        %3508 = vdwg.mxu0
        %3509 = vmatpush.msra.mxu0 %v1218
        %3510 = vmatpush.msra.mxu0 %v1154
        %3511 = vmatpush.msra.mxu0 %v1090
        %3512 = vmatpush.msra.mxu0 %v1026
        %3513 = vmatpush.msra.mxu0 %v962
        %3514 = vmatpush.msra.mxu0 %v898
        %3515 = vmatpush.msra.mxu0 %v834
        %3516 = vmatpush.msra.mxu0 %v770
        %3517 = vmatpush.msra.mxu0 %v706
        %3518 = vmatpush.msra.mxu0 %v642
        %3519 = vmatpush.msra.mxu0 %v578
        %3520 = vmatpush.msra.mxu0 %v514
        %3521 = vmatpush.msra.mxu0 %v450
        %3522 = vmatpush.msra.mxu0 %v386
        %3523 = vmatpush.msra.mxu0 %v322
        %3524 = vmatpush.msra.mxu0 %v258
        %3525 = vmatmul.f32.gmra.mxu0 %v2430
        %v3526 = vpop.f32.mrf.mxu0
        %v3527 = vadd.f32 %v2322, %v3526
        %3528 = vdwg.mxu0
        %3529 = vmatpush.msra.mxu0 %v2504
        %3530 = vmatpush.msra.mxu0 %v2178
        %3531 = vmatpush.msra.mxu0 %v2114
        %3532 = vmatpush.msra.mxu0 %v2050
        %3533 = vmatpush.msra.mxu0 %v1986
        %3534 = vmatpush.msra.mxu0 %v1922
        %3535 = vmatpush.msra.mxu0 %v1858
        %3536 = vmatpush.msra.mxu0 %v1794
        %3537 = vmatpush.msra.mxu0 %v1730
        %3538 = vmatpush.msra.mxu0 %v1666
        %3539 = vmatpush.msra.mxu0 %v1602
        %3540 = vmatpush.msra.mxu0 %v1538
        %3541 = vmatpush.msra.mxu0 %v1474
        %3542 = vmatpush.msra.mxu0 %v1410
        %3543 = vmatpush.msra.mxu0 %v1346
        %3544 = vmatpush.msra.mxu0 %v1282
        %3545 = vmatmul.f32.gmra.mxu0 %v2434
        %v3546 = vpop.f32.mrf.mxu0
        %v3547 = vadd.f32 %v3527, %v3546
        %3548 = vdwg.mxu0
        %3549 = vmatpush.msra.mxu0 %v1219
        %3550 = vmatpush.msra.mxu0 %v1155
        %3551 = vmatpush.msra.mxu0 %v1091
        %3552 = vmatpush.msra.mxu0 %v1027
        %3553 = vmatpush.msra.mxu0 %v963
        %3554 = vmatpush.msra.mxu0 %v899
        %3555 = vmatpush.msra.mxu0 %v835
        %3556 = vmatpush.msra.mxu0 %v771
        %3557 = vmatpush.msra.mxu0 %v707
        %3558 = vmatpush.msra.mxu0 %v643
        %3559 = vmatpush.msra.mxu0 %v579
        %3560 = vmatpush.msra.mxu0 %v515
        %3561 = vmatpush.msra.mxu0 %v451
        %3562 = vmatpush.msra.mxu0 %v387
        %3563 = vmatpush.msra.mxu0 %v323
        %3564 = vmatpush.msra.mxu0 %v259
        %3565 = vmatmul.f32.gmra.mxu0 %v2430
        %v3566 = vpop.f32.mrf.mxu0
        %v3567 = vadd.f32 %v2323, %v3566
        %3568 = vdwg.mxu0
        %3569 = vmatpush.msra.mxu0 %v2507
        %3570 = vmatpush.msra.mxu0 %v2179
        %3571 = vmatpush.msra.mxu0 %v2115
        %3572 = vmatpush.msra.mxu0 %v2051
        %3573 = vmatpush.msra.mxu0 %v1987
        %3574 = vmatpush.msra.mxu0 %v1923
        %3575 = vmatpush.msra.mxu0 %v1859
        %3576 = vmatpush.msra.mxu0 %v1795
        %3577 = vmatpush.msra.mxu0 %v1731
        %3578 = vmatpush.msra.mxu0 %v1667
        %3579 = vmatpush.msra.mxu0 %v1603
        %3580 = vmatpush.msra.mxu0 %v1539
        %3581 = vmatpush.msra.mxu0 %v1475
        %3582 = vmatpush.msra.mxu0 %v1411
        %3583 = vmatpush.msra.mxu0 %v1347
        %3584 = vmatpush.msra.mxu0 %v1283
        %3585 = vmatmul.f32.gmra.mxu0 %v2434
        %v3586 = vpop.f32.mrf.mxu0
        %v3587 = vadd.f32 %v3567, %v3586
        %3588 = vdwg.mxu0
        %3589 = vmatpush.msra.mxu0 %v1220
        %3590 = vmatpush.msra.mxu0 %v1156
        %3591 = vmatpush.msra.mxu0 %v1092
        %3592 = vmatpush.msra.mxu0 %v1028
        %3593 = vmatpush.msra.mxu0 %v964
        %3594 = vmatpush.msra.mxu0 %v900
        %3595 = vmatpush.msra.mxu0 %v836
        %3596 = vmatpush.msra.mxu0 %v772
        %3597 = vmatpush.msra.mxu0 %v708
        %3598 = vmatpush.msra.mxu0 %v644
        %3599 = vmatpush.msra.mxu0 %v580
        %3600 = vmatpush.msra.mxu0 %v516
        %3601 = vmatpush.msra.mxu0 %v452
        %3602 = vmatpush.msra.mxu0 %v388
        %3603 = vmatpush.msra.mxu0 %v324
        %3604 = vmatpush.msra.mxu0 %v260
        %3605 = vmatmul.f32.gmra.mxu0 %v2430
        %v3606 = vpop.f32.mrf.mxu0
        %v3607 = vadd.f32 %v2324, %v3606
        %3608 = vdwg.mxu0
        %3609 = vmatpush.msra.mxu0 %v2510
        %3610 = vmatpush.msra.mxu0 %v2180
        %3611 = vmatpush.msra.mxu0 %v2116
        %3612 = vmatpush.msra.mxu0 %v2052
        %3613 = vmatpush.msra.mxu0 %v1988
        %3614 = vmatpush.msra.mxu0 %v1924
        %3615 = vmatpush.msra.mxu0 %v1860
        %3616 = vmatpush.msra.mxu0 %v1796
        %3617 = vmatpush.msra.mxu0 %v1732
        %3618 = vmatpush.msra.mxu0 %v1668
        %3619 = vmatpush.msra.mxu0 %v1604
        %3620 = vmatpush.msra.mxu0 %v1540
        %3621 = vmatpush.msra.mxu0 %v1476
        %3622 = vmatpush.msra.mxu0 %v1412
        %3623 = vmatpush.msra.mxu0 %v1348
        %3624 = vmatpush.msra.mxu0 %v1284
        %3625 = vmatmul.f32.gmra.mxu0 %v2434
        %v3626 = vpop.f32.mrf.mxu0
        %v3627 = vadd.f32 %v3607, %v3626
        %3628 = vdwg.mxu0
        %3629 = vmatpush.msra.mxu0 %v1221
        %3630 = vmatpush.msra.mxu0 %v1157
        %3631 = vmatpush.msra.mxu0 %v1093
        %3632 = vmatpush.msra.mxu0 %v1029
        %3633 = vmatpush.msra.mxu0 %v965
        %3634 = vmatpush.msra.mxu0 %v901
        %3635 = vmatpush.msra.mxu0 %v837
        %3636 = vmatpush.msra.mxu0 %v773
        %3637 = vmatpush.msra.mxu0 %v709
        %3638 = vmatpush.msra.mxu0 %v645
        %3639 = vmatpush.msra.mxu0 %v581
        %3640 = vmatpush.msra.mxu0 %v517
        %3641 = vmatpush.msra.mxu0 %v453
        %3642 = vmatpush.msra.mxu0 %v389
        %3643 = vmatpush.msra.mxu0 %v325
        %3644 = vmatpush.msra.mxu0 %v261
        %3645 = vmatmul.f32.gmra.mxu0 %v2430
        %v3646 = vpop.f32.mrf.mxu0
        %v3647 = vadd.f32 %v2325, %v3646
        %3648 = vdwg.mxu0
        %3649 = vmatpush.msra.mxu0 %v2513
        %3650 = vmatpush.msra.mxu0 %v2181
        %3651 = vmatpush.msra.mxu0 %v2117
        %3652 = vmatpush.msra.mxu0 %v2053
        %3653 = vmatpush.msra.mxu0 %v1989
        %3654 = vmatpush.msra.mxu0 %v1925
        %3655 = vmatpush.msra.mxu0 %v1861
        %3656 = vmatpush.msra.mxu0 %v1797
        %3657 = vmatpush.msra.mxu0 %v1733
        %3658 = vmatpush.msra.mxu0 %v1669
        %3659 = vmatpush.msra.mxu0 %v1605
        %3660 = vmatpush.msra.mxu0 %v1541
        %3661 = vmatpush.msra.mxu0 %v1477
        %3662 = vmatpush.msra.mxu0 %v1413
        %3663 = vmatpush.msra.mxu0 %v1349
        %3664 = vmatpush.msra.mxu0 %v1285
        %3665 = vmatmul.f32.gmra.mxu0 %v2434
        %v3666 = vpop.f32.mrf.mxu0
        %v3667 = vadd.f32 %v3647, %v3666
        %3668 = vdwg.mxu0
        %3669 = vmatpush.msra.mxu0 %v1222
        %3670 = vmatpush.msra.mxu0 %v1158
        %3671 = vmatpush.msra.mxu0 %v1094
        %3672 = vmatpush.msra.mxu0 %v1030
        %3673 = vmatpush.msra.mxu0 %v966
        %3674 = vmatpush.msra.mxu0 %v902
        %3675 = vmatpush.msra.mxu0 %v838
        %3676 = vmatpush.msra.mxu0 %v774
        %3677 = vmatpush.msra.mxu0 %v710
        %3678 = vmatpush.msra.mxu0 %v646
        %3679 = vmatpush.msra.mxu0 %v582
        %3680 = vmatpush.msra.mxu0 %v518
        %3681 = vmatpush.msra.mxu0 %v454
        %3682 = vmatpush.msra.mxu0 %v390
        %3683 = vmatpush.msra.mxu0 %v326
        %3684 = vmatpush.msra.mxu0 %v262
        %3685 = vmatmul.f32.gmra.mxu0 %v2430
        %v3686 = vpop.f32.mrf.mxu0
        %v3687 = vadd.f32 %v2326, %v3686
        %3688 = vdwg.mxu0
        %3689 = vmatpush.msra.mxu0 %v2516
        %3690 = vmatpush.msra.mxu0 %v2182
        %3691 = vmatpush.msra.mxu0 %v2118
        %3692 = vmatpush.msra.mxu0 %v2054
        %3693 = vmatpush.msra.mxu0 %v1990
        %3694 = vmatpush.msra.mxu0 %v1926
        %3695 = vmatpush.msra.mxu0 %v1862
        %3696 = vmatpush.msra.mxu0 %v1798
        %3697 = vmatpush.msra.mxu0 %v1734
        %3698 = vmatpush.msra.mxu0 %v1670
        %3699 = vmatpush.msra.mxu0 %v1606
        %3700 = vmatpush.msra.mxu0 %v1542
        %3701 = vmatpush.msra.mxu0 %v1478
        %3702 = vmatpush.msra.mxu0 %v1414
        %3703 = vmatpush.msra.mxu0 %v1350
        %3704 = vmatpush.msra.mxu0 %v1286
        %3705 = vmatmul.f32.gmra.mxu0 %v2434
        %v3706 = vpop.f32.mrf.mxu0
        %v3707 = vadd.f32 %v3687, %v3706
        %3708 = vdwg.mxu0
        %3709 = vmatpush.msra.mxu0 %v1223
        %3710 = vmatpush.msra.mxu0 %v1159
        %3711 = vmatpush.msra.mxu0 %v1095
        %3712 = vmatpush.msra.mxu0 %v1031
        %3713 = vmatpush.msra.mxu0 %v967
        %3714 = vmatpush.msra.mxu0 %v903
        %3715 = vmatpush.msra.mxu0 %v839
        %3716 = vmatpush.msra.mxu0 %v775
        %3717 = vmatpush.msra.mxu0 %v711
        %3718 = vmatpush.msra.mxu0 %v647
        %3719 = vmatpush.msra.mxu0 %v583
        %3720 = vmatpush.msra.mxu0 %v519
        %3721 = vmatpush.msra.mxu0 %v455
        %3722 = vmatpush.msra.mxu0 %v391
        %3723 = vmatpush.msra.mxu0 %v327
        %3724 = vmatpush.msra.mxu0 %v263
        %3725 = vmatmul.f32.gmra.mxu0 %v2430
        %v3726 = vpop.f32.mrf.mxu0
        %v3727 = vadd.f32 %v2327, %v3726
        %3728 = vdwg.mxu0
        %3729 = vmatpush.msra.mxu0 %v2519
        %3730 = vmatpush.msra.mxu0 %v2183
        %3731 = vmatpush.msra.mxu0 %v2119
        %3732 = vmatpush.msra.mxu0 %v2055
        %3733 = vmatpush.msra.mxu0 %v1991
        %3734 = vmatpush.msra.mxu0 %v1927
        %3735 = vmatpush.msra.mxu0 %v1863
        %3736 = vmatpush.msra.mxu0 %v1799
        %3737 = vmatpush.msra.mxu0 %v1735
        %3738 = vmatpush.msra.mxu0 %v1671
        %3739 = vmatpush.msra.mxu0 %v1607
        %3740 = vmatpush.msra.mxu0 %v1543
        %3741 = vmatpush.msra.mxu0 %v1479
        %3742 = vmatpush.msra.mxu0 %v1415
        %3743 = vmatpush.msra.mxu0 %v1351
        %3744 = vmatpush.msra.mxu0 %v1287
        %3745 = vmatmul.f32.gmra.mxu0 %v2434
        %v3746 = vpop.f32.mrf.mxu0
        %v3747 = vadd.f32 %v3727, %v3746
        %3748 = vdwg.mxu0
        %3749 = vmatpush.msra.mxu0 %v1224
        %3750 = vmatpush.msra.mxu0 %v1160
        %3751 = vmatpush.msra.mxu0 %v1096
        %3752 = vmatpush.msra.mxu0 %v1032
        %3753 = vmatpush.msra.mxu0 %v968
        %3754 = vmatpush.msra.mxu0 %v904
        %3755 = vmatpush.msra.mxu0 %v840
        %3756 = vmatpush.msra.mxu0 %v776
        %3757 = vmatpush.msra.mxu0 %v712
        %3758 = vmatpush.msra.mxu0 %v648
        %3759 = vmatpush.msra.mxu0 %v584
        %3760 = vmatpush.msra.mxu0 %v520
        %3761 = vmatpush.msra.mxu0 %v456
        %3762 = vmatpush.msra.mxu0 %v392
        %3763 = vmatpush.msra.mxu0 %v328
        %3764 = vmatpush.msra.mxu0 %v264
        %3765 = vmatmul.f32.gmra.mxu0 %v2430
        %v3766 = vpop.f32.mrf.mxu0
        %v3767 = vadd.f32 %v2328, %v3766
        %3768 = vdwg.mxu0
        %3769 = vmatpush.msra.mxu0 %v2522
        %3770 = vmatpush.msra.mxu0 %v2184
        %3771 = vmatpush.msra.mxu0 %v2120
        %3772 = vmatpush.msra.mxu0 %v2056
        %3773 = vmatpush.msra.mxu0 %v1992
        %3774 = vmatpush.msra.mxu0 %v1928
        %3775 = vmatpush.msra.mxu0 %v1864
        %3776 = vmatpush.msra.mxu0 %v1800
        %3777 = vmatpush.msra.mxu0 %v1736
        %3778 = vmatpush.msra.mxu0 %v1672
        %3779 = vmatpush.msra.mxu0 %v1608
        %3780 = vmatpush.msra.mxu0 %v1544
        %3781 = vmatpush.msra.mxu0 %v1480
        %3782 = vmatpush.msra.mxu0 %v1416
        %3783 = vmatpush.msra.mxu0 %v1352
        %3784 = vmatpush.msra.mxu0 %v1288
        %3785 = vmatmul.f32.gmra.mxu0 %v2434
        %v3786 = vpop.f32.mrf.mxu0
        %v3787 = vadd.f32 %v3767, %v3786
        %3788 = vdwg.mxu0
        %3789 = vmatpush.msra.mxu0 %v1225
        %3790 = vmatpush.msra.mxu0 %v1161
        %3791 = vmatpush.msra.mxu0 %v1097
        %3792 = vmatpush.msra.mxu0 %v1033
        %3793 = vmatpush.msra.mxu0 %v969
        %3794 = vmatpush.msra.mxu0 %v905
        %3795 = vmatpush.msra.mxu0 %v841
        %3796 = vmatpush.msra.mxu0 %v777
        %3797 = vmatpush.msra.mxu0 %v713
        %3798 = vmatpush.msra.mxu0 %v649
        %3799 = vmatpush.msra.mxu0 %v585
        %3800 = vmatpush.msra.mxu0 %v521
        %3801 = vmatpush.msra.mxu0 %v457
        %3802 = vmatpush.msra.mxu0 %v393
        %3803 = vmatpush.msra.mxu0 %v329
        %3804 = vmatpush.msra.mxu0 %v265
        %3805 = vmatmul.f32.gmra.mxu0 %v2430
        %v3806 = vpop.f32.mrf.mxu0
        %v3807 = vadd.f32 %v2329, %v3806
        %3808 = vdwg.mxu0
        %3809 = vmatpush.msra.mxu0 %v2525
        %3810 = vmatpush.msra.mxu0 %v2185
        %3811 = vmatpush.msra.mxu0 %v2121
        %3812 = vmatpush.msra.mxu0 %v2057
        %3813 = vmatpush.msra.mxu0 %v1993
        %3814 = vmatpush.msra.mxu0 %v1929
        %3815 = vmatpush.msra.mxu0 %v1865
        %3816 = vmatpush.msra.mxu0 %v1801
        %3817 = vmatpush.msra.mxu0 %v1737
        %3818 = vmatpush.msra.mxu0 %v1673
        %3819 = vmatpush.msra.mxu0 %v1609
        %3820 = vmatpush.msra.mxu0 %v1545
        %3821 = vmatpush.msra.mxu0 %v1481
        %3822 = vmatpush.msra.mxu0 %v1417
        %3823 = vmatpush.msra.mxu0 %v1353
        %3824 = vmatpush.msra.mxu0 %v1289
        %3825 = vmatmul.f32.gmra.mxu0 %v2434
        %v3826 = vpop.f32.mrf.mxu0
        %v3827 = vadd.f32 %v3807, %v3826
        %3828 = vdwg.mxu0
        %3829 = vmatpush.msra.mxu0 %v1226
        %3830 = vmatpush.msra.mxu0 %v1162
        %3831 = vmatpush.msra.mxu0 %v1098
        %3832 = vmatpush.msra.mxu0 %v1034
        %3833 = vmatpush.msra.mxu0 %v970
        %3834 = vmatpush.msra.mxu0 %v906
        %3835 = vmatpush.msra.mxu0 %v842
        %3836 = vmatpush.msra.mxu0 %v778
        %3837 = vmatpush.msra.mxu0 %v714
        %3838 = vmatpush.msra.mxu0 %v650
        %3839 = vmatpush.msra.mxu0 %v586
        %3840 = vmatpush.msra.mxu0 %v522
        %3841 = vmatpush.msra.mxu0 %v458
        %3842 = vmatpush.msra.mxu0 %v394
        %3843 = vmatpush.msra.mxu0 %v330
        %3844 = vmatpush.msra.mxu0 %v266
        %3845 = vmatmul.f32.gmra.mxu0 %v2430
        %v3846 = vpop.f32.mrf.mxu0
        %v3847 = vadd.f32 %v2330, %v3846
        %3848 = vdwg.mxu0
        %3849 = vmatpush.msra.mxu0 %v2528
        %3850 = vmatpush.msra.mxu0 %v2186
        %3851 = vmatpush.msra.mxu0 %v2122
        %3852 = vmatpush.msra.mxu0 %v2058
        %3853 = vmatpush.msra.mxu0 %v1994
        %3854 = vmatpush.msra.mxu0 %v1930
        %3855 = vmatpush.msra.mxu0 %v1866
        %3856 = vmatpush.msra.mxu0 %v1802
        %3857 = vmatpush.msra.mxu0 %v1738
        %3858 = vmatpush.msra.mxu0 %v1674
        %3859 = vmatpush.msra.mxu0 %v1610
        %3860 = vmatpush.msra.mxu0 %v1546
        %3861 = vmatpush.msra.mxu0 %v1482
        %3862 = vmatpush.msra.mxu0 %v1418
        %3863 = vmatpush.msra.mxu0 %v1354
        %3864 = vmatpush.msra.mxu0 %v1290
        %3865 = vmatmul.f32.gmra.mxu0 %v2434
        %v3866 = vpop.f32.mrf.mxu0
        %v3867 = vadd.f32 %v3847, %v3866
        %3868 = vdwg.mxu0
        %3869 = vmatpush.msra.mxu0 %v1227
        %3870 = vmatpush.msra.mxu0 %v1163
        %3871 = vmatpush.msra.mxu0 %v1099
        %3872 = vmatpush.msra.mxu0 %v1035
        %3873 = vmatpush.msra.mxu0 %v971
        %3874 = vmatpush.msra.mxu0 %v907
        %3875 = vmatpush.msra.mxu0 %v843
        %3876 = vmatpush.msra.mxu0 %v779
        %3877 = vmatpush.msra.mxu0 %v715
        %3878 = vmatpush.msra.mxu0 %v651
        %3879 = vmatpush.msra.mxu0 %v587
        %3880 = vmatpush.msra.mxu0 %v523
        %3881 = vmatpush.msra.mxu0 %v459
        %3882 = vmatpush.msra.mxu0 %v395
        %3883 = vmatpush.msra.mxu0 %v331
        %3884 = vmatpush.msra.mxu0 %v267
        %3885 = vmatmul.f32.gmra.mxu0 %v2430
        %v3886 = vpop.f32.mrf.mxu0
        %v3887 = vadd.f32 %v2331, %v3886
        %3888 = vdwg.mxu0
        %3889 = vmatpush.msra.mxu0 %v2531
        %3890 = vmatpush.msra.mxu0 %v2187
        %3891 = vmatpush.msra.mxu0 %v2123
        %3892 = vmatpush.msra.mxu0 %v2059
        %3893 = vmatpush.msra.mxu0 %v1995
        %3894 = vmatpush.msra.mxu0 %v1931
        %3895 = vmatpush.msra.mxu0 %v1867
        %3896 = vmatpush.msra.mxu0 %v1803
        %3897 = vmatpush.msra.mxu0 %v1739
        %3898 = vmatpush.msra.mxu0 %v1675
        %3899 = vmatpush.msra.mxu0 %v1611
        %3900 = vmatpush.msra.mxu0 %v1547
        %3901 = vmatpush.msra.mxu0 %v1483
        %3902 = vmatpush.msra.mxu0 %v1419
        %3903 = vmatpush.msra.mxu0 %v1355
        %3904 = vmatpush.msra.mxu0 %v1291
        %3905 = vmatmul.f32.gmra.mxu0 %v2434
        %v3906 = vpop.f32.mrf.mxu0
        %v3907 = vadd.f32 %v3887, %v3906
        %3908 = vdwg.mxu0
        %3909 = vmatpush.msra.mxu0 %v1228
        %3910 = vmatpush.msra.mxu0 %v1164
        %3911 = vmatpush.msra.mxu0 %v1100
        %3912 = vmatpush.msra.mxu0 %v1036
        %3913 = vmatpush.msra.mxu0 %v972
        %3914 = vmatpush.msra.mxu0 %v908
        %3915 = vmatpush.msra.mxu0 %v844
        %3916 = vmatpush.msra.mxu0 %v780
        %3917 = vmatpush.msra.mxu0 %v716
        %3918 = vmatpush.msra.mxu0 %v652
        %3919 = vmatpush.msra.mxu0 %v588
        %3920 = vmatpush.msra.mxu0 %v524
        %3921 = vmatpush.msra.mxu0 %v460
        %3922 = vmatpush.msra.mxu0 %v396
        %3923 = vmatpush.msra.mxu0 %v332
        %3924 = vmatpush.msra.mxu0 %v268
        %3925 = vmatmul.f32.gmra.mxu0 %v2430
        %v3926 = vpop.f32.mrf.mxu0
        %v3927 = vadd.f32 %v2332, %v3926
        %3928 = vdwg.mxu0
        %3929 = vmatpush.msra.mxu0 %v2534
        %3930 = vmatpush.msra.mxu0 %v2188
        %3931 = vmatpush.msra.mxu0 %v2124
        %3932 = vmatpush.msra.mxu0 %v2060
        %3933 = vmatpush.msra.mxu0 %v1996
        %3934 = vmatpush.msra.mxu0 %v1932
        %3935 = vmatpush.msra.mxu0 %v1868
        %3936 = vmatpush.msra.mxu0 %v1804
        %3937 = vmatpush.msra.mxu0 %v1740
        %3938 = vmatpush.msra.mxu0 %v1676
        %3939 = vmatpush.msra.mxu0 %v1612
        %3940 = vmatpush.msra.mxu0 %v1548
        %3941 = vmatpush.msra.mxu0 %v1484
        %3942 = vmatpush.msra.mxu0 %v1420
        %3943 = vmatpush.msra.mxu0 %v1356
        %3944 = vmatpush.msra.mxu0 %v1292
        %3945 = vmatmul.f32.gmra.mxu0 %v2434
        %v3946 = vpop.f32.mrf.mxu0
        %v3947 = vadd.f32 %v3927, %v3946
        %3948 = vdwg.mxu0
        %3949 = vmatpush.msra.mxu0 %v1229
        %3950 = vmatpush.msra.mxu0 %v1165
        %3951 = vmatpush.msra.mxu0 %v1101
        %3952 = vmatpush.msra.mxu0 %v1037
        %3953 = vmatpush.msra.mxu0 %v973
        %3954 = vmatpush.msra.mxu0 %v909
        %3955 = vmatpush.msra.mxu0 %v845
        %3956 = vmatpush.msra.mxu0 %v781
        %3957 = vmatpush.msra.mxu0 %v717
        %3958 = vmatpush.msra.mxu0 %v653
        %3959 = vmatpush.msra.mxu0 %v589
        %3960 = vmatpush.msra.mxu0 %v525
        %3961 = vmatpush.msra.mxu0 %v461
        %3962 = vmatpush.msra.mxu0 %v397
        %3963 = vmatpush.msra.mxu0 %v333
        %3964 = vmatpush.msra.mxu0 %v269
        %3965 = vmatmul.f32.gmra.mxu0 %v2430
        %v3966 = vpop.f32.mrf.mxu0
        %v3967 = vadd.f32 %v2333, %v3966
        %3968 = vdwg.mxu0
        %3969 = vmatpush.msra.mxu0 %v2537
        %3970 = vmatpush.msra.mxu0 %v2189
        %3971 = vmatpush.msra.mxu0 %v2125
        %3972 = vmatpush.msra.mxu0 %v2061
        %3973 = vmatpush.msra.mxu0 %v1997
        %3974 = vmatpush.msra.mxu0 %v1933
        %3975 = vmatpush.msra.mxu0 %v1869
        %3976 = vmatpush.msra.mxu0 %v1805
        %3977 = vmatpush.msra.mxu0 %v1741
        %3978 = vmatpush.msra.mxu0 %v1677
        %3979 = vmatpush.msra.mxu0 %v1613
        %3980 = vmatpush.msra.mxu0 %v1549
        %3981 = vmatpush.msra.mxu0 %v1485
        %3982 = vmatpush.msra.mxu0 %v1421
        %3983 = vmatpush.msra.mxu0 %v1357
        %3984 = vmatpush.msra.mxu0 %v1293
        %3985 = vmatmul.f32.gmra.mxu0 %v2434
        %v3986 = vpop.f32.mrf.mxu0
        %v3987 = vadd.f32 %v3967, %v3986
        %3988 = vdwg.mxu0
        %3989 = vmatpush.msra.mxu0 %v1230
        %3990 = vmatpush.msra.mxu0 %v1166
        %3991 = vmatpush.msra.mxu0 %v1102
        %3992 = vmatpush.msra.mxu0 %v1038
        %3993 = vmatpush.msra.mxu0 %v974
        %3994 = vmatpush.msra.mxu0 %v910
        %3995 = vmatpush.msra.mxu0 %v846
        %3996 = vmatpush.msra.mxu0 %v782
        %3997 = vmatpush.msra.mxu0 %v718
        %3998 = vmatpush.msra.mxu0 %v654
        %3999 = vmatpush.msra.mxu0 %v590
        %4000 = vmatpush.msra.mxu0 %v526
        %4001 = vmatpush.msra.mxu0 %v462
        %4002 = vmatpush.msra.mxu0 %v398
        %4003 = vmatpush.msra.mxu0 %v334
        %4004 = vmatpush.msra.mxu0 %v270
        %4005 = vmatmul.f32.gmra.mxu0 %v2430
        %v4006 = vpop.f32.mrf.mxu0
        %v4007 = vadd.f32 %v2334, %v4006
        %4008 = vdwg.mxu0
        %4009 = vmatpush.msra.mxu0 %v2540
        %4010 = vmatpush.msra.mxu0 %v2190
        %4011 = vmatpush.msra.mxu0 %v2126
        %4012 = vmatpush.msra.mxu0 %v2062
        %4013 = vmatpush.msra.mxu0 %v1998
        %4014 = vmatpush.msra.mxu0 %v1934
        %4015 = vmatpush.msra.mxu0 %v1870
        %4016 = vmatpush.msra.mxu0 %v1806
        %4017 = vmatpush.msra.mxu0 %v1742
        %4018 = vmatpush.msra.mxu0 %v1678
        %4019 = vmatpush.msra.mxu0 %v1614
        %4020 = vmatpush.msra.mxu0 %v1550
        %4021 = vmatpush.msra.mxu0 %v1486
        %4022 = vmatpush.msra.mxu0 %v1422
        %4023 = vmatpush.msra.mxu0 %v1358
        %4024 = vmatpush.msra.mxu0 %v1294
        %4025 = vmatmul.f32.gmra.mxu0 %v2434
        %v4026 = vpop.f32.mrf.mxu0
        %v4027 = vadd.f32 %v4007, %v4026
        %4028 = vdwg.mxu0
        %4029 = vmatpush.msra.mxu0 %v1231
        %4030 = vmatpush.msra.mxu0 %v1167
        %4031 = vmatpush.msra.mxu0 %v1103
        %4032 = vmatpush.msra.mxu0 %v1039
        %4033 = vmatpush.msra.mxu0 %v975
        %4034 = vmatpush.msra.mxu0 %v911
        %4035 = vmatpush.msra.mxu0 %v847
        %4036 = vmatpush.msra.mxu0 %v783
        %4037 = vmatpush.msra.mxu0 %v719
        %4038 = vmatpush.msra.mxu0 %v655
        %4039 = vmatpush.msra.mxu0 %v591
        %4040 = vmatpush.msra.mxu0 %v527
        %4041 = vmatpush.msra.mxu0 %v463
        %4042 = vmatpush.msra.mxu0 %v399
        %4043 = vmatpush.msra.mxu0 %v335
        %4044 = vmatpush.msra.mxu0 %v271
        %4045 = vmatmul.f32.gmra.mxu0 %v2430
        %v4046 = vpop.f32.mrf.mxu0
        %v4047 = vadd.f32 %v2335, %v4046
        %4048 = vdwg.mxu0
        %4049 = vmatpush.msra.mxu0 %v2543
        %4050 = vmatpush.msra.mxu0 %v2191
        %4051 = vmatpush.msra.mxu0 %v2127
        %4052 = vmatpush.msra.mxu0 %v2063
        %4053 = vmatpush.msra.mxu0 %v1999
        %4054 = vmatpush.msra.mxu0 %v1935
        %4055 = vmatpush.msra.mxu0 %v1871
        %4056 = vmatpush.msra.mxu0 %v1807
        %4057 = vmatpush.msra.mxu0 %v1743
        %4058 = vmatpush.msra.mxu0 %v1679
        %4059 = vmatpush.msra.mxu0 %v1615
        %4060 = vmatpush.msra.mxu0 %v1551
        %4061 = vmatpush.msra.mxu0 %v1487
        %4062 = vmatpush.msra.mxu0 %v1423
        %4063 = vmatpush.msra.mxu0 %v1359
        %4064 = vmatpush.msra.mxu0 %v1295
        %4065 = vmatmul.f32.gmra.mxu0 %v2434
        %v4066 = vpop.f32.mrf.mxu0
        %v4067 = vadd.f32 %v4047, %v4066
        %4068 = vdwg.mxu0
        %4069 = vmatpush.msra.mxu0 %v1232
        %4070 = vmatpush.msra.mxu0 %v1168
        %4071 = vmatpush.msra.mxu0 %v1104
        %4072 = vmatpush.msra.mxu0 %v1040
        %4073 = vmatpush.msra.mxu0 %v976
        %4074 = vmatpush.msra.mxu0 %v912
        %4075 = vmatpush.msra.mxu0 %v848
        %4076 = vmatpush.msra.mxu0 %v784
        %4077 = vmatpush.msra.mxu0 %v720
        %4078 = vmatpush.msra.mxu0 %v656
        %4079 = vmatpush.msra.mxu0 %v592
        %4080 = vmatpush.msra.mxu0 %v528
        %4081 = vmatpush.msra.mxu0 %v464
        %4082 = vmatpush.msra.mxu0 %v400
        %4083 = vmatpush.msra.mxu0 %v336
        %4084 = vmatpush.msra.mxu0 %v272
        %4085 = vmatmul.f32.gmra.mxu0 %v2430
        %v4086 = vpop.f32.mrf.mxu0
        %v4087 = vadd.f32 %v2336, %v4086
        %4088 = vdwg.mxu0
        %4089 = vmatpush.msra.mxu0 %v2546
        %4090 = vmatpush.msra.mxu0 %v2192
        %4091 = vmatpush.msra.mxu0 %v2128
        %4092 = vmatpush.msra.mxu0 %v2064
        %4093 = vmatpush.msra.mxu0 %v2000
        %4094 = vmatpush.msra.mxu0 %v1936
        %4095 = vmatpush.msra.mxu0 %v1872
        %4096 = vmatpush.msra.mxu0 %v1808
        %4097 = vmatpush.msra.mxu0 %v1744
        %4098 = vmatpush.msra.mxu0 %v1680
        %4099 = vmatpush.msra.mxu0 %v1616
        %4100 = vmatpush.msra.mxu0 %v1552
        %4101 = vmatpush.msra.mxu0 %v1488
        %4102 = vmatpush.msra.mxu0 %v1424
        %4103 = vmatpush.msra.mxu0 %v1360
        %4104 = vmatpush.msra.mxu0 %v1296
        %4105 = vmatmul.f32.gmra.mxu0 %v2434
        %v4106 = vpop.f32.mrf.mxu0
        %v4107 = vadd.f32 %v4087, %v4106
        %4108 = vdwg.mxu0
        %4109 = vmatpush.msra.mxu0 %v1233
        %4110 = vmatpush.msra.mxu0 %v1169
        %4111 = vmatpush.msra.mxu0 %v1105
        %4112 = vmatpush.msra.mxu0 %v1041
        %4113 = vmatpush.msra.mxu0 %v977
        %4114 = vmatpush.msra.mxu0 %v913
        %4115 = vmatpush.msra.mxu0 %v849
        %4116 = vmatpush.msra.mxu0 %v785
        %4117 = vmatpush.msra.mxu0 %v721
        %4118 = vmatpush.msra.mxu0 %v657
        %4119 = vmatpush.msra.mxu0 %v593
        %4120 = vmatpush.msra.mxu0 %v529
        %4121 = vmatpush.msra.mxu0 %v465
        %4122 = vmatpush.msra.mxu0 %v401
        %4123 = vmatpush.msra.mxu0 %v337
        %4124 = vmatpush.msra.mxu0 %v273
        %4125 = vmatmul.f32.gmra.mxu0 %v2430
        %v4126 = vpop.f32.mrf.mxu0
        %v4127 = vadd.f32 %v2337, %v4126
        %4128 = vdwg.mxu0
        %4129 = vmatpush.msra.mxu0 %v2549
        %4130 = vmatpush.msra.mxu0 %v2193
        %4131 = vmatpush.msra.mxu0 %v2129
        %4132 = vmatpush.msra.mxu0 %v2065
        %4133 = vmatpush.msra.mxu0 %v2001
        %4134 = vmatpush.msra.mxu0 %v1937
        %4135 = vmatpush.msra.mxu0 %v1873
        %4136 = vmatpush.msra.mxu0 %v1809
        %4137 = vmatpush.msra.mxu0 %v1745
        %4138 = vmatpush.msra.mxu0 %v1681
        %4139 = vmatpush.msra.mxu0 %v1617
        %4140 = vmatpush.msra.mxu0 %v1553
        %4141 = vmatpush.msra.mxu0 %v1489
        %4142 = vmatpush.msra.mxu0 %v1425
        %4143 = vmatpush.msra.mxu0 %v1361
        %4144 = vmatpush.msra.mxu0 %v1297
        %4145 = vmatmul.f32.gmra.mxu0 %v2434
        %v4146 = vpop.f32.mrf.mxu0
        %v4147 = vadd.f32 %v4127, %v4146
        %4148 = vdwg.mxu0
        %4149 = vmatpush.msra.mxu0 %v1234
        %4150 = vmatpush.msra.mxu0 %v1170
        %4151 = vmatpush.msra.mxu0 %v1106
        %4152 = vmatpush.msra.mxu0 %v1042
        %4153 = vmatpush.msra.mxu0 %v978
        %4154 = vmatpush.msra.mxu0 %v914
        %4155 = vmatpush.msra.mxu0 %v850
        %4156 = vmatpush.msra.mxu0 %v786
        %4157 = vmatpush.msra.mxu0 %v722
        %4158 = vmatpush.msra.mxu0 %v658
        %4159 = vmatpush.msra.mxu0 %v594
        %4160 = vmatpush.msra.mxu0 %v530
        %4161 = vmatpush.msra.mxu0 %v466
        %4162 = vmatpush.msra.mxu0 %v402
        %4163 = vmatpush.msra.mxu0 %v338
        %4164 = vmatpush.msra.mxu0 %v274
        %4165 = vmatmul.f32.gmra.mxu0 %v2430
        %v4166 = vpop.f32.mrf.mxu0
        %v4167 = vadd.f32 %v2338, %v4166
        %4168 = vdwg.mxu0
        %4169 = vmatpush.msra.mxu0 %v2552
        %4170 = vmatpush.msra.mxu0 %v2194
        %4171 = vmatpush.msra.mxu0 %v2130
        %4172 = vmatpush.msra.mxu0 %v2066
        %4173 = vmatpush.msra.mxu0 %v2002
        %4174 = vmatpush.msra.mxu0 %v1938
        %4175 = vmatpush.msra.mxu0 %v1874
        %4176 = vmatpush.msra.mxu0 %v1810
        %4177 = vmatpush.msra.mxu0 %v1746
        %4178 = vmatpush.msra.mxu0 %v1682
        %4179 = vmatpush.msra.mxu0 %v1618
        %4180 = vmatpush.msra.mxu0 %v1554
        %4181 = vmatpush.msra.mxu0 %v1490
        %4182 = vmatpush.msra.mxu0 %v1426
        %4183 = vmatpush.msra.mxu0 %v1362
        %4184 = vmatpush.msra.mxu0 %v1298
        %4185 = vmatmul.f32.gmra.mxu0 %v2434
        %v4186 = vpop.f32.mrf.mxu0
        %v4187 = vadd.f32 %v4167, %v4186
        %4188 = vdwg.mxu0
        %4189 = vmatpush.msra.mxu0 %v1235
        %4190 = vmatpush.msra.mxu0 %v1171
        %4191 = vmatpush.msra.mxu0 %v1107
        %4192 = vmatpush.msra.mxu0 %v1043
        %4193 = vmatpush.msra.mxu0 %v979
        %4194 = vmatpush.msra.mxu0 %v915
        %4195 = vmatpush.msra.mxu0 %v851
        %4196 = vmatpush.msra.mxu0 %v787
        %4197 = vmatpush.msra.mxu0 %v723
        %4198 = vmatpush.msra.mxu0 %v659
        %4199 = vmatpush.msra.mxu0 %v595
        %4200 = vmatpush.msra.mxu0 %v531
        %4201 = vmatpush.msra.mxu0 %v467
        %4202 = vmatpush.msra.mxu0 %v403
        %4203 = vmatpush.msra.mxu0 %v339
        %4204 = vmatpush.msra.mxu0 %v275
        %4205 = vmatmul.f32.gmra.mxu0 %v2430
        %v4206 = vpop.f32.mrf.mxu0
        %v4207 = vadd.f32 %v2339, %v4206
        %4208 = vdwg.mxu0
        %4209 = vmatpush.msra.mxu0 %v2555
        %4210 = vmatpush.msra.mxu0 %v2195
        %4211 = vmatpush.msra.mxu0 %v2131
        %4212 = vmatpush.msra.mxu0 %v2067
        %4213 = vmatpush.msra.mxu0 %v2003
        %4214 = vmatpush.msra.mxu0 %v1939
        %4215 = vmatpush.msra.mxu0 %v1875
        %4216 = vmatpush.msra.mxu0 %v1811
        %4217 = vmatpush.msra.mxu0 %v1747
        %4218 = vmatpush.msra.mxu0 %v1683
        %4219 = vmatpush.msra.mxu0 %v1619
        %4220 = vmatpush.msra.mxu0 %v1555
        %4221 = vmatpush.msra.mxu0 %v1491
        %4222 = vmatpush.msra.mxu0 %v1427
        %4223 = vmatpush.msra.mxu0 %v1363
        %4224 = vmatpush.msra.mxu0 %v1299
        %4225 = vmatmul.f32.gmra.mxu0 %v2434
        %v4226 = vpop.f32.mrf.mxu0
        %v4227 = vadd.f32 %v4207, %v4226
        %4228 = vdwg.mxu0
        %4229 = vmatpush.msra.mxu0 %v1236
        %4230 = vmatpush.msra.mxu0 %v1172
        %4231 = vmatpush.msra.mxu0 %v1108
        %4232 = vmatpush.msra.mxu0 %v1044
        %4233 = vmatpush.msra.mxu0 %v980
        %4234 = vmatpush.msra.mxu0 %v916
        %4235 = vmatpush.msra.mxu0 %v852
        %4236 = vmatpush.msra.mxu0 %v788
        %4237 = vmatpush.msra.mxu0 %v724
        %4238 = vmatpush.msra.mxu0 %v660
        %4239 = vmatpush.msra.mxu0 %v596
        %4240 = vmatpush.msra.mxu0 %v532
        %4241 = vmatpush.msra.mxu0 %v468
        %4242 = vmatpush.msra.mxu0 %v404
        %4243 = vmatpush.msra.mxu0 %v340
        %4244 = vmatpush.msra.mxu0 %v276
        %4245 = vmatmul.f32.gmra.mxu0 %v2430
        %v4246 = vpop.f32.mrf.mxu0
        %v4247 = vadd.f32 %v2340, %v4246
        %4248 = vdwg.mxu0
        %4249 = vmatpush.msra.mxu0 %v2558
        %4250 = vmatpush.msra.mxu0 %v2196
        %4251 = vmatpush.msra.mxu0 %v2132
        %4252 = vmatpush.msra.mxu0 %v2068
        %4253 = vmatpush.msra.mxu0 %v2004
        %4254 = vmatpush.msra.mxu0 %v1940
        %4255 = vmatpush.msra.mxu0 %v1876
        %4256 = vmatpush.msra.mxu0 %v1812
        %4257 = vmatpush.msra.mxu0 %v1748
        %4258 = vmatpush.msra.mxu0 %v1684
        %4259 = vmatpush.msra.mxu0 %v1620
        %4260 = vmatpush.msra.mxu0 %v1556
        %4261 = vmatpush.msra.mxu0 %v1492
        %4262 = vmatpush.msra.mxu0 %v1428
        %4263 = vmatpush.msra.mxu0 %v1364
        %4264 = vmatpush.msra.mxu0 %v1300
        %4265 = vmatmul.f32.gmra.mxu0 %v2434
        %v4266 = vpop.f32.mrf.mxu0
        %v4267 = vadd.f32 %v4247, %v4266
        %4268 = vdwg.mxu0
        %4269 = vmatpush.msra.mxu0 %v1237
        %4270 = vmatpush.msra.mxu0 %v1173
        %4271 = vmatpush.msra.mxu0 %v1109
        %4272 = vmatpush.msra.mxu0 %v1045
        %4273 = vmatpush.msra.mxu0 %v981
        %4274 = vmatpush.msra.mxu0 %v917
        %4275 = vmatpush.msra.mxu0 %v853
        %4276 = vmatpush.msra.mxu0 %v789
        %4277 = vmatpush.msra.mxu0 %v725
        %4278 = vmatpush.msra.mxu0 %v661
        %4279 = vmatpush.msra.mxu0 %v597
        %4280 = vmatpush.msra.mxu0 %v533
        %4281 = vmatpush.msra.mxu0 %v469
        %4282 = vmatpush.msra.mxu0 %v405
        %4283 = vmatpush.msra.mxu0 %v341
        %4284 = vmatpush.msra.mxu0 %v277
        %4285 = vmatmul.f32.gmra.mxu0 %v2430
        %v4286 = vpop.f32.mrf.mxu0
        %v4287 = vadd.f32 %v2341, %v4286
        %4288 = vdwg.mxu0
        %4289 = vmatpush.msra.mxu0 %v2561
        %4290 = vmatpush.msra.mxu0 %v2197
        %4291 = vmatpush.msra.mxu0 %v2133
        %4292 = vmatpush.msra.mxu0 %v2069
        %4293 = vmatpush.msra.mxu0 %v2005
        %4294 = vmatpush.msra.mxu0 %v1941
        %4295 = vmatpush.msra.mxu0 %v1877
        %4296 = vmatpush.msra.mxu0 %v1813
        %4297 = vmatpush.msra.mxu0 %v1749
        %4298 = vmatpush.msra.mxu0 %v1685
        %4299 = vmatpush.msra.mxu0 %v1621
        %4300 = vmatpush.msra.mxu0 %v1557
        %4301 = vmatpush.msra.mxu0 %v1493
        %4302 = vmatpush.msra.mxu0 %v1429
        %4303 = vmatpush.msra.mxu0 %v1365
        %4304 = vmatpush.msra.mxu0 %v1301
        %4305 = vmatmul.f32.gmra.mxu0 %v2434
        %v4306 = vpop.f32.mrf.mxu0
        %v4307 = vadd.f32 %v4287, %v4306
        %4308 = vdwg.mxu0
        %4309 = vmatpush.msra.mxu0 %v1238
        %4310 = vmatpush.msra.mxu0 %v1174
        %4311 = vmatpush.msra.mxu0 %v1110
        %4312 = vmatpush.msra.mxu0 %v1046
        %4313 = vmatpush.msra.mxu0 %v982
        %4314 = vmatpush.msra.mxu0 %v918
        %4315 = vmatpush.msra.mxu0 %v854
        %4316 = vmatpush.msra.mxu0 %v790
        %4317 = vmatpush.msra.mxu0 %v726
        %4318 = vmatpush.msra.mxu0 %v662
        %4319 = vmatpush.msra.mxu0 %v598
        %4320 = vmatpush.msra.mxu0 %v534
        %4321 = vmatpush.msra.mxu0 %v470
        %4322 = vmatpush.msra.mxu0 %v406
        %4323 = vmatpush.msra.mxu0 %v342
        %4324 = vmatpush.msra.mxu0 %v278
        %4325 = vmatmul.f32.gmra.mxu0 %v2430
        %v4326 = vpop.f32.mrf.mxu0
        %v4327 = vadd.f32 %v2342, %v4326
        %4328 = vdwg.mxu0
        %4329 = vmatpush.msra.mxu0 %v2564
        %4330 = vmatpush.msra.mxu0 %v2198
        %4331 = vmatpush.msra.mxu0 %v2134
        %4332 = vmatpush.msra.mxu0 %v2070
        %4333 = vmatpush.msra.mxu0 %v2006
        %4334 = vmatpush.msra.mxu0 %v1942
        %4335 = vmatpush.msra.mxu0 %v1878
        %4336 = vmatpush.msra.mxu0 %v1814
        %4337 = vmatpush.msra.mxu0 %v1750
        %4338 = vmatpush.msra.mxu0 %v1686
        %4339 = vmatpush.msra.mxu0 %v1622
        %4340 = vmatpush.msra.mxu0 %v1558
        %4341 = vmatpush.msra.mxu0 %v1494
        %4342 = vmatpush.msra.mxu0 %v1430
        %4343 = vmatpush.msra.mxu0 %v1366
        %4344 = vmatpush.msra.mxu0 %v1302
        %4345 = vmatmul.f32.gmra.mxu0 %v2434
        %v4346 = vpop.f32.mrf.mxu0
        %v4347 = vadd.f32 %v4327, %v4346
        %4348 = vdwg.mxu0
        %4349 = vmatpush.msra.mxu0 %v1239
        %4350 = vmatpush.msra.mxu0 %v1175
        %4351 = vmatpush.msra.mxu0 %v1111
        %4352 = vmatpush.msra.mxu0 %v1047
        %4353 = vmatpush.msra.mxu0 %v983
        %4354 = vmatpush.msra.mxu0 %v919
        %4355 = vmatpush.msra.mxu0 %v855
        %4356 = vmatpush.msra.mxu0 %v791
        %4357 = vmatpush.msra.mxu0 %v727
        %4358 = vmatpush.msra.mxu0 %v663
        %4359 = vmatpush.msra.mxu0 %v599
        %4360 = vmatpush.msra.mxu0 %v535
        %4361 = vmatpush.msra.mxu0 %v471
        %4362 = vmatpush.msra.mxu0 %v407
        %4363 = vmatpush.msra.mxu0 %v343
        %4364 = vmatpush.msra.mxu0 %v279
        %4365 = vmatmul.f32.gmra.mxu0 %v2430
        %v4366 = vpop.f32.mrf.mxu0
        %v4367 = vadd.f32 %v2343, %v4366
        %4368 = vdwg.mxu0
        %4369 = vmatpush.msra.mxu0 %v2567
        %4370 = vmatpush.msra.mxu0 %v2199
        %4371 = vmatpush.msra.mxu0 %v2135
        %4372 = vmatpush.msra.mxu0 %v2071
        %4373 = vmatpush.msra.mxu0 %v2007
        %4374 = vmatpush.msra.mxu0 %v1943
        %4375 = vmatpush.msra.mxu0 %v1879
        %4376 = vmatpush.msra.mxu0 %v1815
        %4377 = vmatpush.msra.mxu0 %v1751
        %4378 = vmatpush.msra.mxu0 %v1687
        %4379 = vmatpush.msra.mxu0 %v1623
        %4380 = vmatpush.msra.mxu0 %v1559
        %4381 = vmatpush.msra.mxu0 %v1495
        %4382 = vmatpush.msra.mxu0 %v1431
        %4383 = vmatpush.msra.mxu0 %v1367
        %4384 = vmatpush.msra.mxu0 %v1303
        %4385 = vmatmul.f32.gmra.mxu0 %v2434
        %v4386 = vpop.f32.mrf.mxu0
        %v4387 = vadd.f32 %v4367, %v4386
        %4388 = vdwg.mxu0
        %4389 = vmatpush.msra.mxu0 %v1240
        %4390 = vmatpush.msra.mxu0 %v1176
        %4391 = vmatpush.msra.mxu0 %v1112
        %4392 = vmatpush.msra.mxu0 %v1048
        %4393 = vmatpush.msra.mxu0 %v984
        %4394 = vmatpush.msra.mxu0 %v920
        %4395 = vmatpush.msra.mxu0 %v856
        %4396 = vmatpush.msra.mxu0 %v792
        %4397 = vmatpush.msra.mxu0 %v728
        %4398 = vmatpush.msra.mxu0 %v664
        %4399 = vmatpush.msra.mxu0 %v600
        %4400 = vmatpush.msra.mxu0 %v536
        %4401 = vmatpush.msra.mxu0 %v472
        %4402 = vmatpush.msra.mxu0 %v408
        %4403 = vmatpush.msra.mxu0 %v344
        %4404 = vmatpush.msra.mxu0 %v280
        %4405 = vmatmul.f32.gmra.mxu0 %v2430
        %v4406 = vpop.f32.mrf.mxu0
        %v4407 = vadd.f32 %v2344, %v4406
        %4408 = vdwg.mxu0
        %4409 = vmatpush.msra.mxu0 %v2570
        %4410 = vmatpush.msra.mxu0 %v2200
        %4411 = vmatpush.msra.mxu0 %v2136
        %4412 = vmatpush.msra.mxu0 %v2072
        %4413 = vmatpush.msra.mxu0 %v2008
        %4414 = vmatpush.msra.mxu0 %v1944
        %4415 = vmatpush.msra.mxu0 %v1880
        %4416 = vmatpush.msra.mxu0 %v1816
        %4417 = vmatpush.msra.mxu0 %v1752
        %4418 = vmatpush.msra.mxu0 %v1688
        %4419 = vmatpush.msra.mxu0 %v1624
        %4420 = vmatpush.msra.mxu0 %v1560
        %4421 = vmatpush.msra.mxu0 %v1496
        %4422 = vmatpush.msra.mxu0 %v1432
        %4423 = vmatpush.msra.mxu0 %v1368
        %4424 = vmatpush.msra.mxu0 %v1304
        %4425 = vmatmul.f32.gmra.mxu0 %v2434
        %v4426 = vpop.f32.mrf.mxu0
        %v4427 = vadd.f32 %v4407, %v4426
        %4428 = vdwg.mxu0
        %4429 = vmatpush.msra.mxu0 %v1241
        %4430 = vmatpush.msra.mxu0 %v1177
        %4431 = vmatpush.msra.mxu0 %v1113
        %4432 = vmatpush.msra.mxu0 %v1049
        %4433 = vmatpush.msra.mxu0 %v985
        %4434 = vmatpush.msra.mxu0 %v921
        %4435 = vmatpush.msra.mxu0 %v857
        %4436 = vmatpush.msra.mxu0 %v793
        %4437 = vmatpush.msra.mxu0 %v729
        %4438 = vmatpush.msra.mxu0 %v665
        %4439 = vmatpush.msra.mxu0 %v601
        %4440 = vmatpush.msra.mxu0 %v537
        %4441 = vmatpush.msra.mxu0 %v473
        %4442 = vmatpush.msra.mxu0 %v409
        %4443 = vmatpush.msra.mxu0 %v345
        %4444 = vmatpush.msra.mxu0 %v281
        %4445 = vmatmul.f32.gmra.mxu0 %v2430
        %v4446 = vpop.f32.mrf.mxu0
        %v4447 = vadd.f32 %v2345, %v4446
        %4448 = vdwg.mxu0
        %4449 = vmatpush.msra.mxu0 %v2573
        %4450 = vmatpush.msra.mxu0 %v2201
        %4451 = vmatpush.msra.mxu0 %v2137
        %4452 = vmatpush.msra.mxu0 %v2073
        %4453 = vmatpush.msra.mxu0 %v2009
        %4454 = vmatpush.msra.mxu0 %v1945
        %4455 = vmatpush.msra.mxu0 %v1881
        %4456 = vmatpush.msra.mxu0 %v1817
        %4457 = vmatpush.msra.mxu0 %v1753
        %4458 = vmatpush.msra.mxu0 %v1689
        %4459 = vmatpush.msra.mxu0 %v1625
        %4460 = vmatpush.msra.mxu0 %v1561
        %4461 = vmatpush.msra.mxu0 %v1497
        %4462 = vmatpush.msra.mxu0 %v1433
        %4463 = vmatpush.msra.mxu0 %v1369
        %4464 = vmatpush.msra.mxu0 %v1305
        %4465 = vmatmul.f32.gmra.mxu0 %v2434
        %v4466 = vpop.f32.mrf.mxu0
        %v4467 = vadd.f32 %v4447, %v4466
        %4468 = vdwg.mxu0
        %4469 = vmatpush.msra.mxu0 %v1242
        %4470 = vmatpush.msra.mxu0 %v1178
        %4471 = vmatpush.msra.mxu0 %v1114
        %4472 = vmatpush.msra.mxu0 %v1050
        %4473 = vmatpush.msra.mxu0 %v986
        %4474 = vmatpush.msra.mxu0 %v922
        %4475 = vmatpush.msra.mxu0 %v858
        %4476 = vmatpush.msra.mxu0 %v794
        %4477 = vmatpush.msra.mxu0 %v730
        %4478 = vmatpush.msra.mxu0 %v666
        %4479 = vmatpush.msra.mxu0 %v602
        %4480 = vmatpush.msra.mxu0 %v538
        %4481 = vmatpush.msra.mxu0 %v474
        %4482 = vmatpush.msra.mxu0 %v410
        %4483 = vmatpush.msra.mxu0 %v346
        %4484 = vmatpush.msra.mxu0 %v282
        %4485 = vmatmul.f32.gmra.mxu0 %v2430
        %v4486 = vpop.f32.mrf.mxu0
        %v4487 = vadd.f32 %v2346, %v4486
        %4488 = vdwg.mxu0
        %4489 = vmatpush.msra.mxu0 %v2576
        %4490 = vmatpush.msra.mxu0 %v2202
        %4491 = vmatpush.msra.mxu0 %v2138
        %4492 = vmatpush.msra.mxu0 %v2074
        %4493 = vmatpush.msra.mxu0 %v2010
        %4494 = vmatpush.msra.mxu0 %v1946
        %4495 = vmatpush.msra.mxu0 %v1882
        %4496 = vmatpush.msra.mxu0 %v1818
        %4497 = vmatpush.msra.mxu0 %v1754
        %4498 = vmatpush.msra.mxu0 %v1690
        %4499 = vmatpush.msra.mxu0 %v1626
        %4500 = vmatpush.msra.mxu0 %v1562
        %4501 = vmatpush.msra.mxu0 %v1498
        %4502 = vmatpush.msra.mxu0 %v1434
        %4503 = vmatpush.msra.mxu0 %v1370
        %4504 = vmatpush.msra.mxu0 %v1306
        %4505 = vmatmul.f32.gmra.mxu0 %v2434
        %v4506 = vpop.f32.mrf.mxu0
        %v4507 = vadd.f32 %v4487, %v4506
        %4508 = vdwg.mxu0
        %4509 = vmatpush.msra.mxu0 %v1243
        %4510 = vmatpush.msra.mxu0 %v1179
        %4511 = vmatpush.msra.mxu0 %v1115
        %4512 = vmatpush.msra.mxu0 %v1051
        %4513 = vmatpush.msra.mxu0 %v987
        %4514 = vmatpush.msra.mxu0 %v923
        %4515 = vmatpush.msra.mxu0 %v859
        %4516 = vmatpush.msra.mxu0 %v795
        %4517 = vmatpush.msra.mxu0 %v731
        %4518 = vmatpush.msra.mxu0 %v667
        %4519 = vmatpush.msra.mxu0 %v603
        %4520 = vmatpush.msra.mxu0 %v539
        %4521 = vmatpush.msra.mxu0 %v475
        %4522 = vmatpush.msra.mxu0 %v411
        %4523 = vmatpush.msra.mxu0 %v347
        %4524 = vmatpush.msra.mxu0 %v283
        %4525 = vmatmul.f32.gmra.mxu0 %v2430
        %v4526 = vpop.f32.mrf.mxu0
        %v4527 = vadd.f32 %v2347, %v4526
        %4528 = vdwg.mxu0
        %4529 = vmatpush.msra.mxu0 %v2579
        %4530 = vmatpush.msra.mxu0 %v2203
        %4531 = vmatpush.msra.mxu0 %v2139
        %4532 = vmatpush.msra.mxu0 %v2075
        %4533 = vmatpush.msra.mxu0 %v2011
        %4534 = vmatpush.msra.mxu0 %v1947
        %4535 = vmatpush.msra.mxu0 %v1883
        %4536 = vmatpush.msra.mxu0 %v1819
        %4537 = vmatpush.msra.mxu0 %v1755
        %4538 = vmatpush.msra.mxu0 %v1691
        %4539 = vmatpush.msra.mxu0 %v1627
        %4540 = vmatpush.msra.mxu0 %v1563
        %4541 = vmatpush.msra.mxu0 %v1499
        %4542 = vmatpush.msra.mxu0 %v1435
        %4543 = vmatpush.msra.mxu0 %v1371
        %4544 = vmatpush.msra.mxu0 %v1307
        %4545 = vmatmul.f32.gmra.mxu0 %v2434
        %v4546 = vpop.f32.mrf.mxu0
        %v4547 = vadd.f32 %v4527, %v4546
        %4548 = vdwg.mxu0
        %4549 = vmatpush.msra.mxu0 %v1244
        %4550 = vmatpush.msra.mxu0 %v1180
        %4551 = vmatpush.msra.mxu0 %v1116
        %4552 = vmatpush.msra.mxu0 %v1052
        %4553 = vmatpush.msra.mxu0 %v988
        %4554 = vmatpush.msra.mxu0 %v924
        %4555 = vmatpush.msra.mxu0 %v860
        %4556 = vmatpush.msra.mxu0 %v796
        %4557 = vmatpush.msra.mxu0 %v732
        %4558 = vmatpush.msra.mxu0 %v668
        %4559 = vmatpush.msra.mxu0 %v604
        %4560 = vmatpush.msra.mxu0 %v540
        %4561 = vmatpush.msra.mxu0 %v476
        %4562 = vmatpush.msra.mxu0 %v412
        %4563 = vmatpush.msra.mxu0 %v348
        %4564 = vmatpush.msra.mxu0 %v284
        %4565 = vmatmul.f32.gmra.mxu0 %v2430
        %v4566 = vpop.f32.mrf.mxu0
        %v4567 = vadd.f32 %v2348, %v4566
        %4568 = vdwg.mxu0
        %4569 = vmatpush.msra.mxu0 %v2582
        %4570 = vmatpush.msra.mxu0 %v2204
        %4571 = vmatpush.msra.mxu0 %v2140
        %4572 = vmatpush.msra.mxu0 %v2076
        %4573 = vmatpush.msra.mxu0 %v2012
        %4574 = vmatpush.msra.mxu0 %v1948
        %4575 = vmatpush.msra.mxu0 %v1884
        %4576 = vmatpush.msra.mxu0 %v1820
        %4577 = vmatpush.msra.mxu0 %v1756
        %4578 = vmatpush.msra.mxu0 %v1692
        %4579 = vmatpush.msra.mxu0 %v1628
        %4580 = vmatpush.msra.mxu0 %v1564
        %4581 = vmatpush.msra.mxu0 %v1500
        %4582 = vmatpush.msra.mxu0 %v1436
        %4583 = vmatpush.msra.mxu0 %v1372
        %4584 = vmatpush.msra.mxu0 %v1308
        %4585 = vmatmul.f32.gmra.mxu0 %v2434
        %v4586 = vpop.f32.mrf.mxu0
        %v4587 = vadd.f32 %v4567, %v4586
        %4588 = vdwg.mxu0
        %4589 = vmatpush.msra.mxu0 %v1245
        %4590 = vmatpush.msra.mxu0 %v1181
        %4591 = vmatpush.msra.mxu0 %v1117
        %4592 = vmatpush.msra.mxu0 %v1053
        %4593 = vmatpush.msra.mxu0 %v989
        %4594 = vmatpush.msra.mxu0 %v925
        %4595 = vmatpush.msra.mxu0 %v861
        %4596 = vmatpush.msra.mxu0 %v797
        %4597 = vmatpush.msra.mxu0 %v733
        %4598 = vmatpush.msra.mxu0 %v669
        %4599 = vmatpush.msra.mxu0 %v605
        %4600 = vmatpush.msra.mxu0 %v541
        %4601 = vmatpush.msra.mxu0 %v477
        %4602 = vmatpush.msra.mxu0 %v413
        %4603 = vmatpush.msra.mxu0 %v349
        %4604 = vmatpush.msra.mxu0 %v285
        %4605 = vmatmul.f32.gmra.mxu0 %v2430
        %v4606 = vpop.f32.mrf.mxu0
        %v4607 = vadd.f32 %v2349, %v4606
        %4608 = vdwg.mxu0
        %4609 = vmatpush.msra.mxu0 %v2585
        %4610 = vmatpush.msra.mxu0 %v2205
        %4611 = vmatpush.msra.mxu0 %v2141
        %4612 = vmatpush.msra.mxu0 %v2077
        %4613 = vmatpush.msra.mxu0 %v2013
        %4614 = vmatpush.msra.mxu0 %v1949
        %4615 = vmatpush.msra.mxu0 %v1885
        %4616 = vmatpush.msra.mxu0 %v1821
        %4617 = vmatpush.msra.mxu0 %v1757
        %4618 = vmatpush.msra.mxu0 %v1693
        %4619 = vmatpush.msra.mxu0 %v1629
        %4620 = vmatpush.msra.mxu0 %v1565
        %4621 = vmatpush.msra.mxu0 %v1501
        %4622 = vmatpush.msra.mxu0 %v1437
        %4623 = vmatpush.msra.mxu0 %v1373
        %4624 = vmatpush.msra.mxu0 %v1309
        %4625 = vmatmul.f32.gmra.mxu0 %v2434
        %v4626 = vpop.f32.mrf.mxu0
        %v4627 = vadd.f32 %v4607, %v4626
        %4628 = vdwg.mxu0
        %4629 = vmatpush.msra.mxu0 %v1246
        %4630 = vmatpush.msra.mxu0 %v1182
        %4631 = vmatpush.msra.mxu0 %v1118
        %4632 = vmatpush.msra.mxu0 %v1054
        %4633 = vmatpush.msra.mxu0 %v990
        %4634 = vmatpush.msra.mxu0 %v926
        %4635 = vmatpush.msra.mxu0 %v862
        %4636 = vmatpush.msra.mxu0 %v798
        %4637 = vmatpush.msra.mxu0 %v734
        %4638 = vmatpush.msra.mxu0 %v670
        %4639 = vmatpush.msra.mxu0 %v606
        %4640 = vmatpush.msra.mxu0 %v542
        %4641 = vmatpush.msra.mxu0 %v478
        %4642 = vmatpush.msra.mxu0 %v414
        %4643 = vmatpush.msra.mxu0 %v350
        %4644 = vmatpush.msra.mxu0 %v286
        %4645 = vmatmul.f32.gmra.mxu0 %v2430
        %v4646 = vpop.f32.mrf.mxu0
        %v4647 = vadd.f32 %v2350, %v4646
        %4648 = vdwg.mxu0
        %4649 = vmatpush.msra.mxu0 %v2588
        %4650 = vmatpush.msra.mxu0 %v2206
        %4651 = vmatpush.msra.mxu0 %v2142
        %4652 = vmatpush.msra.mxu0 %v2078
        %4653 = vmatpush.msra.mxu0 %v2014
        %4654 = vmatpush.msra.mxu0 %v1950
        %4655 = vmatpush.msra.mxu0 %v1886
        %4656 = vmatpush.msra.mxu0 %v1822
        %4657 = vmatpush.msra.mxu0 %v1758
        %4658 = vmatpush.msra.mxu0 %v1694
        %4659 = vmatpush.msra.mxu0 %v1630
        %4660 = vmatpush.msra.mxu0 %v1566
        %4661 = vmatpush.msra.mxu0 %v1502
        %4662 = vmatpush.msra.mxu0 %v1438
        %4663 = vmatpush.msra.mxu0 %v1374
        %4664 = vmatpush.msra.mxu0 %v1310
        %4665 = vmatmul.f32.gmra.mxu0 %v2434
        %v4666 = vpop.f32.mrf.mxu0
        %v4667 = vadd.f32 %v4647, %v4666
        %4668 = vdwg.mxu0
        %4669 = vmatpush.msra.mxu0 %v1247
        %4670 = vmatpush.msra.mxu0 %v1183
        %4671 = vmatpush.msra.mxu0 %v1119
        %4672 = vmatpush.msra.mxu0 %v1055
        %4673 = vmatpush.msra.mxu0 %v991
        %4674 = vmatpush.msra.mxu0 %v927
        %4675 = vmatpush.msra.mxu0 %v863
        %4676 = vmatpush.msra.mxu0 %v799
        %4677 = vmatpush.msra.mxu0 %v735
        %4678 = vmatpush.msra.mxu0 %v671
        %4679 = vmatpush.msra.mxu0 %v607
        %4680 = vmatpush.msra.mxu0 %v543
        %4681 = vmatpush.msra.mxu0 %v479
        %4682 = vmatpush.msra.mxu0 %v415
        %4683 = vmatpush.msra.mxu0 %v351
        %4684 = vmatpush.msra.mxu0 %v287
        %4685 = vmatmul.f32.gmra.mxu0 %v2430
        %v4686 = vpop.f32.mrf.mxu0
        %v4687 = vadd.f32 %v2351, %v4686
        %4688 = vdwg.mxu0
        %4689 = vmatpush.msra.mxu0 %v2591
        %4690 = vmatpush.msra.mxu0 %v2207
        %4691 = vmatpush.msra.mxu0 %v2143
        %4692 = vmatpush.msra.mxu0 %v2079
        %4693 = vmatpush.msra.mxu0 %v2015
        %4694 = vmatpush.msra.mxu0 %v1951
        %4695 = vmatpush.msra.mxu0 %v1887
        %4696 = vmatpush.msra.mxu0 %v1823
        %4697 = vmatpush.msra.mxu0 %v1759
        %4698 = vmatpush.msra.mxu0 %v1695
        %4699 = vmatpush.msra.mxu0 %v1631
        %4700 = vmatpush.msra.mxu0 %v1567
        %4701 = vmatpush.msra.mxu0 %v1503
        %4702 = vmatpush.msra.mxu0 %v1439
        %4703 = vmatpush.msra.mxu0 %v1375
        %4704 = vmatpush.msra.mxu0 %v1311
        %4705 = vmatmul.f32.gmra.mxu0 %v2434
        %v4706 = vpop.f32.mrf.mxu0
        %v4707 = vadd.f32 %v4687, %v4706
        %4708 = vdwg.mxu0
        %4709 = vmatpush.msra.mxu0 %v1248
        %4710 = vmatpush.msra.mxu0 %v1184
        %4711 = vmatpush.msra.mxu0 %v1120
        %4712 = vmatpush.msra.mxu0 %v1056
        %4713 = vmatpush.msra.mxu0 %v992
        %4714 = vmatpush.msra.mxu0 %v928
        %4715 = vmatpush.msra.mxu0 %v864
        %4716 = vmatpush.msra.mxu0 %v800
        %4717 = vmatpush.msra.mxu0 %v736
        %4718 = vmatpush.msra.mxu0 %v672
        %4719 = vmatpush.msra.mxu0 %v608
        %4720 = vmatpush.msra.mxu0 %v544
        %4721 = vmatpush.msra.mxu0 %v480
        %4722 = vmatpush.msra.mxu0 %v416
        %4723 = vmatpush.msra.mxu0 %v352
        %4724 = vmatpush.msra.mxu0 %v288
        %4725 = vmatmul.f32.gmra.mxu0 %v2430
        %v4726 = vpop.f32.mrf.mxu0
        %v4727 = vadd.f32 %v2352, %v4726
        %4728 = vdwg.mxu0
        %4729 = vmatpush.msra.mxu0 %v2594
        %4730 = vmatpush.msra.mxu0 %v2208
        %4731 = vmatpush.msra.mxu0 %v2144
        %4732 = vmatpush.msra.mxu0 %v2080
        %4733 = vmatpush.msra.mxu0 %v2016
        %4734 = vmatpush.msra.mxu0 %v1952
        %4735 = vmatpush.msra.mxu0 %v1888
        %4736 = vmatpush.msra.mxu0 %v1824
        %4737 = vmatpush.msra.mxu0 %v1760
        %4738 = vmatpush.msra.mxu0 %v1696
        %4739 = vmatpush.msra.mxu0 %v1632
        %4740 = vmatpush.msra.mxu0 %v1568
        %4741 = vmatpush.msra.mxu0 %v1504
        %4742 = vmatpush.msra.mxu0 %v1440
        %4743 = vmatpush.msra.mxu0 %v1376
        %4744 = vmatpush.msra.mxu0 %v1312
        %4745 = vmatmul.f32.gmra.mxu0 %v2434
        %v4746 = vpop.f32.mrf.mxu0
        %v4747 = vadd.f32 %v4727, %v4746
        %4748 = vdwg.mxu0
        %4749 = vmatpush.msra.mxu0 %v1249
        %4750 = vmatpush.msra.mxu0 %v1185
        %4751 = vmatpush.msra.mxu0 %v1121
        %4752 = vmatpush.msra.mxu0 %v1057
        %4753 = vmatpush.msra.mxu0 %v993
        %4754 = vmatpush.msra.mxu0 %v929
        %4755 = vmatpush.msra.mxu0 %v865
        %4756 = vmatpush.msra.mxu0 %v801
        %4757 = vmatpush.msra.mxu0 %v737
        %4758 = vmatpush.msra.mxu0 %v673
        %4759 = vmatpush.msra.mxu0 %v609
        %4760 = vmatpush.msra.mxu0 %v545
        %4761 = vmatpush.msra.mxu0 %v481
        %4762 = vmatpush.msra.mxu0 %v417
        %4763 = vmatpush.msra.mxu0 %v353
        %4764 = vmatpush.msra.mxu0 %v289
        %4765 = vmatmul.f32.gmra.mxu0 %v2430
        %v4766 = vpop.f32.mrf.mxu0
        %v4767 = vadd.f32 %v2353, %v4766
        %4768 = vdwg.mxu0
        %4769 = vmatpush.msra.mxu0 %v2597
        %4770 = vmatpush.msra.mxu0 %v2209
        %4771 = vmatpush.msra.mxu0 %v2145
        %4772 = vmatpush.msra.mxu0 %v2081
        %4773 = vmatpush.msra.mxu0 %v2017
        %4774 = vmatpush.msra.mxu0 %v1953
        %4775 = vmatpush.msra.mxu0 %v1889
        %4776 = vmatpush.msra.mxu0 %v1825
        %4777 = vmatpush.msra.mxu0 %v1761
        %4778 = vmatpush.msra.mxu0 %v1697
        %4779 = vmatpush.msra.mxu0 %v1633
        %4780 = vmatpush.msra.mxu0 %v1569
        %4781 = vmatpush.msra.mxu0 %v1505
        %4782 = vmatpush.msra.mxu0 %v1441
        %4783 = vmatpush.msra.mxu0 %v1377
        %4784 = vmatpush.msra.mxu0 %v1313
        %4785 = vmatmul.f32.gmra.mxu0 %v2434
        %v4786 = vpop.f32.mrf.mxu0
        %v4787 = vadd.f32 %v4767, %v4786
        %4788 = vdwg.mxu0
        %4789 = vmatpush.msra.mxu0 %v1250
        %4790 = vmatpush.msra.mxu0 %v1186
        %4791 = vmatpush.msra.mxu0 %v1122
        %4792 = vmatpush.msra.mxu0 %v1058
        %4793 = vmatpush.msra.mxu0 %v994
        %4794 = vmatpush.msra.mxu0 %v930
        %4795 = vmatpush.msra.mxu0 %v866
        %4796 = vmatpush.msra.mxu0 %v802
        %4797 = vmatpush.msra.mxu0 %v738
        %4798 = vmatpush.msra.mxu0 %v674
        %4799 = vmatpush.msra.mxu0 %v610
        %4800 = vmatpush.msra.mxu0 %v546
        %4801 = vmatpush.msra.mxu0 %v482
        %4802 = vmatpush.msra.mxu0 %v418
        %4803 = vmatpush.msra.mxu0 %v354
        %4804 = vmatpush.msra.mxu0 %v290
        %4805 = vmatmul.f32.gmra.mxu0 %v2430
        %v4806 = vpop.f32.mrf.mxu0
        %v4807 = vadd.f32 %v2354, %v4806
        %4808 = vdwg.mxu0
        %4809 = vmatpush.msra.mxu0 %v2600
        %4810 = vmatpush.msra.mxu0 %v2210
        %4811 = vmatpush.msra.mxu0 %v2146
        %4812 = vmatpush.msra.mxu0 %v2082
        %4813 = vmatpush.msra.mxu0 %v2018
        %4814 = vmatpush.msra.mxu0 %v1954
        %4815 = vmatpush.msra.mxu0 %v1890
        %4816 = vmatpush.msra.mxu0 %v1826
        %4817 = vmatpush.msra.mxu0 %v1762
        %4818 = vmatpush.msra.mxu0 %v1698
        %4819 = vmatpush.msra.mxu0 %v1634
        %4820 = vmatpush.msra.mxu0 %v1570
        %4821 = vmatpush.msra.mxu0 %v1506
        %4822 = vmatpush.msra.mxu0 %v1442
        %4823 = vmatpush.msra.mxu0 %v1378
        %4824 = vmatpush.msra.mxu0 %v1314
        %4825 = vmatmul.f32.gmra.mxu0 %v2434
        %v4826 = vpop.f32.mrf.mxu0
        %v4827 = vadd.f32 %v4807, %v4826
        %4828 = vdwg.mxu0
        %4829 = vmatpush.msra.mxu0 %v1251
        %4830 = vmatpush.msra.mxu0 %v1187
        %4831 = vmatpush.msra.mxu0 %v1123
        %4832 = vmatpush.msra.mxu0 %v1059
        %4833 = vmatpush.msra.mxu0 %v995
        %4834 = vmatpush.msra.mxu0 %v931
        %4835 = vmatpush.msra.mxu0 %v867
        %4836 = vmatpush.msra.mxu0 %v803
        %4837 = vmatpush.msra.mxu0 %v739
        %4838 = vmatpush.msra.mxu0 %v675
        %4839 = vmatpush.msra.mxu0 %v611
        %4840 = vmatpush.msra.mxu0 %v547
        %4841 = vmatpush.msra.mxu0 %v483
        %4842 = vmatpush.msra.mxu0 %v419
        %4843 = vmatpush.msra.mxu0 %v355
        %4844 = vmatpush.msra.mxu0 %v291
        %4845 = vmatmul.f32.gmra.mxu0 %v2430
        %v4846 = vpop.f32.mrf.mxu0
        %v4847 = vadd.f32 %v2355, %v4846
        %4848 = vdwg.mxu0
        %4849 = vmatpush.msra.mxu0 %v2603
        %4850 = vmatpush.msra.mxu0 %v2211
        %4851 = vmatpush.msra.mxu0 %v2147
        %4852 = vmatpush.msra.mxu0 %v2083
        %4853 = vmatpush.msra.mxu0 %v2019
        %4854 = vmatpush.msra.mxu0 %v1955
        %4855 = vmatpush.msra.mxu0 %v1891
        %4856 = vmatpush.msra.mxu0 %v1827
        %4857 = vmatpush.msra.mxu0 %v1763
        %4858 = vmatpush.msra.mxu0 %v1699
        %4859 = vmatpush.msra.mxu0 %v1635
        %4860 = vmatpush.msra.mxu0 %v1571
        %4861 = vmatpush.msra.mxu0 %v1507
        %4862 = vmatpush.msra.mxu0 %v1443
        %4863 = vmatpush.msra.mxu0 %v1379
        %4864 = vmatpush.msra.mxu0 %v1315
        %4865 = vmatmul.f32.gmra.mxu0 %v2434
        %v4866 = vpop.f32.mrf.mxu0
        %v4867 = vadd.f32 %v4847, %v4866
        %4868 = vdwg.mxu0
        %4869 = vmatpush.msra.mxu0 %v1252
        %4870 = vmatpush.msra.mxu0 %v1188
        %4871 = vmatpush.msra.mxu0 %v1124
        %4872 = vmatpush.msra.mxu0 %v1060
        %4873 = vmatpush.msra.mxu0 %v996
        %4874 = vmatpush.msra.mxu0 %v932
        %4875 = vmatpush.msra.mxu0 %v868
        %4876 = vmatpush.msra.mxu0 %v804
        %4877 = vmatpush.msra.mxu0 %v740
        %4878 = vmatpush.msra.mxu0 %v676
        %4879 = vmatpush.msra.mxu0 %v612
        %4880 = vmatpush.msra.mxu0 %v548
        %4881 = vmatpush.msra.mxu0 %v484
        %4882 = vmatpush.msra.mxu0 %v420
        %4883 = vmatpush.msra.mxu0 %v356
        %4884 = vmatpush.msra.mxu0 %v292
        %4885 = vmatmul.f32.gmra.mxu0 %v2430
        %v4886 = vpop.f32.mrf.mxu0
        %v4887 = vadd.f32 %v2356, %v4886
        %4888 = vdwg.mxu0
        %4889 = vmatpush.msra.mxu0 %v2606
        %4890 = vmatpush.msra.mxu0 %v2212
        %4891 = vmatpush.msra.mxu0 %v2148
        %4892 = vmatpush.msra.mxu0 %v2084
        %4893 = vmatpush.msra.mxu0 %v2020
        %4894 = vmatpush.msra.mxu0 %v1956
        %4895 = vmatpush.msra.mxu0 %v1892
        %4896 = vmatpush.msra.mxu0 %v1828
        %4897 = vmatpush.msra.mxu0 %v1764
        %4898 = vmatpush.msra.mxu0 %v1700
        %4899 = vmatpush.msra.mxu0 %v1636
        %4900 = vmatpush.msra.mxu0 %v1572
        %4901 = vmatpush.msra.mxu0 %v1508
        %4902 = vmatpush.msra.mxu0 %v1444
        %4903 = vmatpush.msra.mxu0 %v1380
        %4904 = vmatpush.msra.mxu0 %v1316
        %4905 = vmatmul.f32.gmra.mxu0 %v2434
        %v4906 = vpop.f32.mrf.mxu0
        %v4907 = vadd.f32 %v4887, %v4906
        %4908 = vdwg.mxu0
        %4909 = vmatpush.msra.mxu0 %v1253
        %4910 = vmatpush.msra.mxu0 %v1189
        %4911 = vmatpush.msra.mxu0 %v1125
        %4912 = vmatpush.msra.mxu0 %v1061
        %4913 = vmatpush.msra.mxu0 %v997
        %4914 = vmatpush.msra.mxu0 %v933
        %4915 = vmatpush.msra.mxu0 %v869
        %4916 = vmatpush.msra.mxu0 %v805
        %4917 = vmatpush.msra.mxu0 %v741
        %4918 = vmatpush.msra.mxu0 %v677
        %4919 = vmatpush.msra.mxu0 %v613
        %4920 = vmatpush.msra.mxu0 %v549
        %4921 = vmatpush.msra.mxu0 %v485
        %4922 = vmatpush.msra.mxu0 %v421
        %4923 = vmatpush.msra.mxu0 %v357
        %4924 = vmatpush.msra.mxu0 %v293
        %4925 = vmatmul.f32.gmra.mxu0 %v2430
        %v4926 = vpop.f32.mrf.mxu0
        %v4927 = vadd.f32 %v2357, %v4926
        %4928 = vdwg.mxu0
        %4929 = vmatpush.msra.mxu0 %v2609
        %4930 = vmatpush.msra.mxu0 %v2213
        %4931 = vmatpush.msra.mxu0 %v2149
        %4932 = vmatpush.msra.mxu0 %v2085
        %4933 = vmatpush.msra.mxu0 %v2021
        %4934 = vmatpush.msra.mxu0 %v1957
        %4935 = vmatpush.msra.mxu0 %v1893
        %4936 = vmatpush.msra.mxu0 %v1829
        %4937 = vmatpush.msra.mxu0 %v1765
        %4938 = vmatpush.msra.mxu0 %v1701
        %4939 = vmatpush.msra.mxu0 %v1637
        %4940 = vmatpush.msra.mxu0 %v1573
        %4941 = vmatpush.msra.mxu0 %v1509
        %4942 = vmatpush.msra.mxu0 %v1445
        %4943 = vmatpush.msra.mxu0 %v1381
        %4944 = vmatpush.msra.mxu0 %v1317
        %4945 = vmatmul.f32.gmra.mxu0 %v2434
        %v4946 = vpop.f32.mrf.mxu0
        %v4947 = vadd.f32 %v4927, %v4946
        %4948 = vdwg.mxu0
        %4949 = vmatpush.msra.mxu0 %v1254
        %4950 = vmatpush.msra.mxu0 %v1190
        %4951 = vmatpush.msra.mxu0 %v1126
        %4952 = vmatpush.msra.mxu0 %v1062
        %4953 = vmatpush.msra.mxu0 %v998
        %4954 = vmatpush.msra.mxu0 %v934
        %4955 = vmatpush.msra.mxu0 %v870
        %4956 = vmatpush.msra.mxu0 %v806
        %4957 = vmatpush.msra.mxu0 %v742
        %4958 = vmatpush.msra.mxu0 %v678
        %4959 = vmatpush.msra.mxu0 %v614
        %4960 = vmatpush.msra.mxu0 %v550
        %4961 = vmatpush.msra.mxu0 %v486
        %4962 = vmatpush.msra.mxu0 %v422
        %4963 = vmatpush.msra.mxu0 %v358
        %4964 = vmatpush.msra.mxu0 %v294
        %4965 = vmatmul.f32.gmra.mxu0 %v2430
        %v4966 = vpop.f32.mrf.mxu0
        %v4967 = vadd.f32 %v2358, %v4966
        %4968 = vdwg.mxu0
        %4969 = vmatpush.msra.mxu0 %v2612
        %4970 = vmatpush.msra.mxu0 %v2214
        %4971 = vmatpush.msra.mxu0 %v2150
        %4972 = vmatpush.msra.mxu0 %v2086
        %4973 = vmatpush.msra.mxu0 %v2022
        %4974 = vmatpush.msra.mxu0 %v1958
        %4975 = vmatpush.msra.mxu0 %v1894
        %4976 = vmatpush.msra.mxu0 %v1830
        %4977 = vmatpush.msra.mxu0 %v1766
        %4978 = vmatpush.msra.mxu0 %v1702
        %4979 = vmatpush.msra.mxu0 %v1638
        %4980 = vmatpush.msra.mxu0 %v1574
        %4981 = vmatpush.msra.mxu0 %v1510
        %4982 = vmatpush.msra.mxu0 %v1446
        %4983 = vmatpush.msra.mxu0 %v1382
        %4984 = vmatpush.msra.mxu0 %v1318
        %4985 = vmatmul.f32.gmra.mxu0 %v2434
        %v4986 = vpop.f32.mrf.mxu0
        %v4987 = vadd.f32 %v4967, %v4986
        %4988 = vdwg.mxu0
        %4989 = vmatpush.msra.mxu0 %v1255
        %4990 = vmatpush.msra.mxu0 %v1191
        %4991 = vmatpush.msra.mxu0 %v1127
        %4992 = vmatpush.msra.mxu0 %v1063
        %4993 = vmatpush.msra.mxu0 %v999
        %4994 = vmatpush.msra.mxu0 %v935
        %4995 = vmatpush.msra.mxu0 %v871
        %4996 = vmatpush.msra.mxu0 %v807
        %4997 = vmatpush.msra.mxu0 %v743
        %4998 = vmatpush.msra.mxu0 %v679
        %4999 = vmatpush.msra.mxu0 %v615
        %5000 = vmatpush.msra.mxu0 %v551
        %5001 = vmatpush.msra.mxu0 %v487
        %5002 = vmatpush.msra.mxu0 %v423
        %5003 = vmatpush.msra.mxu0 %v359
        %5004 = vmatpush.msra.mxu0 %v295
        %5005 = vmatmul.f32.gmra.mxu0 %v2430
        %v5006 = vpop.f32.mrf.mxu0
        %v5007 = vadd.f32 %v2359, %v5006
        %5008 = vdwg.mxu0
        %5009 = vmatpush.msra.mxu0 %v2615
        %5010 = vmatpush.msra.mxu0 %v2215
        %5011 = vmatpush.msra.mxu0 %v2151
        %5012 = vmatpush.msra.mxu0 %v2087
        %5013 = vmatpush.msra.mxu0 %v2023
        %5014 = vmatpush.msra.mxu0 %v1959
        %5015 = vmatpush.msra.mxu0 %v1895
        %5016 = vmatpush.msra.mxu0 %v1831
        %5017 = vmatpush.msra.mxu0 %v1767
        %5018 = vmatpush.msra.mxu0 %v1703
        %5019 = vmatpush.msra.mxu0 %v1639
        %5020 = vmatpush.msra.mxu0 %v1575
        %5021 = vmatpush.msra.mxu0 %v1511
        %5022 = vmatpush.msra.mxu0 %v1447
        %5023 = vmatpush.msra.mxu0 %v1383
        %5024 = vmatpush.msra.mxu0 %v1319
        %5025 = vmatmul.f32.gmra.mxu0 %v2434
        %v5026 = vpop.f32.mrf.mxu0
        %v5027 = vadd.f32 %v5007, %v5026
        %5028 = vdwg.mxu0
        %5029 = vmatpush.msra.mxu0 %v1256
        %5030 = vmatpush.msra.mxu0 %v1192
        %5031 = vmatpush.msra.mxu0 %v1128
        %5032 = vmatpush.msra.mxu0 %v1064
        %5033 = vmatpush.msra.mxu0 %v1000
        %5034 = vmatpush.msra.mxu0 %v936
        %5035 = vmatpush.msra.mxu0 %v872
        %5036 = vmatpush.msra.mxu0 %v808
        %5037 = vmatpush.msra.mxu0 %v744
        %5038 = vmatpush.msra.mxu0 %v680
        %5039 = vmatpush.msra.mxu0 %v616
        %5040 = vmatpush.msra.mxu0 %v552
        %5041 = vmatpush.msra.mxu0 %v488
        %5042 = vmatpush.msra.mxu0 %v424
        %5043 = vmatpush.msra.mxu0 %v360
        %5044 = vmatpush.msra.mxu0 %v296
        %5045 = vmatmul.f32.gmra.mxu0 %v2430
        %v5046 = vpop.f32.mrf.mxu0
        %v5047 = vadd.f32 %v2360, %v5046
        %5048 = vdwg.mxu0
        %5049 = vmatpush.msra.mxu0 %v2618
        %5050 = vmatpush.msra.mxu0 %v2216
        %5051 = vmatpush.msra.mxu0 %v2152
        %5052 = vmatpush.msra.mxu0 %v2088
        %5053 = vmatpush.msra.mxu0 %v2024
        %5054 = vmatpush.msra.mxu0 %v1960
        %5055 = vmatpush.msra.mxu0 %v1896
        %5056 = vmatpush.msra.mxu0 %v1832
        %5057 = vmatpush.msra.mxu0 %v1768
        %5058 = vmatpush.msra.mxu0 %v1704
        %5059 = vmatpush.msra.mxu0 %v1640
        %5060 = vmatpush.msra.mxu0 %v1576
        %5061 = vmatpush.msra.mxu0 %v1512
        %5062 = vmatpush.msra.mxu0 %v1448
        %5063 = vmatpush.msra.mxu0 %v1384
        %5064 = vmatpush.msra.mxu0 %v1320
        %5065 = vmatmul.f32.gmra.mxu0 %v2434
        %v5066 = vpop.f32.mrf.mxu0
        %v5067 = vadd.f32 %v5047, %v5066
        %5068 = vdwg.mxu0
        %5069 = vmatpush.msra.mxu0 %v1257
        %5070 = vmatpush.msra.mxu0 %v1193
        %5071 = vmatpush.msra.mxu0 %v1129
        %5072 = vmatpush.msra.mxu0 %v1065
        %5073 = vmatpush.msra.mxu0 %v1001
        %5074 = vmatpush.msra.mxu0 %v937
        %5075 = vmatpush.msra.mxu0 %v873
        %5076 = vmatpush.msra.mxu0 %v809
        %5077 = vmatpush.msra.mxu0 %v745
        %5078 = vmatpush.msra.mxu0 %v681
        %5079 = vmatpush.msra.mxu0 %v617
        %5080 = vmatpush.msra.mxu0 %v553
        %5081 = vmatpush.msra.mxu0 %v489
        %5082 = vmatpush.msra.mxu0 %v425
        %5083 = vmatpush.msra.mxu0 %v361
        %5084 = vmatpush.msra.mxu0 %v297
        %5085 = vmatmul.f32.gmra.mxu0 %v2430
        %v5086 = vpop.f32.mrf.mxu0
        %v5087 = vadd.f32 %v2361, %v5086
        %5088 = vdwg.mxu0
        %5089 = vmatpush.msra.mxu0 %v2621
        %5090 = vmatpush.msra.mxu0 %v2217
        %5091 = vmatpush.msra.mxu0 %v2153
        %5092 = vmatpush.msra.mxu0 %v2089
        %5093 = vmatpush.msra.mxu0 %v2025
        %5094 = vmatpush.msra.mxu0 %v1961
        %5095 = vmatpush.msra.mxu0 %v1897
        %5096 = vmatpush.msra.mxu0 %v1833
        %5097 = vmatpush.msra.mxu0 %v1769
        %5098 = vmatpush.msra.mxu0 %v1705
        %5099 = vmatpush.msra.mxu0 %v1641
        %5100 = vmatpush.msra.mxu0 %v1577
        %5101 = vmatpush.msra.mxu0 %v1513
        %5102 = vmatpush.msra.mxu0 %v1449
        %5103 = vmatpush.msra.mxu0 %v1385
        %5104 = vmatpush.msra.mxu0 %v1321
        %5105 = vmatmul.f32.gmra.mxu0 %v2434
        %v5106 = vpop.f32.mrf.mxu0
        %v5107 = vadd.f32 %v5087, %v5106
        %5108 = vdwg.mxu0
        %5109 = vmatpush.msra.mxu0 %v1258
        %5110 = vmatpush.msra.mxu0 %v1194
        %5111 = vmatpush.msra.mxu0 %v1130
        %5112 = vmatpush.msra.mxu0 %v1066
        %5113 = vmatpush.msra.mxu0 %v1002
        %5114 = vmatpush.msra.mxu0 %v938
        %5115 = vmatpush.msra.mxu0 %v874
        %5116 = vmatpush.msra.mxu0 %v810
        %5117 = vmatpush.msra.mxu0 %v746
        %5118 = vmatpush.msra.mxu0 %v682
        %5119 = vmatpush.msra.mxu0 %v618
        %5120 = vmatpush.msra.mxu0 %v554
        %5121 = vmatpush.msra.mxu0 %v490
        %5122 = vmatpush.msra.mxu0 %v426
        %5123 = vmatpush.msra.mxu0 %v362
        %5124 = vmatpush.msra.mxu0 %v298
        %5125 = vmatmul.f32.gmra.mxu0 %v2430
        %v5126 = vpop.f32.mrf.mxu0
        %v5127 = vadd.f32 %v2362, %v5126
        %5128 = vdwg.mxu0
        %5129 = vmatpush.msra.mxu0 %v2624
        %5130 = vmatpush.msra.mxu0 %v2218
        %5131 = vmatpush.msra.mxu0 %v2154
        %5132 = vmatpush.msra.mxu0 %v2090
        %5133 = vmatpush.msra.mxu0 %v2026
        %5134 = vmatpush.msra.mxu0 %v1962
        %5135 = vmatpush.msra.mxu0 %v1898
        %5136 = vmatpush.msra.mxu0 %v1834
        %5137 = vmatpush.msra.mxu0 %v1770
        %5138 = vmatpush.msra.mxu0 %v1706
        %5139 = vmatpush.msra.mxu0 %v1642
        %5140 = vmatpush.msra.mxu0 %v1578
        %5141 = vmatpush.msra.mxu0 %v1514
        %5142 = vmatpush.msra.mxu0 %v1450
        %5143 = vmatpush.msra.mxu0 %v1386
        %5144 = vmatpush.msra.mxu0 %v1322
        %5145 = vmatmul.f32.gmra.mxu0 %v2434
        %v5146 = vpop.f32.mrf.mxu0
        %v5147 = vadd.f32 %v5127, %v5146
        %5148 = vdwg.mxu0
        %5149 = vmatpush.msra.mxu0 %v1259
        %5150 = vmatpush.msra.mxu0 %v1195
        %5151 = vmatpush.msra.mxu0 %v1131
        %5152 = vmatpush.msra.mxu0 %v1067
        %5153 = vmatpush.msra.mxu0 %v1003
        %5154 = vmatpush.msra.mxu0 %v939
        %5155 = vmatpush.msra.mxu0 %v875
        %5156 = vmatpush.msra.mxu0 %v811
        %5157 = vmatpush.msra.mxu0 %v747
        %5158 = vmatpush.msra.mxu0 %v683
        %5159 = vmatpush.msra.mxu0 %v619
        %5160 = vmatpush.msra.mxu0 %v555
        %5161 = vmatpush.msra.mxu0 %v491
        %5162 = vmatpush.msra.mxu0 %v427
        %5163 = vmatpush.msra.mxu0 %v363
        %5164 = vmatpush.msra.mxu0 %v299
        %5165 = vmatmul.f32.gmra.mxu0 %v2430
        %v5166 = vpop.f32.mrf.mxu0
        %v5167 = vadd.f32 %v2363, %v5166
        %5168 = vdwg.mxu0
        %5169 = vmatpush.msra.mxu0 %v2627
        %5170 = vmatpush.msra.mxu0 %v2219
        %5171 = vmatpush.msra.mxu0 %v2155
        %5172 = vmatpush.msra.mxu0 %v2091
        %5173 = vmatpush.msra.mxu0 %v2027
        %5174 = vmatpush.msra.mxu0 %v1963
        %5175 = vmatpush.msra.mxu0 %v1899
        %5176 = vmatpush.msra.mxu0 %v1835
        %5177 = vmatpush.msra.mxu0 %v1771
        %5178 = vmatpush.msra.mxu0 %v1707
        %5179 = vmatpush.msra.mxu0 %v1643
        %5180 = vmatpush.msra.mxu0 %v1579
        %5181 = vmatpush.msra.mxu0 %v1515
        %5182 = vmatpush.msra.mxu0 %v1451
        %5183 = vmatpush.msra.mxu0 %v1387
        %5184 = vmatpush.msra.mxu0 %v1323
        %5185 = vmatmul.f32.gmra.mxu0 %v2434
        %v5186 = vpop.f32.mrf.mxu0
        %v5187 = vadd.f32 %v5167, %v5186
        %5188 = vdwg.mxu0
        %v5253 = vrot.slane %v2707, 6
        %v5254 = vrot.slane %v2747, 4
        %v5255 = vrot.slane %v2787, 2
        %v5256 = vrot.slane %v2867, 6
        %v5257 = vrot.slane %v2907, 4
        %v5258 = vrot.slane %v2947, 2
        %v5259 = vrot.slane %v3027, 6
        %v5260 = vrot.slane %v3067, 4
        %v5261 = vrot.slane %v3107, 2
        %v5262 = vrot.slane %v3187, 6
        %v5263 = vrot.slane %v3227, 4
        %v5264 = vrot.slane %v3267, 2
        %v5265 = vrot.slane %v3347, 6
        %v5266 = vrot.slane %v3387, 4
        %v5267 = vrot.slane %v3427, 2
        %v5268 = vrot.slane %v3507, 6
        %v5269 = vrot.slane %v3547, 4
        %v5270 = vrot.slane %v3587, 2
        %v5271 = vrot.slane %v3667, 6
        %v5272 = vrot.slane %v3707, 4
        %v5273 = vrot.slane %v3747, 2
        %v5274 = vrot.slane %v3827, 6
        %v5275 = vrot.slane %v3867, 4
        %v5276 = vrot.slane %v3907, 2
        %v5277 = vrot.slane %v3987, 6
        %v5278 = vrot.slane %v4027, 4
        %v5279 = vrot.slane %v4067, 2
        %v5280 = vrot.slane %v4147, 6
        %v5281 = vrot.slane %v4187, 4
        %v5282 = vrot.slane %v4227, 2
        %v5283 = vrot.slane %v4307, 6
        %v5284 = vrot.slane %v4347, 4
        %v5285 = vrot.slane %v4387, 2
        %v5286 = vrot.slane %v4467, 6
        %v5287 = vrot.slane %v4507, 4
        %v5288 = vrot.slane %v4547, 2
        %v5289 = vrot.slane %v4627, 6
        %v5290 = vrot.slane %v4667, 4
        %v5291 = vrot.slane %v4707, 2
        %v5292 = vrot.slane %v4787, 6
        %v5293 = vrot.slane %v4827, 4
        %v5294 = vrot.slane %v4867, 2
        %v5295 = vrot.slane %v4947, 6
        %v5296 = vrot.slane %v4987, 4
        %v5297 = vrot.slane %v5027, 2
        %v5298 = vrot.slane %v5107, 6
        %v5299 = vrot.slane %v5147, 4
        %v5300 = vrot.slane %v5187, 2
        %v5301 = vsel %vm2436, %v2667, %v5253
        %vm5302 = vcmask 1045508
        %v5303 = vsel %vm5302, %v5254, %v5255
        %vm5304 = vcmask 1043456
        %v5305 = vsel %vm5304, %v5301, %v5303
        %v5306 = vsel %vm2436, %v2827, %v5256
        %v5307 = vsel %vm5302, %v5257, %v5258
        %v5308 = vsel %vm5304, %v5306, %v5307
        %v5309 = vsel %vm2436, %v2987, %v5259
        %v5310 = vsel %vm5302, %v5260, %v5261
        %v5311 = vsel %vm5304, %v5309, %v5310
        %v5312 = vsel %vm2436, %v3147, %v5262
        %v5313 = vsel %vm5302, %v5263, %v5264
        %v5314 = vsel %vm5304, %v5312, %v5313
        %v5315 = vsel %vm2436, %v3307, %v5265
        %v5316 = vsel %vm5302, %v5266, %v5267
        %v5317 = vsel %vm5304, %v5315, %v5316
        %v5318 = vsel %vm2436, %v3467, %v5268
        %v5319 = vsel %vm5302, %v5269, %v5270
        %v5320 = vsel %vm5304, %v5318, %v5319
        %v5321 = vsel %vm2436, %v3627, %v5271
        %v5322 = vsel %vm5302, %v5272, %v5273
        %v5323 = vsel %vm5304, %v5321, %v5322
        %v5324 = vsel %vm2436, %v3787, %v5274
        %v5325 = vsel %vm5302, %v5275, %v5276
        %v5326 = vsel %vm5304, %v5324, %v5325
        %v5327 = vsel %vm2436, %v3947, %v5277
        %v5328 = vsel %vm5302, %v5278, %v5279
        %v5329 = vsel %vm5304, %v5327, %v5328
        %v5330 = vsel %vm2436, %v4107, %v5280
        %v5331 = vsel %vm5302, %v5281, %v5282
        %v5332 = vsel %vm5304, %v5330, %v5331
        %v5333 = vsel %vm2436, %v4267, %v5283
        %v5334 = vsel %vm5302, %v5284, %v5285
        %v5335 = vsel %vm5304, %v5333, %v5334
        %v5336 = vsel %vm2436, %v4427, %v5286
        %v5337 = vsel %vm5302, %v5287, %v5288
        %v5338 = vsel %vm5304, %v5336, %v5337
        %v5339 = vsel %vm2436, %v4587, %v5289
        %v5340 = vsel %vm5302, %v5290, %v5291
        %v5341 = vsel %vm5304, %v5339, %v5340
        %v5342 = vsel %vm2436, %v4747, %v5292
        %v5343 = vsel %vm5302, %v5293, %v5294
        %v5344 = vsel %vm5304, %v5342, %v5343
        %v5345 = vsel %vm2436, %v4907, %v5295
        %v5346 = vsel %vm5302, %v5296, %v5297
        %v5347 = vsel %vm5304, %v5345, %v5346
        %v5348 = vsel %vm2436, %v5067, %v5298
        %v5349 = vsel %vm5302, %v5299, %v5300
        %v5350 = vsel %vm5304, %v5348, %v5349
        %5367 = vst [vmem:[%s233] sm:$0xff] %v5305
        %5368 = vst [vmem:[%s233 + $0x8] sm:$0xff] %v5308
        %5369 = vst [vmem:[%s233 + $0x10] sm:$0xff] %v5311
        %5370 = vst [vmem:[%s233 + $0x18] sm:$0xff] %v5314
        %5371 = vst [vmem:[%s233 + $0x20] sm:$0xff] %v5317
        %5372 = vst [vmem:[%s233 + $0x28] sm:$0xff] %v5320
        %5373 = vst [vmem:[%s233 + $0x30] sm:$0xff] %v5323
        %5374 = vst [vmem:[%s233 + $0x38] sm:$0xff] %v5326
        %5375 = vst [vmem:[%s233 + $0x40] sm:$0xff] %v5329
        %5376 = vst [vmem:[%s233 + $0x48] sm:$0xff] %v5332
        %5377 = vst [vmem:[%s233 + $0x50] sm:$0xff] %v5335
        %5378 = vst [vmem:[%s233 + $0x58] sm:$0xff] %v5338
        %5379 = vst [vmem:[%s233 + $0x60] sm:$0xff] %v5341
        %5380 = vst [vmem:[%s233 + $0x68] sm:$0xff] %v5344
        %5381 = vst [vmem:[%s233 + $0x70] sm:$0xff] %v5347
        %5382 = vst [vmem:[%s233 + $0x78] sm:$0xff] %v5350
        %s5383 = smul.u32 64, %s20
        %p5384 = scmp.lt.s32.totalorder %s5383, 1727
        %s5385 = scalar_select %p5384, %s5383, 1727
        %s5386 = smul.addr %s5385, 2
        %s5387 = scalar_lea.vmem %s3, %s5386
        // Predicated region
        $region41: #{complex_decoder.3} parent=31 // pred_check
          %p5388 = pneg %p111
        $region42: #{complex_decoder.3} parent=31 // pred_check_branch
          %5390 = sbr.rel (%p5388) target = $region44
        $region43: #{complex_decoder.3} parent=31 // pred_region
          %s5391 = smul.u32 64, %s20
        $region44: #{complex_decoder.3} parent=31 // pred_fallthru
          _
      $region32: #{complex_decoder.3} parent=5 // pred_fallthru
        _
      %p5392 = scmp.le.s32.totalorder 2, %s15
      // Predicated region
      $region45: #{complex_decoder.3} parent=5 // pred_check
        %p5393 = pneg %p5392
      $region46: #{complex_decoder.3} parent=5 // pred_check_branch
        %5395 = sbr.rel (%p5393) target = $region48
      $region47: #{complex_decoder.3} parent=5 // pred_region
        %s5396 = ssub.s32 %s15, 2
        // Predicated region
        $region49: #{complex_decoder.3} parent=47 // pred_check
          %p5397 = pneg %p117
        $region50: #{complex_decoder.3} parent=47 // pred_check_branch
          %5399 = sbr.rel (%p5397) target = $region52
        $region51: #{complex_decoder.3} parent=47 // pred_region
          %s5400 = smul.u32 64, %s21
          %p5401 = scmp.lt.s32.totalorder %s5400, 1727
          %s5402 = scalar_select %p5401, %s5400, 1727
          %s5403 = smul.addr %s5402, 2
          %s5404 = scalar_lea.vmem %s3, %s5403
        $region52: #{complex_decoder.3} parent=47 // pred_fallthru
          _
      $region48: #{complex_decoder.3} parent=5 // pred_fallthru
        _
    $region6: #{complex_decoder.3} parent=1 // loop_footer
      %s19 = sadd.s32 1, %s15
    $region7: #{complex_decoder.3} parent=1 // loop_footer_branch
      %14 = sbr.rel target = $region3
    $region8: #{complex_decoder.3} parent=1 // loop_exit
      _
    %5405 = vsyncpa [#allocation3], 1
    %s5406 = scalar_lea.sflag [#allocation3], 1
    %5407 = vsyncpa %s5406, 1
    %5408 = vsyncpa [#allocation5], 1
    %s5409 = scalar_lea.sflag [#allocation5], 1
    %5410 = vsyncpa %s5409, 1

</llo_original>
